<compile_context>
chip_gen: v7x
topology: tpu7x:2x2x1
jax: 0.10.0
libtpu: 0.0.40
codegen_flags: <defaults>
</compile_context>

<pallas_src>
import functools

import numpy as np
import jax
import jax.numpy as jnp
from jax.experimental import pallas as pl
from jax.experimental.pallas import tpu as pltpu


# ----------------------------------------------------------------------------
# Pallas kernel: full recurrent step sequence of one ConvLSTM layer.
# ----------------------------------------------------------------------------
def _layer_kernel(px_ref, wt_ref, h_out_ref, c_out_ref, hpad_ref, c_ref,
                  *, B, H, WC, KH, PH):
    """One grid point = one recurrent step s for the WHOLE batch.

    px_ref : (1, B, H, 4*WC)  precomputed x-conv gate pre-activation (+ bias),
                              lane order (gate, x, channel).
    wt_ref : (KH*WC, 4*WC)    block-Toeplitz hidden->gates weights (resident).
    h_out_ref / c_out_ref : (1, B, H, WC) per-step h / c.
    hpad_ref : (B, H + 2*PH, WC) VMEM scratch: h with zero rows top/bottom.
    c_ref    : (B, H, WC)        VMEM scratch: cell state.
    """
    s = pl.program_id(0)

    @pl.when(s == 0)
    def _init():
        hpad_ref[...] = jnp.zeros_like(hpad_ref)
        c_ref[...] = jnp.zeros_like(c_ref)

    wt = wt_ref[...]                                    # hoisted (resident)

    for b in range(B):                                  # B is small & static
        # conv(h) over the KHxKW window == ONE matmul against the
        # block-Toeplitz weights: LHS row y holds rows y..y+KH-1 of the padded
        # h side by side on the lane axis.
        lhs = jnp.concatenate(
            [hpad_ref[b, kh:kh + H, :] for kh in range(KH)],
            axis=-1)                                    # (H, KH*WC)
        gates = jnp.dot(lhs, wt,
                        preferred_element_type=jnp.float32)   # (H, 4*WC)
        gates = gates + px_ref[0, b]

        i = jax.nn.sigmoid(gates[:, 0 * WC:1 * WC])
        f = jax.nn.sigmoid(gates[:, 1 * WC:2 * WC])
        o = jax.nn.sigmoid(gates[:, 2 * WC:3 * WC])
        g = jnp.tanh(gates[:, 3 * WC:4 * WC])

        c_next = f * c_ref[b] + i * g
        h_next = o * jnp.tanh(c_next)

        c_ref[b] = c_next
        hpad_ref[b, PH:PH + H, :] = h_next
        h_out_ref[0, b] = h_next
        c_out_ref[0, b] = c_next


def _run_layer_recurrence(px, wt, *, H, W, Chp, KH):
    """px: (S, B, H, 4*W*Chp) f32.  wt: (KH*W*Chp, 4*W*Chp) f32.
    Returns per-step h_all, c_all of shape (S, B, H, W*Chp)."""
    S, B = px.shape[0], px.shape[1]
    WC = W * Chp
    PH = KH // 2
    kernel = functools.partial(_layer_kernel, B=B, H=H, WC=WC, KH=KH, PH=PH)
    h_all, c_all = pl.pallas_call(
        kernel,
        out_shape=(jax.ShapeDtypeStruct((S, B, H, WC), jnp.float32),
                   jax.ShapeDtypeStruct((S, B, H, WC), jnp.float32)),
        grid=(S,),
        in_specs=[
            pl.BlockSpec((1, B, H, 4 * WC), lambda s: (s, 0, 0, 0)),
            pl.BlockSpec((KH * WC, 4 * WC), lambda s: (0, 0)),   # resident
        ],
        out_specs=(pl.BlockSpec((1, B, H, WC), lambda s: (s, 0, 0, 0)),
                   pl.BlockSpec((1, B, H, WC), lambda s: (s, 0, 0, 0))),
        scratch_shapes=[pltpu.VMEM((B, H + 2 * PH, WC), jnp.float32),
                        pltpu.VMEM((B, H, WC), jnp.float32)],
        compiler_params=pltpu.CompilerParams(
            dimension_semantics=("arbitrary",)),
    )(px, wt)
    return h_all, c_all


# ----------------------------------------------------------------------------
# Weight / layout preparation (wrapper-side, traced once under jit).
# ----------------------------------------------------------------------------
def _padded_hidden(Ch, W):
    Chp = Ch
    while (W * Chp) % 128 != 0:
        Chp += 1
    return Chp


def _hh_toeplitz(w_h, W, Chp):
    """Expand (KH, KW, Ch, 4*Ch) hidden->gates conv weights into a
    (KH*W*Chp, 4*W*Chp) block-Toeplitz matrix.  Row index = (kh, x_in, c);
    column index = (gate, x_out, j).  'same' zero padding along W is folded in
    (out-of-range taps simply have zero weight)."""
    KH, KW, Ch, Cout = w_h.shape
    pw = KW // 2
    xin = np.arange(W)[None, :, None]
    xout = np.arange(W)[None, None, :]
    kw = np.arange(KW)[:, None, None]
    place = (xin == xout + kw - pw).astype(np.float32)          # (KW, W, W)
    whr = w_h.reshape(KH, KW, Ch, 4, Cout // 4)                 # (.., g, j)
    wt = jnp.einsum('kax,hkcgj->hacgxj', jnp.asarray(place), whr)
    wt = jnp.pad(wt, ((0, 0), (0, 0), (0, Chp - Ch),
                      (0, 0), (0, 0), (0, Chp - Ch)))
    return wt.reshape(KH * W * Chp, 4 * W * Chp)


# ----------------------------------------------------------------------------
# ConvLSTM.forward — exact control-flow replica of the PyTorch module.
# ----------------------------------------------------------------------------
def _conv_lstm_forward_pallas(x_nchw, params, hidden_dims, alpha):
    """x_nchw: (B, T, C, H, W).  Returns (output (B,T,hidden[-1],H,W),
    [(h_i, c_i)] per layer in NHWC)."""
    B, T, C, H, W = x_nchw.shape
    num_layers = len(hidden_dims)
    x = jnp.transpose(x_nchw, (0, 1, 3, 4, 2)).astype(jnp.float32)  # (B,T,H,W,C)

    # Per-step cell-input frames of the module's schedule (identical for every
    # layer because the module always feeds input_tensor[:, t]).
    frames = []
    out_steps = []
    for t in range(T - 1):
        out_steps.append(len(frames))
        frames.append(x[:, t])
        if t != T - 2:
            frames.append((1.0 - alpha) * x[:, t] + alpha * x[:, t + 1])
    state_step = len(frames) - 1       # state is taken at the end of the t-loop
    final_frame = x[:, T - 1]          # extra step, last layer only

    state = []
    output = None
    for li in range(num_layers):
        w, b = params[li]
        Ch = hidden_dims[li]
        KH, KW, Ctot, Cout = w.shape
        Cin = Ctot - Ch
        assert Cin == C and Cout == 4 * Ch, \
            "module quirk: hidden_dims[i-1] must equal input_dim"
        is_last = (li == num_layers - 1)

        step_frames = frames + ([final_frame] if is_last else [])
        frames_arr = jnp.stack(step_frames, axis=0)       # (S, B, H, W, C)
        S = frames_arr.shape[0]

        # --- precompute the x half of the gate pre-activations (no recurrence)
        w_x = w[:, :, :Cin, :]
        w_h = w[:, :, Cin:, :]
        px = jax.lax.conv_general_dilated(
            frames_arr.reshape(S * B, H, W, Cin), w_x, (1, 1), 'SAME',
            dimension_numbers=('NHWC', 'HWIO', 'NHWC'))
        px = px + b.reshape(1, 1, 1, -1)                  # (S*B, H, W, 4*Ch)

        # --- rearrange to the kernel's lane-dense (gate, x, channel) layout
        Chp = _padded_hidden(Ch, W)
        px = px.reshape(S, B, H, W, 4, Ch)
        px = jnp.pad(px, ((0, 0),) * 5 + ((0, Chp - Ch),))
        px = jnp.transpose(px, (0, 1, 2, 4, 3, 5)).reshape(S, B, H, 4 * W * Chp)

        wt = _hh_toeplitz(w_h, W, Chp)                    # (KH*W*Chp, 4*W*Chp)

        # --- fused recurrent Pallas kernel over all S steps of this layer
        h_all, c_all = _run_layer_recurrence(px, wt, H=H, W=W, Chp=Chp, KH=KH)
        h_all = h_all.reshape(S, B, H, W, Chp)[..., :Ch]  # drop channel padding
        c_all = c_all.reshape(S, B, H, W, Chp)[..., :Ch]

        state.append((h_all[state_step], c_all[state_step]))
        if is_last:
            seq = [h_all[i] for i in out_steps] + [h_all[S - 1]]
            output = jnp.stack(seq, axis=1)               # (B, T, H, W, Ch)

    out_nchw = jnp.transpose(output, (0, 1, 4, 2, 3))     # (B, T, Ch, H, W)
    return out_nchw, state


conv_lstm_forward_pallas = jax.jit(_conv_lstm_forward_pallas,
                                   static_argnums=(2,))


# ----------------------------------------------------------------------------
# Pure-JAX reference (verification only) — mirrors the PyTorch module exactly.
# ----------------------------------------------------------------------------
def _ref_cell(x, h, c, w, b):
    comb = jnp.concatenate([x, h], axis=-1)
    cc = jax.lax.conv_general_dilated(
        comb, w, (1, 1), 'SAME',
        dimension_numbers=('NHWC', 'HWIO', 'NHWC')) + b.reshape(1, 1, 1, -1)
    Ch = h.shape[-1]
    i = jax.nn.sigmoid(cc[..., 0 * Ch:1 * Ch])
    f = jax.nn.sigmoid(cc[..., 1 * Ch:2 * Ch])
    o = jax.nn.sigmoid(cc[..., 2 * Ch:3 * Ch])
    g = jnp.tanh(cc[..., 3 * Ch:4 * Ch])
    c_next = f * c + i * g
    h_next = o * jnp.tanh(c_next)
    return h_next, c_next


def conv_lstm_forward_reference(x_nchw, params, hidden_dims, alpha):
    B, T, C, H, W = x_nchw.shape
    x = jnp.transpose(x_nchw, (0, 1, 3, 4, 2)).astype(jnp.float32)
    num_layers = len(hidden_dims)
    state = [(jnp.zeros((B, H, W, hd), jnp.float32),
              jnp.zeros((B, H, W, hd), jnp.float32)) for hd in hidden_dims]
    outputs = []
    h = c = None
    for li in range(num_layers):
        w, bias = params[li]
        h, c = state[li]
        for t in range(T - 1):
            h, c = _ref_cell(x[:, t], h, c, w, bias)
            if li == num_layers - 1:
                outputs.append(h)
            if t != T - 2:
                nxt = (1.0 - alpha) * x[:, t] + alpha * x[:, t + 1]
                h, c = _ref_cell(nxt, h, c, w, bias)
        state[li] = (h, c)
    w, bias = params[-1]
    h, c = _ref_cell(x[:, -1], h, c, w, bias)
    outputs.append(h)
    out = jnp.stack(outputs, axis=1)
    return jnp.transpose(out, (0, 1, 4, 2, 3)), state


# ----------------------------------------------------------------------------
# Deterministic parameter initialization (mirrors nn.Conv2d shapes, HWIO).
# ----------------------------------------------------------------------------
def init_params(key, input_dim, hidden_dims, kernel_size):
    KH, KW = kernel_size
    params = []
    for i, hd in enumerate(hidden_dims):
        cur_in = input_dim if i == 0 else hidden_dims[i - 1]
        ctot = cur_in + hd
        cout = 4 * hd
        key, kw_, kb_ = jax.random.split(key, 3)
        bound = 1.0 / jnp.sqrt(jnp.float32(ctot * KH * KW))
        w = jax.random.uniform(kw_, (KH, KW, ctot, cout), jnp.float32,
                               minval=-bound, maxval=bound)
        b = jax.random.uniform(kb_, (cout,), jnp.float32,
                               minval=-bound, maxval=bound)
        params.append((w, b))
    return params


if __name__ == "__main__":
    # Small shapes consistent with the module's forward.
    B, T, C, H, W = 2, 6, 4, 16, 16
    hidden_dims = (4, 8)      # hidden_dims[0] == input_dim (module requirement for >1 layer)
    kernel_size = (3, 3)
    alpha = 0.5

    key = jax.random.PRNGKey(0)
    kx, kp = jax.random.split(key)
    x = jax.random.normal(kx, (B, T, C, H, W), jnp.float32)
    params = init_params(kp, C, hidden_dims, kernel_size)

    out, state = conv_lstm_forward_pallas(x, params, hidden_dims, alpha)
    out = jax.block_until_ready(out)

    # Verify against a pure-JAX (XLA conv) replica of the PyTorch module.
    out_ref, state_ref = conv_lstm_forward_reference(x, params, hidden_dims, alpha)
    out_ref = jax.block_until_ready(out_ref)

    assert out.shape == (B, T, hidden_dims[-1], H, W), out.shape
    assert jnp.allclose(out, out_ref, rtol=2e-3, atol=2e-3), \
        float(jnp.max(jnp.abs(out - out_ref)))
    for (h_p, c_p), (h_r, c_r) in zip(state, state_ref):
        assert jnp.allclose(h_p, h_r, rtol=2e-3, atol=2e-3)
        assert jnp.allclose(c_p, c_r, rtol=2e-3, atol=2e-3)

    print("KERNEL_OK")
</pallas_src>

<mosaic_0001>
module attributes {stable_mosaic.version = 11 : i64} {
  func.func @_layer_kernel(%arg0: i32, %arg1: memref<1x2x16x512xf32, #tpu.memory_space<vmem>>, %arg2: memref<384x512xf32, #tpu.memory_space<vmem>>, %arg3: memref<1x2x16x128xf32, #tpu.memory_space<vmem>>, %arg4: memref<1x2x16x128xf32, #tpu.memory_space<vmem>>, %arg5: memref<2x18x128xf32, #tpu.memory_space<vmem>>, %arg6: memref<2x16x128xf32, #tpu.memory_space<vmem>>) attributes {dimension_semantics = [#tpu.dimension_semantics<arbitrary>], iteration_bounds = array<i64: 10>, scalar_prefetch = 0 : i64, scratch_operands = 2 : i64, tpu.core_type = #tpu.core_type<tc>, window_params = [{transform_indices = @transform_0, window_bounds = array<i64: 1, 2, 16, 512>}, {pipeline_mode = #tpu.pipeline_mode<synchronous>, transform_indices = @transform_1, window_bounds = array<i64: 384, 512>}, {transform_indices = @transform_2, window_bounds = array<i64: 1, 2, 16, 128>}, {transform_indices = @transform_3, window_bounds = array<i64: 1, 2, 16, 128>}]} {
    %c0_i32 = arith.constant 0 : i32
    %0 = arith.cmpi eq, %arg0, %c0_i32 : i32
    %1 = arith.extui %0 : i1 to i32
    %c0_i32_0 = arith.constant 0 : i32
    %2 = arith.cmpi ne, %1, %c0_i32_0 : i32
    scf.if %2 {
      %cst_67 = arith.constant 0.000000e+00 : f32
      %104 = vector.broadcast %cst_67 : f32 to vector<2x18x128xf32>
      %c0_68 = arith.constant 0 : index
      %c0_69 = arith.constant 0 : index
      %c0_70 = arith.constant 0 : index
      %105 = vector.load %arg5[%c0_68, %c0_69, %c0_70] : memref<2x18x128xf32, #tpu.memory_space<vmem>>, vector<2x18x128xf32>
      tpu.vector_store %arg5[%c0_68, %c0_69, %c0_70], %104 {strides = array<i32>} : memref<2x18x128xf32, #tpu.memory_space<vmem>>, vector<2x18x128xf32>,
      %cst_71 = arith.constant 0.000000e+00 : f32
      %106 = vector.broadcast %cst_71 : f32 to vector<2x16x128xf32>
      %c0_72 = arith.constant 0 : index
      %c0_73 = arith.constant 0 : index
      %c0_74 = arith.constant 0 : index
      %107 = vector.load %arg6[%c0_72, %c0_73, %c0_74] : memref<2x16x128xf32, #tpu.memory_space<vmem>>, vector<2x16x128xf32>
      tpu.vector_store %arg6[%c0_72, %c0_73, %c0_74], %106 {strides = array<i32>} : memref<2x16x128xf32, #tpu.memory_space<vmem>>, vector<2x16x128xf32>,
    } else {
    }
    %c0 = arith.constant 0 : index
    %c0_1 = arith.constant 0 : index
    %3 = vector.load %arg2[%c0, %c0_1] : memref<384x512xf32, #tpu.memory_space<vmem>>, vector<384x512xf32>
    %c0_2 = arith.constant 0 : index
    %c0_3 = arith.constant 0 : index
    %c0_4 = arith.constant 0 : index
    %4 = vector.load %arg5[%c0_2, %c0_3, %c0_4] : memref<2x18x128xf32, #tpu.memory_space<vmem>>, vector<1x16x128xf32>
    %5 = vector.shape_cast %4 : vector<1x16x128xf32> to vector<16x128xf32>
    %c0_5 = arith.constant 0 : index
    %c1 = arith.constant 1 : index
    %c0_6 = arith.constant 0 : index
    %6 = vector.load %arg5[%c0_5, %c1, %c0_6] : memref<2x18x128xf32, #tpu.memory_space<vmem>>, vector<1x16x128xf32>
    %7 = vector.shape_cast %6 : vector<1x16x128xf32> to vector<16x128xf32>
    %c0_7 = arith.constant 0 : index
    %c2 = arith.constant 2 : index
    %c0_8 = arith.constant 0 : index
    %8 = vector.load %arg5[%c0_7, %c2, %c0_8] : memref<2x18x128xf32, #tpu.memory_space<vmem>>, vector<1x16x128xf32>
    %9 = vector.shape_cast %8 : vector<1x16x128xf32> to vector<16x128xf32>
    %10 = tpu.concatenate %5, %7, %9 in 1 : vector<16x128xf32>, vector<16x128xf32>, vector<16x128xf32> -> vector<16x384xf32>
    %cst = arith.constant dense<0.000000e+00> : vector<16x512xf32>
    %11 = tpu.matmul %10, %3, %cst {dimension_numbers = #tpu.dot_dimension_numbers<[1], [0], [0], [1], [0, 0, 1, 1], [], []>} : vector<16x384xf32>, vector<384x512xf32>, vector<16x512xf32> -> vector<16x512xf32>
    %c0_9 = arith.constant 0 : index
    %c0_10 = arith.constant 0 : index
    %c0_11 = arith.constant 0 : index
    %c0_12 = arith.constant 0 : index
    %12 = vector.load %arg1[%c0_9, %c0_10, %c0_11, %c0_12] : memref<1x2x16x512xf32, #tpu.memory_space<vmem>>, vector<1x1x16x512xf32>
    %13 = vector.shape_cast %12 : vector<1x1x16x512xf32> to vector<16x512xf32>
    %14 = arith.addf %11, %13 : vector<16x512xf32>
    %15 = vector.extract_strided_slice %14 {offsets = [0, 0], sizes = [16, 128], strides = [1, 1]} : vector<16x512xf32> to vector<16x128xf32>
    %16 = arith.negf %15 : vector<16x128xf32>
    %17 = math.exp %16 : vector<16x128xf32>
    %cst_13 = arith.constant 1.000000e+00 : f32
    %18 = vector.broadcast %cst_13 : f32 to vector<16x128xf32>
    %19 = arith.addf %18, %17 : vector<16x128xf32>
    %20 = arith.divf %18, %19 : vector<16x128xf32>
    %21 = vector.extract_strided_slice %14 {offsets = [0, 128], sizes = [16, 128], strides = [1, 1]} : vector<16x512xf32> to vector<16x128xf32>
    %22 = arith.negf %21 : vector<16x128xf32>
    %23 = math.exp %22 : vector<16x128xf32>
    %cst_14 = arith.constant 1.000000e+00 : f32
    %24 = vector.broadcast %cst_14 : f32 to vector<16x128xf32>
    %25 = arith.addf %24, %23 : vector<16x128xf32>
    %26 = arith.divf %24, %25 : vector<16x128xf32>
    %27 = vector.extract_strided_slice %14 {offsets = [0, 256], sizes = [16, 128], strides = [1, 1]} : vector<16x512xf32> to vector<16x128xf32>
    %28 = arith.negf %27 : vector<16x128xf32>
    %29 = math.exp %28 : vector<16x128xf32>
    %cst_15 = arith.constant 1.000000e+00 : f32
    %30 = vector.broadcast %cst_15 : f32 to vector<16x128xf32>
    %31 = arith.addf %30, %29 : vector<16x128xf32>
    %32 = arith.divf %30, %31 : vector<16x128xf32>
    %33 = vector.extract_strided_slice %14 {offsets = [0, 384], sizes = [16, 128], strides = [1, 1]} : vector<16x512xf32> to vector<16x128xf32>
    %34 = math.tanh %33 : vector<16x128xf32>
    %c0_16 = arith.constant 0 : index
    %c0_17 = arith.constant 0 : index
    %c0_18 = arith.constant 0 : index
    %35 = vector.load %arg6[%c0_16, %c0_17, %c0_18] : memref<2x16x128xf32, #tpu.memory_space<vmem>>, vector<1x16x128xf32>
    %36 = vector.shape_cast %35 : vector<1x16x128xf32> to vector<16x128xf32>
    %37 = arith.mulf %26, %36 : vector<16x128xf32>
    %38 = arith.mulf %20, %34 : vector<16x128xf32>
    %39 = arith.addf %37, %38 : vector<16x128xf32>
    %40 = math.tanh %39 : vector<16x128xf32>
    %41 = arith.mulf %32, %40 : vector<16x128xf32>
    %c0_19 = arith.constant 0 : index
    %c0_20 = arith.constant 0 : index
    %c0_21 = arith.constant 0 : index
    %42 = vector.load %arg6[%c0_19, %c0_20, %c0_21] : memref<2x16x128xf32, #tpu.memory_space<vmem>>, vector<1x16x128xf32>
    %43 = vector.shape_cast %42 : vector<1x16x128xf32> to vector<16x128xf32>
    %44 = vector.shape_cast %39 : vector<16x128xf32> to vector<1x16x128xf32>
    tpu.vector_store %arg6[%c0_19, %c0_20, %c0_21], %44 {strides = array<i32>} : memref<2x16x128xf32, #tpu.memory_space<vmem>>, vector<1x16x128xf32>,
    %c0_22 = arith.constant 0 : index
    %c1_23 = arith.constant 1 : index
    %c0_24 = arith.constant 0 : index
    %45 = vector.load %arg5[%c0_22, %c1_23, %c0_24] : memref<2x18x128xf32, #tpu.memory_space<vmem>>, vector<1x16x128xf32>
    %46 = vector.shape_cast %45 : vector<1x16x128xf32> to vector<16x128xf32>
    %47 = vector.shape_cast %41 : vector<16x128xf32> to vector<1x16x128xf32>
    tpu.vector_store %arg5[%c0_22, %c1_23, %c0_24], %47 {strides = array<i32>} : memref<2x18x128xf32, #tpu.memory_space<vmem>>, vector<1x16x128xf32>,
    %c0_25 = arith.constant 0 : index
    %c0_26 = arith.constant 0 : index
    %c0_27 = arith.constant 0 : index
    %c0_28 = arith.constant 0 : index
    %48 = vector.load %arg3[%c0_25, %c0_26, %c0_27, %c0_28] : memref<1x2x16x128xf32, #tpu.memory_space<vmem>>, vector<1x1x16x128xf32>
    %49 = vector.shape_cast %48 : vector<1x1x16x128xf32> to vector<16x128xf32>
    %50 = vector.shape_cast %41 : vector<16x128xf32> to vector<1x1x16x128xf32>
    tpu.vector_store %arg3[%c0_25, %c0_26, %c0_27, %c0_28], %50 {strides = array<i32>} : memref<1x2x16x128xf32, #tpu.memory_space<vmem>>, vector<1x1x16x128xf32>,
    %c0_29 = arith.constant 0 : index
    %c0_30 = arith.constant 0 : index
    %c0_31 = arith.constant 0 : index
    %c0_32 = arith.constant 0 : index
    %51 = vector.load %arg4[%c0_29, %c0_30, %c0_31, %c0_32] : memref<1x2x16x128xf32, #tpu.memory_space<vmem>>, vector<1x1x16x128xf32>
    %52 = vector.shape_cast %51 : vector<1x1x16x128xf32> to vector<16x128xf32>
    %53 = vector.shape_cast %39 : vector<16x128xf32> to vector<1x1x16x128xf32>
    tpu.vector_store %arg4[%c0_29, %c0_30, %c0_31, %c0_32], %53 {strides = array<i32>} : memref<1x2x16x128xf32, #tpu.memory_space<vmem>>, vector<1x1x16x128xf32>,
    %c1_33 = arith.constant 1 : index
    %c0_34 = arith.constant 0 : index
    %c0_35 = arith.constant 0 : index
    %54 = vector.load %arg5[%c1_33, %c0_34, %c0_35] : memref<2x18x128xf32, #tpu.memory_space<vmem>>, vector<1x16x128xf32>
    %55 = vector.shape_cast %54 : vector<1x16x128xf32> to vector<16x128xf32>
    %c1_36 = arith.constant 1 : index
    %c1_37 = arith.constant 1 : index
    %c0_38 = arith.constant 0 : index
    %56 = vector.load %arg5[%c1_36, %c1_37, %c0_38] : memref<2x18x128xf32, #tpu.memory_space<vmem>>, vector<1x16x128xf32>
    %57 = vector.shape_cast %56 : vector<1x16x128xf32> to vector<16x128xf32>
    %c1_39 = arith.constant 1 : index
    %c2_40 = arith.constant 2 : index
    %c0_41 = arith.constant 0 : index
    %58 = vector.load %arg5[%c1_39, %c2_40, %c0_41] : memref<2x18x128xf32, #tpu.memory_space<vmem>>, vector<1x16x128xf32>
    %59 = vector.shape_cast %58 : vector<1x16x128xf32> to vector<16x128xf32>
    %60 = tpu.concatenate %55, %57, %59 in 1 : vector<16x128xf32>, vector<16x128xf32>, vector<16x128xf32> -> vector<16x384xf32>
    %cst_42 = arith.constant dense<0.000000e+00> : vector<16x512xf32>
    %61 = tpu.matmul %60, %3, %cst_42 {dimension_numbers = #tpu.dot_dimension_numbers<[1], [0], [0], [1], [0, 0, 1, 1], [], []>} : vector<16x384xf32>, vector<384x512xf32>, vector<16x512xf32> -> vector<16x512xf32>
    %c0_43 = arith.constant 0 : index
    %c1_44 = arith.constant 1 : index
    %c0_45 = arith.constant 0 : index
    %c0_46 = arith.constant 0 : index
    %62 = vector.load %arg1[%c0_43, %c1_44, %c0_45, %c0_46] : memref<1x2x16x512xf32, #tpu.memory_space<vmem>>, vector<1x1x16x512xf32>
    %63 = vector.shape_cast %62 : vector<1x1x16x512xf32> to vector<16x512xf32>
    %64 = arith.addf %61, %63 : vector<16x512xf32>
    %65 = vector.extract_strided_slice %64 {offsets = [0, 0], sizes = [16, 128], strides = [1, 1]} : vector<16x512xf32> to vector<16x128xf32>
    %66 = arith.negf %65 : vector<16x128xf32>
    %67 = math.exp %66 : vector<16x128xf32>
    %cst_47 = arith.constant 1.000000e+00 : f32
    %68 = vector.broadcast %cst_47 : f32 to vector<16x128xf32>
    %69 = arith.addf %68, %67 : vector<16x128xf32>
    %70 = arith.divf %68, %69 : vector<16x128xf32>
    %71 = vector.extract_strided_slice %64 {offsets = [0, 128], sizes = [16, 128], strides = [1, 1]} : vector<16x512xf32> to vector<16x128xf32>
    %72 = arith.negf %71 : vector<16x128xf32>
    %73 = math.exp %72 : vector<16x128xf32>
    %cst_48 = arith.constant 1.000000e+00 : f32
    %74 = vector.broadcast %cst_48 : f32 to vector<16x128xf32>
    %75 = arith.addf %74, %73 : vector<16x128xf32>
    %76 = arith.divf %74, %75 : vector<16x128xf32>
    %77 = vector.extract_strided_slice %64 {offsets = [0, 256], sizes = [16, 128], strides = [1, 1]} : vector<16x512xf32> to vector<16x128xf32>
    %78 = arith.negf %77 : vector<16x128xf32>
    %79 = math.exp %78 : vector<16x128xf32>
    %cst_49 = arith.constant 1.000000e+00 : f32
    %80 = vector.broadcast %cst_49 : f32 to vector<16x128xf32>
    %81 = arith.addf %80, %79 : vector<16x128xf32>
    %82 = arith.divf %80, %81 : vector<16x128xf32>
    %83 = vector.extract_strided_slice %64 {offsets = [0, 384], sizes = [16, 128], strides = [1, 1]} : vector<16x512xf32> to vector<16x128xf32>
    %84 = math.tanh %83 : vector<16x128xf32>
    %c1_50 = arith.constant 1 : index
    %c0_51 = arith.constant 0 : index
    %c0_52 = arith.constant 0 : index
    %85 = vector.load %arg6[%c1_50, %c0_51, %c0_52] : memref<2x16x128xf32, #tpu.memory_space<vmem>>, vector<1x16x128xf32>
    %86 = vector.shape_cast %85 : vector<1x16x128xf32> to vector<16x128xf32>
    %87 = arith.mulf %76, %86 : vector<16x128xf32>
    %88 = arith.mulf %70, %84 : vector<16x128xf32>
    %89 = arith.addf %87, %88 : vector<16x128xf32>
    %90 = math.tanh %89 : vector<16x128xf32>
    %91 = arith.mulf %82, %90 : vector<16x128xf32>
    %c1_53 = arith.constant 1 : index
    %c0_54 = arith.constant 0 : index
    %c0_55 = arith.constant 0 : index
    %92 = vector.load %arg6[%c1_53, %c0_54, %c0_55] : memref<2x16x128xf32, #tpu.memory_space<vmem>>, vector<1x16x128xf32>
    %93 = vector.shape_cast %92 : vector<1x16x128xf32> to vector<16x128xf32>
    %94 = vector.shape_cast %89 : vector<16x128xf32> to vector<1x16x128xf32>
    tpu.vector_store %arg6[%c1_53, %c0_54, %c0_55], %94 {strides = array<i32>} : memref<2x16x128xf32, #tpu.memory_space<vmem>>, vector<1x16x128xf32>,
    %c1_56 = arith.constant 1 : index
    %c1_57 = arith.constant 1 : index
    %c0_58 = arith.constant 0 : index
    %95 = vector.load %arg5[%c1_56, %c1_57, %c0_58] : memref<2x18x128xf32, #tpu.memory_space<vmem>>, vector<1x16x128xf32>
    %96 = vector.shape_cast %95 : vector<1x16x128xf32> to vector<16x128xf32>
    %97 = vector.shape_cast %91 : vector<16x128xf32> to vector<1x16x128xf32>
    tpu.vector_store %arg5[%c1_56, %c1_57, %c0_58], %97 {strides = array<i32>} : memref<2x18x128xf32, #tpu.memory_space<vmem>>, vector<1x16x128xf32>,
    %c0_59 = arith.constant 0 : index
    %c1_60 = arith.constant 1 : index
    %c0_61 = arith.constant 0 : index
    %c0_62 = arith.constant 0 : index
    %98 = vector.load %arg3[%c0_59, %c1_60, %c0_61, %c0_62] : memref<1x2x16x128xf32, #tpu.memory_space<vmem>>, vector<1x1x16x128xf32>
    %99 = vector.shape_cast %98 : vector<1x1x16x128xf32> to vector<16x128xf32>
    %100 = vector.shape_cast %91 : vector<16x128xf32> to vector<1x1x16x128xf32>
    tpu.vector_store %arg3[%c0_59, %c1_60, %c0_61, %c0_62], %100 {strides = array<i32>} : memref<1x2x16x128xf32, #tpu.memory_space<vmem>>, vector<1x1x16x128xf32>,
    %c0_63 = arith.constant 0 : index
    %c1_64 = arith.constant 1 : index
    %c0_65 = arith.constant 0 : index
    %c0_66 = arith.constant 0 : index
    %101 = vector.load %arg4[%c0_63, %c1_64, %c0_65, %c0_66] : memref<1x2x16x128xf32, #tpu.memory_space<vmem>>, vector<1x1x16x128xf32>
    %102 = vector.shape_cast %101 : vector<1x1x16x128xf32> to vector<16x128xf32>
    %103 = vector.shape_cast %89 : vector<16x128xf32> to vector<1x1x16x128xf32>
    tpu.vector_store %arg4[%c0_63, %c1_64, %c0_65, %c0_66], %103 {strides = array<i32>} : memref<1x2x16x128xf32, #tpu.memory_space<vmem>>, vector<1x1x16x128xf32>,
    return
  }
  func.func @transform_0(%arg0: i32) -> (i32, i32, i32, i32) {
    %c0_i32 = arith.constant 0 : i32
    %c0_i32_0 = arith.constant 0 : i32
    %c0_i32_1 = arith.constant 0 : i32
    %c0_i32_2 = arith.constant 0 : i32
    return %arg0, %c0_i32, %c0_i32_0, %c0_i32_1 : i32, i32, i32, i32
  }
  func.func @transform_1(%arg0: i32) -> (i32, i32) {
    %c0_i32 = arith.constant 0 : i32
    %c0_i32_0 = arith.constant 0 : i32
    %c0_i32_1 = arith.constant 0 : i32
    return %c0_i32, %c0_i32_0 : i32, i32
  }
  func.func @transform_2(%arg0: i32) -> (i32, i32, i32, i32) {
    %c0_i32 = arith.constant 0 : i32
    %c0_i32_0 = arith.constant 0 : i32
    %c0_i32_1 = arith.constant 0 : i32
    %c0_i32_2 = arith.constant 0 : i32
    return %arg0, %c0_i32, %c0_i32_0, %c0_i32_1 : i32, i32, i32, i32
  }
  func.func @transform_3(%arg0: i32) -> (i32, i32, i32, i32) {
    %c0_i32 = arith.constant 0 : i32
    %c0_i32_0 = arith.constant 0 : i32
    %c0_i32_1 = arith.constant 0 : i32
    %c0_i32_2 = arith.constant 0 : i32
    return %arg0, %c0_i32, %c0_i32_0, %c0_i32_1 : i32, i32, i32, i32
  }
}

module attributes {stable_mosaic.version = 11 : i64} {
  func.func @_layer_kernel(%arg0: i32, %arg1: memref<1x2x16x512xf32, #tpu.memory_space<vmem>>, %arg2: memref<384x512xf32, #tpu.memory_space<vmem>>, %arg3: memref<1x2x16x128xf32, #tpu.memory_space<vmem>>, %arg4: memref<1x2x16x128xf32, #tpu.memory_space<vmem>>, %arg5: memref<2x18x128xf32, #tpu.memory_space<vmem>>, %arg6: memref<2x16x128xf32, #tpu.memory_space<vmem>>) attributes {dimension_semantics = [#tpu.dimension_semantics<arbitrary>], iteration_bounds = array<i64: 9>, scalar_prefetch = 0 : i64, scratch_operands = 2 : i64, tpu.core_type = #tpu.core_type<tc>, window_params = [{transform_indices = @transform_0, window_bounds = array<i64: 1, 2, 16, 512>}, {pipeline_mode = #tpu.pipeline_mode<synchronous>, transform_indices = @transform_1, window_bounds = array<i64: 384, 512>}, {transform_indices = @transform_2, window_bounds = array<i64: 1, 2, 16, 128>}, {transform_indices = @transform_3, window_bounds = array<i64: 1, 2, 16, 128>}]} {
    %c0_i32 = arith.constant 0 : i32
    %0 = arith.cmpi eq, %arg0, %c0_i32 : i32
    %1 = arith.extui %0 : i1 to i32
    %c0_i32_0 = arith.constant 0 : i32
    %2 = arith.cmpi ne, %1, %c0_i32_0 : i32
    scf.if %2 {
      %cst_67 = arith.constant 0.000000e+00 : f32
      %104 = vector.broadcast %cst_67 : f32 to vector<2x18x128xf32>
      %c0_68 = arith.constant 0 : index
      %c0_69 = arith.constant 0 : index
      %c0_70 = arith.constant 0 : index
      %105 = vector.load %arg5[%c0_68, %c0_69, %c0_70] : memref<2x18x128xf32, #tpu.memory_space<vmem>>, vector<2x18x128xf32>
      tpu.vector_store %arg5[%c0_68, %c0_69, %c0_70], %104 {strides = array<i32>} : memref<2x18x128xf32, #tpu.memory_space<vmem>>, vector<2x18x128xf32>,
      %cst_71 = arith.constant 0.000000e+00 : f32
      %106 = vector.broadcast %cst_71 : f32 to vector<2x16x128xf32>
      %c0_72 = arith.constant 0 : index
      %c0_73 = arith.constant 0 : index
      %c0_74 = arith.constant 0 : index
      %107 = vector.load %arg6[%c0_72, %c0_73, %c0_74] : memref<2x16x128xf32, #tpu.memory_space<vmem>>, vector<2x16x128xf32>
      tpu.vector_store %arg6[%c0_72, %c0_73, %c0_74], %106 {strides = array<i32>} : memref<2x16x128xf32, #tpu.memory_space<vmem>>, vector<2x16x128xf32>,
    } else {
    }
    %c0 = arith.constant 0 : index
    %c0_1 = arith.constant 0 : index
    %3 = vector.load %arg2[%c0, %c0_1] : memref<384x512xf32, #tpu.memory_space<vmem>>, vector<384x512xf32>
    %c0_2 = arith.constant 0 : index
    %c0_3 = arith.constant 0 : index
    %c0_4 = arith.constant 0 : index
    %4 = vector.load %arg5[%c0_2, %c0_3, %c0_4] : memref<2x18x128xf32, #tpu.memory_space<vmem>>, vector<1x16x128xf32>
    %5 = vector.shape_cast %4 : vector<1x16x128xf32> to vector<16x128xf32>
    %c0_5 = arith.constant 0 : index
    %c1 = arith.constant 1 : index
    %c0_6 = arith.constant 0 : index
    %6 = vector.load %arg5[%c0_5, %c1, %c0_6] : memref<2x18x128xf32, #tpu.memory_space<vmem>>, vector<1x16x128xf32>
    %7 = vector.shape_cast %6 : vector<1x16x128xf32> to vector<16x128xf32>
    %c0_7 = arith.constant 0 : index
    %c2 = arith.constant 2 : index
    %c0_8 = arith.constant 0 : index
    %8 = vector.load %arg5[%c0_7, %c2, %c0_8] : memref<2x18x128xf32, #tpu.memory_space<vmem>>, vector<1x16x128xf32>
    %9 = vector.shape_cast %8 : vector<1x16x128xf32> to vector<16x128xf32>
    %10 = tpu.concatenate %5, %7, %9 in 1 : vector<16x128xf32>, vector<16x128xf32>, vector<16x128xf32> -> vector<16x384xf32>
    %cst = arith.constant dense<0.000000e+00> : vector<16x512xf32>
    %11 = tpu.matmul %10, %3, %cst {dimension_numbers = #tpu.dot_dimension_numbers<[1], [0], [0], [1], [0, 0, 1, 1], [], []>} : vector<16x384xf32>, vector<384x512xf32>, vector<16x512xf32> -> vector<16x512xf32>
    %c0_9 = arith.constant 0 : index
    %c0_10 = arith.constant 0 : index
    %c0_11 = arith.constant 0 : index
    %c0_12 = arith.constant 0 : index
    %12 = vector.load %arg1[%c0_9, %c0_10, %c0_11, %c0_12] : memref<1x2x16x512xf32, #tpu.memory_space<vmem>>, vector<1x1x16x512xf32>
    %13 = vector.shape_cast %12 : vector<1x1x16x512xf32> to vector<16x512xf32>
    %14 = arith.addf %11, %13 : vector<16x512xf32>
    %15 = vector.extract_strided_slice %14 {offsets = [0, 0], sizes = [16, 128], strides = [1, 1]} : vector<16x512xf32> to vector<16x128xf32>
    %16 = arith.negf %15 : vector<16x128xf32>
    %17 = math.exp %16 : vector<16x128xf32>
    %cst_13 = arith.constant 1.000000e+00 : f32
    %18 = vector.broadcast %cst_13 : f32 to vector<16x128xf32>
    %19 = arith.addf %18, %17 : vector<16x128xf32>
    %20 = arith.divf %18, %19 : vector<16x128xf32>
    %21 = vector.extract_strided_slice %14 {offsets = [0, 128], sizes = [16, 128], strides = [1, 1]} : vector<16x512xf32> to vector<16x128xf32>
    %22 = arith.negf %21 : vector<16x128xf32>
    %23 = math.exp %22 : vector<16x128xf32>
    %cst_14 = arith.constant 1.000000e+00 : f32
    %24 = vector.broadcast %cst_14 : f32 to vector<16x128xf32>
    %25 = arith.addf %24, %23 : vector<16x128xf32>
    %26 = arith.divf %24, %25 : vector<16x128xf32>
    %27 = vector.extract_strided_slice %14 {offsets = [0, 256], sizes = [16, 128], strides = [1, 1]} : vector<16x512xf32> to vector<16x128xf32>
    %28 = arith.negf %27 : vector<16x128xf32>
    %29 = math.exp %28 : vector<16x128xf32>
    %cst_15 = arith.constant 1.000000e+00 : f32
    %30 = vector.broadcast %cst_15 : f32 to vector<16x128xf32>
    %31 = arith.addf %30, %29 : vector<16x128xf32>
    %32 = arith.divf %30, %31 : vector<16x128xf32>
    %33 = vector.extract_strided_slice %14 {offsets = [0, 384], sizes = [16, 128], strides = [1, 1]} : vector<16x512xf32> to vector<16x128xf32>
    %34 = math.tanh %33 : vector<16x128xf32>
    %c0_16 = arith.constant 0 : index
    %c0_17 = arith.constant 0 : index
    %c0_18 = arith.constant 0 : index
    %35 = vector.load %arg6[%c0_16, %c0_17, %c0_18] : memref<2x16x128xf32, #tpu.memory_space<vmem>>, vector<1x16x128xf32>
    %36 = vector.shape_cast %35 : vector<1x16x128xf32> to vector<16x128xf32>
    %37 = arith.mulf %26, %36 : vector<16x128xf32>
    %38 = arith.mulf %20, %34 : vector<16x128xf32>
    %39 = arith.addf %37, %38 : vector<16x128xf32>
    %40 = math.tanh %39 : vector<16x128xf32>
    %41 = arith.mulf %32, %40 : vector<16x128xf32>
    %c0_19 = arith.constant 0 : index
    %c0_20 = arith.constant 0 : index
    %c0_21 = arith.constant 0 : index
    %42 = vector.load %arg6[%c0_19, %c0_20, %c0_21] : memref<2x16x128xf32, #tpu.memory_space<vmem>>, vector<1x16x128xf32>
    %43 = vector.shape_cast %42 : vector<1x16x128xf32> to vector<16x128xf32>
    %44 = vector.shape_cast %39 : vector<16x128xf32> to vector<1x16x128xf32>
    tpu.vector_store %arg6[%c0_19, %c0_20, %c0_21], %44 {strides = array<i32>} : memref<2x16x128xf32, #tpu.memory_space<vmem>>, vector<1x16x128xf32>,
    %c0_22 = arith.constant 0 : index
    %c1_23 = arith.constant 1 : index
    %c0_24 = arith.constant 0 : index
    %45 = vector.load %arg5[%c0_22, %c1_23, %c0_24] : memref<2x18x128xf32, #tpu.memory_space<vmem>>, vector<1x16x128xf32>
    %46 = vector.shape_cast %45 : vector<1x16x128xf32> to vector<16x128xf32>
    %47 = vector.shape_cast %41 : vector<16x128xf32> to vector<1x16x128xf32>
    tpu.vector_store %arg5[%c0_22, %c1_23, %c0_24], %47 {strides = array<i32>} : memref<2x18x128xf32, #tpu.memory_space<vmem>>, vector<1x16x128xf32>,
    %c0_25 = arith.constant 0 : index
    %c0_26 = arith.constant 0 : index
    %c0_27 = arith.constant 0 : index
    %c0_28 = arith.constant 0 : index
    %48 = vector.load %arg3[%c0_25, %c0_26, %c0_27, %c0_28] : memref<1x2x16x128xf32, #tpu.memory_space<vmem>>, vector<1x1x16x128xf32>
    %49 = vector.shape_cast %48 : vector<1x1x16x128xf32> to vector<16x128xf32>
    %50 = vector.shape_cast %41 : vector<16x128xf32> to vector<1x1x16x128xf32>
    tpu.vector_store %arg3[%c0_25, %c0_26, %c0_27, %c0_28], %50 {strides = array<i32>} : memref<1x2x16x128xf32, #tpu.memory_space<vmem>>, vector<1x1x16x128xf32>,
    %c0_29 = arith.constant 0 : index
    %c0_30 = arith.constant 0 : index
    %c0_31 = arith.constant 0 : index
    %c0_32 = arith.constant 0 : index
    %51 = vector.load %arg4[%c0_29, %c0_30, %c0_31, %c0_32] : memref<1x2x16x128xf32, #tpu.memory_space<vmem>>, vector<1x1x16x128xf32>
    %52 = vector.shape_cast %51 : vector<1x1x16x128xf32> to vector<16x128xf32>
    %53 = vector.shape_cast %39 : vector<16x128xf32> to vector<1x1x16x128xf32>
    tpu.vector_store %arg4[%c0_29, %c0_30, %c0_31, %c0_32], %53 {strides = array<i32>} : memref<1x2x16x128xf32, #tpu.memory_space<vmem>>, vector<1x1x16x128xf32>,
    %c1_33 = arith.constant 1 : index
    %c0_34 = arith.constant 0 : index
    %c0_35 = arith.constant 0 : index
    %54 = vector.load %arg5[%c1_33, %c0_34, %c0_35] : memref<2x18x128xf32, #tpu.memory_space<vmem>>, vector<1x16x128xf32>
    %55 = vector.shape_cast %54 : vector<1x16x128xf32> to vector<16x128xf32>
    %c1_36 = arith.constant 1 : index
    %c1_37 = arith.constant 1 : index
    %c0_38 = arith.constant 0 : index
    %56 = vector.load %arg5[%c1_36, %c1_37, %c0_38] : memref<2x18x128xf32, #tpu.memory_space<vmem>>, vector<1x16x128xf32>
    %57 = vector.shape_cast %56 : vector<1x16x128xf32> to vector<16x128xf32>
    %c1_39 = arith.constant 1 : index
    %c2_40 = arith.constant 2 : index
    %c0_41 = arith.constant 0 : index
    %58 = vector.load %arg5[%c1_39, %c2_40, %c0_41] : memref<2x18x128xf32, #tpu.memory_space<vmem>>, vector<1x16x128xf32>
    %59 = vector.shape_cast %58 : vector<1x16x128xf32> to vector<16x128xf32>
    %60 = tpu.concatenate %55, %57, %59 in 1 : vector<16x128xf32>, vector<16x128xf32>, vector<16x128xf32> -> vector<16x384xf32>
    %cst_42 = arith.constant dense<0.000000e+00> : vector<16x512xf32>
    %61 = tpu.matmul %60, %3, %cst_42 {dimension_numbers = #tpu.dot_dimension_numbers<[1], [0], [0], [1], [0, 0, 1, 1], [], []>} : vector<16x384xf32>, vector<384x512xf32>, vector<16x512xf32> -> vector<16x512xf32>
    %c0_43 = arith.constant 0 : index
    %c1_44 = arith.constant 1 : index
    %c0_45 = arith.constant 0 : index
    %c0_46 = arith.constant 0 : index
    %62 = vector.load %arg1[%c0_43, %c1_44, %c0_45, %c0_46] : memref<1x2x16x512xf32, #tpu.memory_space<vmem>>, vector<1x1x16x512xf32>
    %63 = vector.shape_cast %62 : vector<1x1x16x512xf32> to vector<16x512xf32>
    %64 = arith.addf %61, %63 : vector<16x512xf32>
    %65 = vector.extract_strided_slice %64 {offsets = [0, 0], sizes = [16, 128], strides = [1, 1]} : vector<16x512xf32> to vector<16x128xf32>
    %66 = arith.negf %65 : vector<16x128xf32>
    %67 = math.exp %66 : vector<16x128xf32>
    %cst_47 = arith.constant 1.000000e+00 : f32
    %68 = vector.broadcast %cst_47 : f32 to vector<16x128xf32>
    %69 = arith.addf %68, %67 : vector<16x128xf32>
    %70 = arith.divf %68, %69 : vector<16x128xf32>
    %71 = vector.extract_strided_slice %64 {offsets = [0, 128], sizes = [16, 128], strides = [1, 1]} : vector<16x512xf32> to vector<16x128xf32>
    %72 = arith.negf %71 : vector<16x128xf32>
    %73 = math.exp %72 : vector<16x128xf32>
    %cst_48 = arith.constant 1.000000e+00 : f32
    %74 = vector.broadcast %cst_48 : f32 to vector<16x128xf32>
    %75 = arith.addf %74, %73 : vector<16x128xf32>
    %76 = arith.divf %74, %75 : vector<16x128xf32>
    %77 = vector.extract_strided_slice %64 {offsets = [0, 256], sizes = [16, 128], strides = [1, 1]} : vector<16x512xf32> to vector<16x128xf32>
    %78 = arith.negf %77 : vector<16x128xf32>
    %79 = math.exp %78 : vector<16x128xf32>
    %cst_49 = arith.constant 1.000000e+00 : f32
    %80 = vector.broadcast %cst_49 : f32 to vector<16x128xf32>
    %81 = arith.addf %80, %79 : vector<16x128xf32>
    %82 = arith.divf %80, %81 : vector<16x128xf32>
    %83 = vector.extract_strided_slice %64 {offsets = [0, 384], sizes = [16, 128], strides = [1, 1]} : vector<16x512xf32> to vector<16x128xf32>
    %84 = math.tanh %83 : vector<16x128xf32>
    %c1_50 = arith.constant 1 : index
    %c0_51 = arith.constant 0 : index
    %c0_52 = arith.constant 0 : index
    %85 = vector.load %arg6[%c1_50, %c0_51, %c0_52] : memref<2x16x128xf32, #tpu.memory_space<vmem>>, vector<1x16x128xf32>
    %86 = vector.shape_cast %85 : vector<1x16x128xf32> to vector<16x128xf32>
    %87 = arith.mulf %76, %86 : vector<16x128xf32>
    %88 = arith.mulf %70, %84 : vector<16x128xf32>
    %89 = arith.addf %87, %88 : vector<16x128xf32>
    %90 = math.tanh %89 : vector<16x128xf32>
    %91 = arith.mulf %82, %90 : vector<16x128xf32>
    %c1_53 = arith.constant 1 : index
    %c0_54 = arith.constant 0 : index
    %c0_55 = arith.constant 0 : index
    %92 = vector.load %arg6[%c1_53, %c0_54, %c0_55] : memref<2x16x128xf32, #tpu.memory_space<vmem>>, vector<1x16x128xf32>
    %93 = vector.shape_cast %92 : vector<1x16x128xf32> to vector<16x128xf32>
    %94 = vector.shape_cast %89 : vector<16x128xf32> to vector<1x16x128xf32>
    tpu.vector_store %arg6[%c1_53, %c0_54, %c0_55], %94 {strides = array<i32>} : memref<2x16x128xf32, #tpu.memory_space<vmem>>, vector<1x16x128xf32>,
    %c1_56 = arith.constant 1 : index
    %c1_57 = arith.constant 1 : index
    %c0_58 = arith.constant 0 : index
    %95 = vector.load %arg5[%c1_56, %c1_57, %c0_58] : memref<2x18x128xf32, #tpu.memory_space<vmem>>, vector<1x16x128xf32>
    %96 = vector.shape_cast %95 : vector<1x16x128xf32> to vector<16x128xf32>
    %97 = vector.shape_cast %91 : vector<16x128xf32> to vector<1x16x128xf32>
    tpu.vector_store %arg5[%c1_56, %c1_57, %c0_58], %97 {strides = array<i32>} : memref<2x18x128xf32, #tpu.memory_space<vmem>>, vector<1x16x128xf32>,
    %c0_59 = arith.constant 0 : index
    %c1_60 = arith.constant 1 : index
    %c0_61 = arith.constant 0 : index
    %c0_62 = arith.constant 0 : index
    %98 = vector.load %arg3[%c0_59, %c1_60, %c0_61, %c0_62] : memref<1x2x16x128xf32, #tpu.memory_space<vmem>>, vector<1x1x16x128xf32>
    %99 = vector.shape_cast %98 : vector<1x1x16x128xf32> to vector<16x128xf32>
    %100 = vector.shape_cast %91 : vector<16x128xf32> to vector<1x1x16x128xf32>
    tpu.vector_store %arg3[%c0_59, %c1_60, %c0_61, %c0_62], %100 {strides = array<i32>} : memref<1x2x16x128xf32, #tpu.memory_space<vmem>>, vector<1x1x16x128xf32>,
    %c0_63 = arith.constant 0 : index
    %c1_64 = arith.constant 1 : index
    %c0_65 = arith.constant 0 : index
    %c0_66 = arith.constant 0 : index
    %101 = vector.load %arg4[%c0_63, %c1_64, %c0_65, %c0_66] : memref<1x2x16x128xf32, #tpu.memory_space<vmem>>, vector<1x1x16x128xf32>
    %102 = vector.shape_cast %101 : vector<1x1x16x128xf32> to vector<16x128xf32>
    %103 = vector.shape_cast %89 : vector<16x128xf32> to vector<1x1x16x128xf32>
    tpu.vector_store %arg4[%c0_63, %c1_64, %c0_65, %c0_66], %103 {strides = array<i32>} : memref<1x2x16x128xf32, #tpu.memory_space<vmem>>, vector<1x1x16x128xf32>,
    return
  }
  func.func @transform_0(%arg0: i32) -> (i32, i32, i32, i32) {
    %c0_i32 = arith.constant 0 : i32
    %c0_i32_0 = arith.constant 0 : i32
    %c0_i32_1 = arith.constant 0 : i32
    %c0_i32_2 = arith.constant 0 : i32
    return %arg0, %c0_i32, %c0_i32_0, %c0_i32_1 : i32, i32, i32, i32
  }
  func.func @transform_1(%arg0: i32) -> (i32, i32) {
    %c0_i32 = arith.constant 0 : i32
    %c0_i32_0 = arith.constant 0 : i32
    %c0_i32_1 = arith.constant 0 : i32
    return %c0_i32, %c0_i32_0 : i32, i32
  }
  func.func @transform_2(%arg0: i32) -> (i32, i32, i32, i32) {
    %c0_i32 = arith.constant 0 : i32
    %c0_i32_0 = arith.constant 0 : i32
    %c0_i32_1 = arith.constant 0 : i32
    %c0_i32_2 = arith.constant 0 : i32
    return %arg0, %c0_i32, %c0_i32_0, %c0_i32_1 : i32, i32, i32, i32
  }
  func.func @transform_3(%arg0: i32) -> (i32, i32, i32, i32) {
    %c0_i32 = arith.constant 0 : i32
    %c0_i32_0 = arith.constant 0 : i32
    %c0_i32_1 = arith.constant 0 : i32
    %c0_i32_2 = arith.constant 0 : i32
    return %arg0, %c0_i32, %c0_i32_0, %c0_i32_1 : i32, i32, i32, i32
  }
}

</mosaic_0001>

<llo_original>
// kernel: _conv_lstm_forward_pallas.3
$region0: #{_conv_lstm_forward_pallas.3}
  #allocation0 [shape = 'u32[]', space=smem, size = 0x4, offset = 0x4, fixed_abs, tag = 'smem constant byte address 0x4 - core index']
  #allocation1 [shape = 'u32[144,128]{1,0:T(1,128)}', space=vmem, size = 0x12000, scoped, tag = 'internal scratch']
  #allocation2 [shape = 'f32[2,18,128]{2,1,0:T(8,128)}', space=vmem, size = 0x6000, scoped, tag = 'scratch operand']
  #allocation3 [shape = 'f32[2,16,128]{2,1,0:T(8,128)}', space=vmem, size = 0x4000, scoped, tag = 'scratch operand']
  %s0 = inlined_call_operand.vmem [shape: f32[10,2,16,512], index: 0, kind: input, shape index: {}]
  %s1 = inlined_call_operand.vmem [shape: f32[384,512], index: 1, kind: input, shape index: {}]
  %s2 = inlined_call_operand.vmem [shape: f32[10,2,16,128], index: 2, kind: output, shape index: {0}]
  %s3 = inlined_call_operand.vmem [shape: f32[10,2,16,128], index: 3, kind: output, shape index: {1}]
  %4 = xla_tuple %s2, %s3
  %s5 = sld [smem:[#allocation0]]
  $region53: #{_conv_lstm_forward_pallas.3} parent=0
    _
  %s7 = ssub.s32 1, %s5
  %s8 = scalar_select 0, %s7, %s5
  loop: start=0, step=1, limit=12
  $region2: #{_conv_lstm_forward_pallas.3} parent=0 // loop_pre_header
    _
  $region3: #{_conv_lstm_forward_pallas.3} parent=0 // loop_header
    %s10 = sphi 0, %s14
    %p11 = scmp.ge.s32.totalorder %s10, 12
    %s20 = sphi 0, %s22
    %s23 = sphi 0, %s20
    %s24 = sphi 0, %s23
    %s40 = sphi 0, %s24
    %s44 = sphi 0, %s44
    %s46 = sphi 0, %s44
    %s47 = sphi 0, %s46
    %s61 = sphi 0, %s47
    %s67 = sphi 0, %s69
    %s70 = sphi 0, %s67
    %s71 = sphi 0, %s70
    %s87 = sphi 0, %s71
    %s93 = sphi 0, %s95
    %s96 = sphi 0, %s93
    %s97 = sphi 0, %s96
    %s113 = sphi 0, %s97
  $region4: #{_conv_lstm_forward_pallas.3} parent=0 // loop_header_branch
    %13 = sbr.rel (%p11) target = $region8
  $region5: #{_conv_lstm_forward_pallas.3} parent=0 // loop_body
    %s15 = ssub.s32 %s10, 1
    %s16 = ssub.s32 %s10, 2
    %s17 = sadd.s32 %s10, 1
    %s18 = ssub.s32 %s10, %s17
    %p19 = scmp.eq.s32.totalorder %s18, 0
    %s21 = sadd.s32 %s20, 1
    %s22 = scalar_select %p19, %s20, %s21
    %p25 = pneg %p19
    %p26 = scmp.eq.s32.totalorder %s10, 9
    %p27 = por %p25, %p26
    %p28 = scmp.ne.s32.totalorder %s20, %s23
    %p29 = scmp.eq.s32.totalorder %s10, 0
    %p30 = por %p28, %p29
    %p31 = scmp.ne.s32.totalorder %s20, %s23
    %p32 = scmp.eq.s32.totalorder %s15, 9
    %p33 = por %p31, %p32
    %p34 = scmp.ne.s32.totalorder %s23, %s24
    %p35 = scmp.eq.s32.totalorder %s15, 0
    %p36 = por %p34, %p35
    %p37 = scmp.ne.s32.totalorder %s23, %s24
    %p38 = scmp.eq.s32.totalorder %s16, 9
    %p39 = por %p37, %p38
    %p41 = scmp.ne.s32.totalorder %s24, %s40
    %p42 = scmp.eq.s32.totalorder %s16, 0
    %p43 = por %p41, %p42
    %s45 = sadd.s32 %s44, 1
    %p48 = scmp.eq.s32.totalorder %s10, 9
    %p49 = scmp.ne.s32.totalorder %s44, %s46
    %p50 = scmp.eq.s32.totalorder %s10, 0
    %p51 = por %p49, %p50
    %p52 = scmp.ne.s32.totalorder %s44, %s46
    %p53 = scmp.eq.s32.totalorder %s15, 9
    %p54 = por %p52, %p53
    %p55 = scmp.ne.s32.totalorder %s46, %s47
    %p56 = scmp.eq.s32.totalorder %s15, 0
    %p57 = por %p55, %p56
    %p58 = scmp.ne.s32.totalorder %s46, %s47
    %p59 = scmp.eq.s32.totalorder %s16, 9
    %p60 = por %p58, %p59
    %p62 = scmp.ne.s32.totalorder %s47, %s61
    %p63 = scmp.eq.s32.totalorder %s16, 0
    %p64 = por %p62, %p63
    %s65 = ssub.s32 %s10, %s17
    %p66 = scmp.eq.s32.totalorder %s65, 0
    %s68 = sadd.s32 %s67, 1
    %s69 = scalar_select %p66, %s67, %s68
    %p72 = pneg %p66
    %p73 = scmp.eq.s32.totalorder %s10, 9
    %p74 = por %p72, %p73
    %p75 = scmp.ne.s32.totalorder %s67, %s70
    %p76 = scmp.eq.s32.totalorder %s10, 0
    %p77 = por %p75, %p76
    %p78 = scmp.ne.s32.totalorder %s67, %s70
    %p79 = scmp.eq.s32.totalorder %s15, 9
    %p80 = por %p78, %p79
    %p81 = scmp.ne.s32.totalorder %s70, %s71
    %p82 = scmp.eq.s32.totalorder %s15, 0
    %p83 = por %p81, %p82
    %p84 = scmp.ne.s32.totalorder %s70, %s71
    %p85 = scmp.eq.s32.totalorder %s16, 9
    %p86 = por %p84, %p85
    %p88 = scmp.ne.s32.totalorder %s71, %s87
    %p89 = scmp.eq.s32.totalorder %s16, 0
    %p90 = por %p88, %p89
    %s91 = ssub.s32 %s10, %s17
    %p92 = scmp.eq.s32.totalorder %s91, 0
    %s94 = sadd.s32 %s93, 1
    %s95 = scalar_select %p92, %s93, %s94
    %p98 = pneg %p92
    %p99 = scmp.eq.s32.totalorder %s10, 9
    %p100 = por %p98, %p99
    %p101 = scmp.ne.s32.totalorder %s93, %s96
    %p102 = scmp.eq.s32.totalorder %s10, 0
    %p103 = por %p101, %p102
    %p104 = scmp.ne.s32.totalorder %s93, %s96
    %p105 = scmp.eq.s32.totalorder %s15, 9
    %p106 = por %p104, %p105
    %p107 = scmp.ne.s32.totalorder %s96, %s97
    %p108 = scmp.eq.s32.totalorder %s15, 0
    %p109 = por %p107, %p108
    %p110 = scmp.ne.s32.totalorder %s96, %s97
    %p111 = scmp.eq.s32.totalorder %s16, 9
    %p112 = por %p110, %p111
    %p114 = scmp.ne.s32.totalorder %s97, %s113
    %p115 = scmp.eq.s32.totalorder %s16, 0
    %p116 = por %p114, %p115
    %p117 = scmp.le.s32.totalorder 1, %s10
    %p118 = scmp.lt.s32.totalorder %s10, 11
    %p119 = pnand %p117, %p118
    %p120 = pneg %p119
    // Predicated region
    $region9: #{_conv_lstm_forward_pallas.3} parent=5 // pred_check
      _
    $region10: #{_conv_lstm_forward_pallas.3} parent=5 // pred_check_branch
      %122 = sbr.rel (%p119) target = $region12
    $region11: #{_conv_lstm_forward_pallas.3} parent=5 // pred_region
      %s123 = ssub.s32 %s10, 1
      // Predicated region
      $region13: #{_conv_lstm_forward_pallas.3} parent=11 // pred_check
        %p124 = pneg %p57
      $region14: #{_conv_lstm_forward_pallas.3} parent=11 // pred_check_branch
        %126 = sbr.rel (%p124) target = $region16
      $region15: #{_conv_lstm_forward_pallas.3} parent=11 // pred_region
        _
      $region16: #{_conv_lstm_forward_pallas.3} parent=11 // pred_fallthru
        _
    $region12: #{_conv_lstm_forward_pallas.3} parent=5 // pred_fallthru
      _
    %p127 = scmp.lt.s32.totalorder %s10, 10
    // Predicated region
    $region17: #{_conv_lstm_forward_pallas.3} parent=5 // pred_check
      %p128 = pneg %p127
    $region18: #{_conv_lstm_forward_pallas.3} parent=5 // pred_check_branch
      %130 = sbr.rel (%p128) target = $region20
    $region19: #{_conv_lstm_forward_pallas.3} parent=5 // pred_region
      // Predicated region
      $region21: #{_conv_lstm_forward_pallas.3} parent=19 // pred_check
        %p131 = pneg %p30
      $region22: #{_conv_lstm_forward_pallas.3} parent=19 // pred_check_branch
        %133 = sbr.rel (%p131) target = $region24
      $region23: #{_conv_lstm_forward_pallas.3} parent=19 // pred_region
        %p134 = scmp.lt.s32.totalorder %s10, 9
        %s135 = scalar_select %p134, %s10, 9
        %s136 = smul.addr %s135, 16
        %s137 = smul.addr %s136, 8
        %s138 = scalar_lea.vmem %s0, %s137
      $region24: #{_conv_lstm_forward_pallas.3} parent=19 // pred_fallthru
        _
    $region20: #{_conv_lstm_forward_pallas.3} parent=5 // pred_fallthru
      _
    %p139 = scmp.le.s32.totalorder 1, %s10
    %p140 = scmp.lt.s32.totalorder %s10, 11
    %p141 = pnand %p139, %p140
    %p142 = pneg %p141
    // Predicated region
    $region25: #{_conv_lstm_forward_pallas.3} parent=5 // pred_check
      _
    $region26: #{_conv_lstm_forward_pallas.3} parent=5 // pred_check_branch
      %144 = sbr.rel (%p141) target = $region28
    $region27: #{_conv_lstm_forward_pallas.3} parent=5 // pred_region
      %s145 = ssub.s32 %s10, 1
      %p146 = scmp.lt.s32.totalorder %s15, 9
      %s147 = scalar_select %p146, %s15, 9
      %s148 = smul.addr %s147, 16
      %s149 = smul.addr %s148, 8
      %s150 = scalar_lea.vmem %s0, %s149
      %p151 = pneg %p36
      %p152 = pneg %p33
      %p153 = pneg %p57
      %p154 = pneg %p54
      %p155 = pneg %p83
      %p156 = pneg %p80
      %p157 = scmp.lt.s32.totalorder %s15, 9
      %s158 = scalar_select %p157, %s15, 9
      %s159 = smul.addr %s158, 4
      %s160 = smul.addr %s159, 8
      %s161 = scalar_lea.vmem %s2, %s160
      %p162 = pneg %p109
      %p163 = pneg %p106
      %p164 = scmp.lt.s32.totalorder %s15, 9
      %s165 = scalar_select %p164, %s15, 9
      %s166 = smul.addr %s165, 4
      %s167 = smul.addr %s166, 8
      %s168 = scalar_lea.vmem %s3, %s167
      %p169 = scmp.lt.s32.totalorder %s15, 9
      %s170 = scalar_select %p169, %s15, 9
      %s171 = smul.addr %s170, 16
      %s172 = smul.addr %s171, 8
      %s173 = scalar_lea.vmem %s0, %s172
      %p174 = scmp.lt.s32.totalorder %s15, 9
      %s175 = scalar_select %p174, %s15, 9
      %s176 = smul.addr %s175, 4
      %s177 = smul.addr %s176, 8
      %s178 = scalar_lea.vmem %s2, %s177
      %p179 = scmp.lt.s32.totalorder %s15, 9
      %s180 = scalar_select %p179, %s15, 9
      %s181 = smul.addr %s180, 4
      %s182 = smul.addr %s181, 8
      %s183 = scalar_lea.vmem %s3, %s182
      %p184 = scmp.eq.s32.totalorder %s15, 0
      // Predicated region
      $region29: #{_conv_lstm_forward_pallas.3} parent=27 // pred_check
        %p185 = pneg %p184
      $region30: #{_conv_lstm_forward_pallas.3} parent=27 // pred_check_branch
        %187 = sbr.rel (%p185) target = $region32
      $region31: #{_conv_lstm_forward_pallas.3} parent=27 // pred_region
        %188 = vst [vmem:[#allocation2] sm:$0xff] 0.0
        %189 = vst [vmem:[#allocation2 + $0x8] sm:$0xff] 0.0
        %190 = vst [vmem:[#allocation2 + $0x10] sm:$0x3] 0.0
        %191 = vst [vmem:[#allocation2 + $0x18] sm:$0xff] 0.0
        %192 = vst [vmem:[#allocation2 + $0x20] sm:$0xff] 0.0
        %193 = vst [vmem:[#allocation2 + $0x28] sm:$0x3] 0.0
        %194 = vst [vmem:[#allocation3] sm:$0xff] 0.0
        %195 = vst [vmem:[#allocation3 + $0x8] sm:$0xff] 0.0
        %196 = vst [vmem:[#allocation3 + $0x10] sm:$0xff] 0.0
        %197 = vst [vmem:[#allocation3 + $0x18] sm:$0xff] 0.0
      $region32: #{_conv_lstm_forward_pallas.3} parent=27 // pred_fallthru
        _
      %v198 = vld [vmem:[%s1] sm:$0xff]
      %v199 = vld [vmem:[%s1 + $0x8] sm:$0xff]
      %v200 = vld [vmem:[%s1 + $0x10] sm:$0xff]
      %v201 = vld [vmem:[%s1 + $0x18] sm:$0xff]
      %v202 = vld [vmem:[%s1 + $0x20] sm:$0xff]
      %v203 = vld [vmem:[%s1 + $0x28] sm:$0xff]
      %v204 = vld [vmem:[%s1 + $0x30] sm:$0xff]
      %v205 = vld [vmem:[%s1 + $0x38] sm:$0xff]
      %v206 = vld [vmem:[%s1 + $0x40] sm:$0xff]
      %v207 = vld [vmem:[%s1 + $0x48] sm:$0xff]
      %v208 = vld [vmem:[%s1 + $0x50] sm:$0xff]
      %v209 = vld [vmem:[%s1 + $0x58] sm:$0xff]
      %v210 = vld [vmem:[%s1 + $0x60] sm:$0xff]
      %v211 = vld [vmem:[%s1 + $0x68] sm:$0xff]
      %v212 = vld [vmem:[%s1 + $0x70] sm:$0xff]
      %v213 = vld [vmem:[%s1 + $0x78] sm:$0xff]
      %v214 = vld [vmem:[%s1 + $0x80] sm:$0xff]
      %v215 = vld [vmem:[%s1 + $0x88] sm:$0xff]
      %v216 = vld [vmem:[%s1 + $0x90] sm:$0xff]
      %v217 = vld [vmem:[%s1 + $0x98] sm:$0xff]
      %v218 = vld [vmem:[%s1 + $0xa0] sm:$0xff]
      %v219 = vld [vmem:[%s1 + $0xa8] sm:$0xff]
      %v220 = vld [vmem:[%s1 + $0xb0] sm:$0xff]
      %v221 = vld [vmem:[%s1 + $0xb8] sm:$0xff]
      %v222 = vld [vmem:[%s1 + $0xc0] sm:$0xff]
      %v223 = vld [vmem:[%s1 + $0xc8] sm:$0xff]
      %v224 = vld [vmem:[%s1 + $0xd0] sm:$0xff]
      %v225 = vld [vmem:[%s1 + $0xd8] sm:$0xff]
      %v226 = vld [vmem:[%s1 + $0xe0] sm:$0xff]
      %v227 = vld [vmem:[%s1 + $0xe8] sm:$0xff]
      %v228 = vld [vmem:[%s1 + $0xf0] sm:$0xff]
      %v229 = vld [vmem:[%s1 + $0xf8] sm:$0xff]
      %v230 = vld [vmem:[%s1 + $0x100] sm:$0xff]
      %v231 = vld [vmem:[%s1 + $0x108] sm:$0xff]
      %v232 = vld [vmem:[%s1 + $0x110] sm:$0xff]
      %v233 = vld [vmem:[%s1 + $0x118] sm:$0xff]
      %v234 = vld [vmem:[%s1 + $0x120] sm:$0xff]
      %v235 = vld [vmem:[%s1 + $0x128] sm:$0xff]
      %v236 = vld [vmem:[%s1 + $0x130] sm:$0xff]
      %v237 = vld [vmem:[%s1 + $0x138] sm:$0xff]
      %v238 = vld [vmem:[%s1 + $0x140] sm:$0xff]
      %v239 = vld [vmem:[%s1 + $0x148] sm:$0xff]
      %v240 = vld [vmem:[%s1 + $0x150] sm:$0xff]
      %v241 = vld [vmem:[%s1 + $0x158] sm:$0xff]
      %v242 = vld [vmem:[%s1 + $0x160] sm:$0xff]
      %v243 = vld [vmem:[%s1 + $0x168] sm:$0xff]
      %v244 = vld [vmem:[%s1 + $0x170] sm:$0xff]
      %v245 = vld [vmem:[%s1 + $0x178] sm:$0xff]
      %v246 = vld [vmem:[%s1 + $0x180] sm:$0xff]
      %v247 = vld [vmem:[%s1 + $0x188] sm:$0xff]
      %v248 = vld [vmem:[%s1 + $0x190] sm:$0xff]
      %v249 = vld [vmem:[%s1 + $0x198] sm:$0xff]
      %v250 = vld [vmem:[%s1 + $0x1a0] sm:$0xff]
      %v251 = vld [vmem:[%s1 + $0x1a8] sm:$0xff]
      %v252 = vld [vmem:[%s1 + $0x1b0] sm:$0xff]
      %v253 = vld [vmem:[%s1 + $0x1b8] sm:$0xff]
      %v254 = vld [vmem:[%s1 + $0x1c0] sm:$0xff]
      %v255 = vld [vmem:[%s1 + $0x1c8] sm:$0xff]
      %v256 = vld [vmem:[%s1 + $0x1d0] sm:$0xff]
      %v257 = vld [vmem:[%s1 + $0x1d8] sm:$0xff]
      %v258 = vld [vmem:[%s1 + $0x1e0] sm:$0xff]
      %v259 = vld [vmem:[%s1 + $0x1e8] sm:$0xff]
      %v260 = vld [vmem:[%s1 + $0x1f0] sm:$0xff]
      %v261 = vld [vmem:[%s1 + $0x1f8] sm:$0xff]
      %v262 = vld [vmem:[%s1 + $0x200] sm:$0xff]
      %v263 = vld [vmem:[%s1 + $0x208] sm:$0xff]
      %v264 = vld [vmem:[%s1 + $0x210] sm:$0xff]
      %v265 = vld [vmem:[%s1 + $0x218] sm:$0xff]
      %v266 = vld [vmem:[%s1 + $0x220] sm:$0xff]
      %v267 = vld [vmem:[%s1 + $0x228] sm:$0xff]
      %v268 = vld [vmem:[%s1 + $0x230] sm:$0xff]
      %v269 = vld [vmem:[%s1 + $0x238] sm:$0xff]
      %v270 = vld [vmem:[%s1 + $0x240] sm:$0xff]
      %v271 = vld [vmem:[%s1 + $0x248] sm:$0xff]
      %v272 = vld [vmem:[%s1 + $0x250] sm:$0xff]
      %v273 = vld [vmem:[%s1 + $0x258] sm:$0xff]
      %v274 = vld [vmem:[%s1 + $0x260] sm:$0xff]
      %v275 = vld [vmem:[%s1 + $0x268] sm:$0xff]
      %v276 = vld [vmem:[%s1 + $0x270] sm:$0xff]
      %v277 = vld [vmem:[%s1 + $0x278] sm:$0xff]
      %v278 = vld [vmem:[%s1 + $0x280] sm:$0xff]
      %v279 = vld [vmem:[%s1 + $0x288] sm:$0xff]
      %v280 = vld [vmem:[%s1 + $0x290] sm:$0xff]
      %v281 = vld [vmem:[%s1 + $0x298] sm:$0xff]
      %v282 = vld [vmem:[%s1 + $0x2a0] sm:$0xff]
      %v283 = vld [vmem:[%s1 + $0x2a8] sm:$0xff]
      %v284 = vld [vmem:[%s1 + $0x2b0] sm:$0xff]
      %v285 = vld [vmem:[%s1 + $0x2b8] sm:$0xff]
      %v286 = vld [vmem:[%s1 + $0x2c0] sm:$0xff]
      %v287 = vld [vmem:[%s1 + $0x2c8] sm:$0xff]
      %v288 = vld [vmem:[%s1 + $0x2d0] sm:$0xff]
      %v289 = vld [vmem:[%s1 + $0x2d8] sm:$0xff]
      %v290 = vld [vmem:[%s1 + $0x2e0] sm:$0xff]
      %v291 = vld [vmem:[%s1 + $0x2e8] sm:$0xff]
      %v292 = vld [vmem:[%s1 + $0x2f0] sm:$0xff]
      %v293 = vld [vmem:[%s1 + $0x2f8] sm:$0xff]
      %v294 = vld [vmem:[%s1 + $0x300] sm:$0xff]
      %v295 = vld [vmem:[%s1 + $0x308] sm:$0xff]
      %v296 = vld [vmem:[%s1 + $0x310] sm:$0xff]
      %v297 = vld [vmem:[%s1 + $0x318] sm:$0xff]
      %v298 = vld [vmem:[%s1 + $0x320] sm:$0xff]
      %v299 = vld [vmem:[%s1 + $0x328] sm:$0xff]
      %v300 = vld [vmem:[%s1 + $0x330] sm:$0xff]
      %v301 = vld [vmem:[%s1 + $0x338] sm:$0xff]
      %v302 = vld [vmem:[%s1 + $0x340] sm:$0xff]
      %v303 = vld [vmem:[%s1 + $0x348] sm:$0xff]
      %v304 = vld [vmem:[%s1 + $0x350] sm:$0xff]
      %v305 = vld [vmem:[%s1 + $0x358] sm:$0xff]
      %v306 = vld [vmem:[%s1 + $0x360] sm:$0xff]
      %v307 = vld [vmem:[%s1 + $0x368] sm:$0xff]
      %v308 = vld [vmem:[%s1 + $0x370] sm:$0xff]
      %v309 = vld [vmem:[%s1 + $0x378] sm:$0xff]
      %v310 = vld [vmem:[%s1 + $0x380] sm:$0xff]
      %v311 = vld [vmem:[%s1 + $0x388] sm:$0xff]
      %v312 = vld [vmem:[%s1 + $0x390] sm:$0xff]
      %v313 = vld [vmem:[%s1 + $0x398] sm:$0xff]
      %v314 = vld [vmem:[%s1 + $0x3a0] sm:$0xff]
      %v315 = vld [vmem:[%s1 + $0x3a8] sm:$0xff]
      %v316 = vld [vmem:[%s1 + $0x3b0] sm:$0xff]
      %v317 = vld [vmem:[%s1 + $0x3b8] sm:$0xff]
      %v318 = vld [vmem:[%s1 + $0x3c0] sm:$0xff]
      %v319 = vld [vmem:[%s1 + $0x3c8] sm:$0xff]
      %v320 = vld [vmem:[%s1 + $0x3d0] sm:$0xff]
      %v321 = vld [vmem:[%s1 + $0x3d8] sm:$0xff]
      %v322 = vld [vmem:[%s1 + $0x3e0] sm:$0xff]
      %v323 = vld [vmem:[%s1 + $0x3e8] sm:$0xff]
      %v324 = vld [vmem:[%s1 + $0x3f0] sm:$0xff]
      %v325 = vld [vmem:[%s1 + $0x3f8] sm:$0xff]
      %v326 = vld [vmem:[%s1 + $0x400] sm:$0xff]
      %v327 = vld [vmem:[%s1 + $0x408] sm:$0xff]
      %v328 = vld [vmem:[%s1 + $0x410] sm:$0xff]
      %v329 = vld [vmem:[%s1 + $0x418] sm:$0xff]
      %v330 = vld [vmem:[%s1 + $0x420] sm:$0xff]
      %v331 = vld [vmem:[%s1 + $0x428] sm:$0xff]
      %v332 = vld [vmem:[%s1 + $0x430] sm:$0xff]
      %v333 = vld [vmem:[%s1 + $0x438] sm:$0xff]
      %v334 = vld [vmem:[%s1 + $0x440] sm:$0xff]
      %v335 = vld [vmem:[%s1 + $0x448] sm:$0xff]
      %v336 = vld [vmem:[%s1 + $0x450] sm:$0xff]
      %v337 = vld [vmem:[%s1 + $0x458] sm:$0xff]
      %v338 = vld [vmem:[%s1 + $0x460] sm:$0xff]
      %v339 = vld [vmem:[%s1 + $0x468] sm:$0xff]
      %v340 = vld [vmem:[%s1 + $0x470] sm:$0xff]
      %v341 = vld [vmem:[%s1 + $0x478] sm:$0xff]
      %v342 = vld [vmem:[%s1 + $0x480] sm:$0xff]
      %v343 = vld [vmem:[%s1 + $0x488] sm:$0xff]
      %v344 = vld [vmem:[%s1 + $0x490] sm:$0xff]
      %v345 = vld [vmem:[%s1 + $0x498] sm:$0xff]
      %v346 = vld [vmem:[%s1 + $0x4a0] sm:$0xff]
      %v347 = vld [vmem:[%s1 + $0x4a8] sm:$0xff]
      %v348 = vld [vmem:[%s1 + $0x4b0] sm:$0xff]
      %v349 = vld [vmem:[%s1 + $0x4b8] sm:$0xff]
      %v350 = vld [vmem:[%s1 + $0x4c0] sm:$0xff]
      %v351 = vld [vmem:[%s1 + $0x4c8] sm:$0xff]
      %v352 = vld [vmem:[%s1 + $0x4d0] sm:$0xff]
      %v353 = vld [vmem:[%s1 + $0x4d8] sm:$0xff]
      %v354 = vld [vmem:[%s1 + $0x4e0] sm:$0xff]
      %v355 = vld [vmem:[%s1 + $0x4e8] sm:$0xff]
      %v356 = vld [vmem:[%s1 + $0x4f0] sm:$0xff]
      %v357 = vld [vmem:[%s1 + $0x4f8] sm:$0xff]
      %v358 = vld [vmem:[%s1 + $0x500] sm:$0xff]
      %v359 = vld [vmem:[%s1 + $0x508] sm:$0xff]
      %v360 = vld [vmem:[%s1 + $0x510] sm:$0xff]
      %v361 = vld [vmem:[%s1 + $0x518] sm:$0xff]
      %v362 = vld [vmem:[%s1 + $0x520] sm:$0xff]
      %v363 = vld [vmem:[%s1 + $0x528] sm:$0xff]
      %v364 = vld [vmem:[%s1 + $0x530] sm:$0xff]
      %v365 = vld [vmem:[%s1 + $0x538] sm:$0xff]
      %v366 = vld [vmem:[%s1 + $0x540] sm:$0xff]
      %v367 = vld [vmem:[%s1 + $0x548] sm:$0xff]
      %v368 = vld [vmem:[%s1 + $0x550] sm:$0xff]
      %v369 = vld [vmem:[%s1 + $0x558] sm:$0xff]
      %v370 = vld [vmem:[%s1 + $0x560] sm:$0xff]
      %v371 = vld [vmem:[%s1 + $0x568] sm:$0xff]
      %v372 = vld [vmem:[%s1 + $0x570] sm:$0xff]
      %v373 = vld [vmem:[%s1 + $0x578] sm:$0xff]
      %v374 = vld [vmem:[%s1 + $0x580] sm:$0xff]
      %v375 = vld [vmem:[%s1 + $0x588] sm:$0xff]
      %v376 = vld [vmem:[%s1 + $0x590] sm:$0xff]
      %v377 = vld [vmem:[%s1 + $0x598] sm:$0xff]
      %v378 = vld [vmem:[%s1 + $0x5a0] sm:$0xff]
      %v379 = vld [vmem:[%s1 + $0x5a8] sm:$0xff]
      %v380 = vld [vmem:[%s1 + $0x5b0] sm:$0xff]
      %v381 = vld [vmem:[%s1 + $0x5b8] sm:$0xff]
      %v382 = vld [vmem:[%s1 + $0x5c0] sm:$0xff]
      %v383 = vld [vmem:[%s1 + $0x5c8] sm:$0xff]
      %v384 = vld [vmem:[%s1 + $0x5d0] sm:$0xff]
      %v385 = vld [vmem:[%s1 + $0x5d8] sm:$0xff]
      %v386 = vld [vmem:[%s1 + $0x5e0] sm:$0xff]
      %v387 = vld [vmem:[%s1 + $0x5e8] sm:$0xff]
      %v388 = vld [vmem:[%s1 + $0x5f0] sm:$0xff]
      %v389 = vld [vmem:[%s1 + $0x5f8] sm:$0xff]
      %v390 = vld [vmem:[#allocation2] sm:$0xff]
      %v391 = vld [vmem:[#allocation2 + $0x8] sm:$0xff]
      %v392 = vld [vmem:[#allocation2 + $0x1] sm:$0xff]
      %v393 = vld [vmem:[#allocation2 + $0x9] sm:$0xff]
      %v394 = vld [vmem:[#allocation2 + $0x2] sm:$0xff]
      %v395 = vld [vmem:[#allocation2 + $0xa] sm:$0xff]
      %v396 = vld [vmem:[%s173] sm:$0xff]
      %v397 = vld [vmem:[%s173 + $0x8] sm:$0xff]
      %v398 = vld [vmem:[%s173 + $0x10] sm:$0xff]
      %v399 = vld [vmem:[%s173 + $0x18] sm:$0xff]
      %v400 = vld [vmem:[%s173 + $0x20] sm:$0xff]
      %v401 = vld [vmem:[%s173 + $0x28] sm:$0xff]
      %v402 = vld [vmem:[%s173 + $0x30] sm:$0xff]
      %v403 = vld [vmem:[%s173 + $0x38] sm:$0xff]
      %404 = vmatprep.subr.mxu0 %v199
      %405 = vmatpush1.msra.mxu0 %v198
      %406 = vmatprep.subr.mxu0 %v203
      %407 = vmatpush1.msra.mxu0 %v202
      %408 = vmatprep.subr.mxu0 %v207
      %409 = vmatpush1.msra.mxu0 %v206
      %410 = vmatprep.subr.mxu0 %v211
      %411 = vmatpush1.msra.mxu0 %v210
      %412 = vmatprep.subr.mxu0 %v215
      %413 = vmatpush1.msra.mxu0 %v214
      %414 = vmatprep.subr.mxu0 %v219
      %415 = vmatpush1.msra.mxu0 %v218
      %416 = vmatprep.subr.mxu0 %v223
      %417 = vmatpush1.msra.mxu0 %v222
      %418 = vmatprep.subr.mxu0 %v227
      %419 = vmatpush1.msra.mxu0 %v226
      %420 = vmatprep.subr.mxu0 %v231
      %421 = vmatpush1.msra.mxu0 %v230
      %422 = vmatprep.subr.mxu0 %v235
      %423 = vmatpush1.msra.mxu0 %v234
      %424 = vmatprep.subr.mxu0 %v239
      %425 = vmatpush1.msra.mxu0 %v238
      %426 = vmatprep.subr.mxu0 %v243
      %427 = vmatpush1.msra.mxu0 %v242
      %428 = vmatprep.subr.mxu0 %v247
      %429 = vmatpush1.msra.mxu0 %v246
      %430 = vmatprep.subr.mxu0 %v251
      %431 = vmatpush1.msra.mxu0 %v250
      %432 = vmatprep.subr.mxu0 %v255
      %433 = vmatpush1.msra.mxu0 %v254
      %434 = vmatprep.subr.mxu0 %v259
      %435 = vmatpush1.msra.mxu0 %v258
      %436 = vmatprep.subr.mxu0 %v263
      %437 = vmatpush1.msra.mxu0 %v262
      %438 = vmatprep.subr.mxu0 %v267
      %439 = vmatpush1.msra.mxu0 %v266
      %440 = vmatprep.subr.mxu0 %v271
      %441 = vmatpush1.msra.mxu0 %v270
      %442 = vmatprep.subr.mxu0 %v275
      %443 = vmatpush1.msra.mxu0 %v274
      %444 = vmatprep.subr.mxu0 %v279
      %445 = vmatpush1.msra.mxu0 %v278
      %446 = vmatprep.subr.mxu0 %v283
      %447 = vmatpush1.msra.mxu0 %v282
      %448 = vmatprep.subr.mxu0 %v287
      %449 = vmatpush1.msra.mxu0 %v286
      %450 = vmatprep.subr.mxu0 %v291
      %451 = vmatpush1.msra.mxu0 %v290
      %452 = vmatprep.subr.mxu0 %v295
      %453 = vmatpush1.msra.mxu0 %v294
      %454 = vmatprep.subr.mxu0 %v299
      %455 = vmatpush1.msra.mxu0 %v298
      %456 = vmatprep.subr.mxu0 %v303
      %457 = vmatpush1.msra.mxu0 %v302
      %458 = vmatprep.subr.mxu0 %v307
      %459 = vmatpush1.msra.mxu0 %v306
      %460 = vmatprep.subr.mxu0 %v311
      %461 = vmatpush1.msra.mxu0 %v310
      %462 = vmatprep.subr.mxu0 %v315
      %463 = vmatpush1.msra.mxu0 %v314
      %464 = vmatprep.subr.mxu0 %v319
      %465 = vmatpush1.msra.mxu0 %v318
      %466 = vmatprep.subr.mxu0 %v323
      %467 = vmatpush1.msra.mxu0 %v322
      %468 = vmatprep.mubr.f32.mxu0 %v392
      %469 = vmatmul.mubr.f32.gmra.mrb[0].mxu0 %v390
      %v470 = vpop.f32.mrb[0].mxu0
      %v471 = vadd.f32 %v396, %v470
      %v472 = vpop.f32.mrb[0].mxu0
      %v473 = vadd.f32 %v397, %v472
      %474 = vmatprep.mubr.f32.mxu0 %v393
      %475 = vmatmul.mubr.f32.gmra.mrb[0].mxu0 %v391
      %v476 = vpop.f32.mrb[0].mxu0
      %v477 = vadd.f32 %v400, %v476
      %v478 = vpop.f32.mrb[0].mxu0
      %v479 = vadd.f32 %v401, %v478
      %480 = vdwg.mxu0
      %481 = vmatprep.subr.mxu0 %v327
      %482 = vmatpush1.msra.mxu0 %v326
      %483 = vmatprep.subr.mxu0 %v331
      %484 = vmatpush1.msra.mxu0 %v330
      %485 = vmatprep.subr.mxu0 %v335
      %486 = vmatpush1.msra.mxu0 %v334
      %487 = vmatprep.subr.mxu0 %v339
      %488 = vmatpush1.msra.mxu0 %v338
      %489 = vmatprep.subr.mxu0 %v343
      %490 = vmatpush1.msra.mxu0 %v342
      %491 = vmatprep.subr.mxu0 %v347
      %492 = vmatpush1.msra.mxu0 %v346
      %493 = vmatprep.subr.mxu0 %v351
      %494 = vmatpush1.msra.mxu0 %v350
      %495 = vmatprep.subr.mxu0 %v355
      %496 = vmatpush1.msra.mxu0 %v354
      %497 = vmatprep.subr.mxu0 %v359
      %498 = vmatpush1.msra.mxu0 %v358
      %499 = vmatprep.subr.mxu0 %v363
      %500 = vmatpush1.msra.mxu0 %v362
      %501 = vmatprep.subr.mxu0 %v367
      %502 = vmatpush1.msra.mxu0 %v366
      %503 = vmatprep.subr.mxu0 %v371
      %504 = vmatpush1.msra.mxu0 %v370
      %505 = vmatprep.subr.mxu0 %v375
      %506 = vmatpush1.msra.mxu0 %v374
      %507 = vmatprep.subr.mxu0 %v379
      %508 = vmatpush1.msra.mxu0 %v378
      %509 = vmatprep.subr.mxu0 %v383
      %510 = vmatpush1.msra.mxu0 %v382
      %511 = vmatprep.subr.mxu0 %v387
      %512 = vmatpush1.msra.mxu0 %v386
      %513 = vmatprep.subr.mxu0 0.0
      %514 = vmatpush1.msra.mxu0 0.0
      %515 = vmatprep.subr.mxu0 0.0
      %516 = vmatpush1.msra.mxu0 0.0
      %517 = vmatprep.subr.mxu0 0.0
      %518 = vmatpush1.msra.mxu0 0.0
      %519 = vmatprep.subr.mxu0 0.0
      %520 = vmatpush1.msra.mxu0 0.0
      %521 = vmatprep.subr.mxu0 0.0
      %522 = vmatpush1.msra.mxu0 0.0
      %523 = vmatprep.subr.mxu0 0.0
      %524 = vmatpush1.msra.mxu0 0.0
      %525 = vmatprep.subr.mxu0 0.0
      %526 = vmatpush1.msra.mxu0 0.0
      %527 = vmatprep.subr.mxu0 0.0
      %528 = vmatpush1.msra.mxu0 0.0
      %529 = vmatprep.subr.mxu0 0.0
      %530 = vmatpush1.msra.mxu0 0.0
      %531 = vmatprep.subr.mxu0 0.0
      %532 = vmatpush1.msra.mxu0 0.0
      %533 = vmatprep.subr.mxu0 0.0
      %534 = vmatpush1.msra.mxu0 0.0
      %535 = vmatprep.subr.mxu0 0.0
      %536 = vmatpush1.msra.mxu0 0.0
      %537 = vmatprep.subr.mxu0 0.0
      %538 = vmatpush1.msra.mxu0 0.0
      %539 = vmatprep.subr.mxu0 0.0
      %540 = vmatpush1.msra.mxu0 0.0
      %541 = vmatprep.subr.mxu0 0.0
      %542 = vmatpush1.msra.mxu0 0.0
      %543 = vmatprep.subr.mxu0 0.0
      %544 = vmatpush1.msra.mxu0 0.0
      %545 = vmatprep.mubr.f32.mxu0 0.0
      %546 = vmatmul.mubr.f32.gmra.mrb[0].mxu0 %v394
      %v547 = vpop.f32.mrb[0].mxu0
      %v548 = vadd.f32 %v471, %v547
      %v549 = vpop.f32.mrb[0].mxu0
      %v550 = vadd.f32 %v473, %v549
      %551 = vmatprep.mubr.f32.mxu0 0.0
      %552 = vmatmul.mubr.f32.gmra.mrb[0].mxu0 %v395
      %v553 = vpop.f32.mrb[0].mxu0
      %v554 = vadd.f32 %v477, %v553
      %v555 = vpop.f32.mrb[0].mxu0
      %v556 = vadd.f32 %v479, %v555
      %557 = vdwg.mxu0
      %558 = vmatprep.subr.mxu0 %v201
      %559 = vmatpush1.msra.mxu0 %v200
      %560 = vmatprep.subr.mxu0 %v205
      %561 = vmatpush1.msra.mxu0 %v204
      %562 = vmatprep.subr.mxu0 %v209
      %563 = vmatpush1.msra.mxu0 %v208
      %564 = vmatprep.subr.mxu0 %v213
      %565 = vmatpush1.msra.mxu0 %v212
      %566 = vmatprep.subr.mxu0 %v217
      %567 = vmatpush1.msra.mxu0 %v216
      %568 = vmatprep.subr.mxu0 %v221
      %569 = vmatpush1.msra.mxu0 %v220
      %570 = vmatprep.subr.mxu0 %v225
      %571 = vmatpush1.msra.mxu0 %v224
      %572 = vmatprep.subr.mxu0 %v229
      %573 = vmatpush1.msra.mxu0 %v228
      %574 = vmatprep.subr.mxu0 %v233
      %575 = vmatpush1.msra.mxu0 %v232
      %576 = vmatprep.subr.mxu0 %v237
      %577 = vmatpush1.msra.mxu0 %v236
      %578 = vmatprep.subr.mxu0 %v241
      %579 = vmatpush1.msra.mxu0 %v240
      %580 = vmatprep.subr.mxu0 %v245
      %581 = vmatpush1.msra.mxu0 %v244
      %582 = vmatprep.subr.mxu0 %v249
      %583 = vmatpush1.msra.mxu0 %v248
      %584 = vmatprep.subr.mxu0 %v253
      %585 = vmatpush1.msra.mxu0 %v252
      %586 = vmatprep.subr.mxu0 %v257
      %587 = vmatpush1.msra.mxu0 %v256
      %588 = vmatprep.subr.mxu0 %v261
      %589 = vmatpush1.msra.mxu0 %v260
      %590 = vmatprep.subr.mxu0 %v265
      %591 = vmatpush1.msra.mxu0 %v264
      %592 = vmatprep.subr.mxu0 %v269
      %593 = vmatpush1.msra.mxu0 %v268
      %594 = vmatprep.subr.mxu0 %v273
      %595 = vmatpush1.msra.mxu0 %v272
      %596 = vmatprep.subr.mxu0 %v277
      %597 = vmatpush1.msra.mxu0 %v276
      %598 = vmatprep.subr.mxu0 %v281
      %599 = vmatpush1.msra.mxu0 %v280
      %600 = vmatprep.subr.mxu0 %v285
      %601 = vmatpush1.msra.mxu0 %v284
      %602 = vmatprep.subr.mxu0 %v289
      %603 = vmatpush1.msra.mxu0 %v288
      %604 = vmatprep.subr.mxu0 %v293
      %605 = vmatpush1.msra.mxu0 %v292
      %606 = vmatprep.subr.mxu0 %v297
      %607 = vmatpush1.msra.mxu0 %v296
      %608 = vmatprep.subr.mxu0 %v301
      %609 = vmatpush1.msra.mxu0 %v300
      %610 = vmatprep.subr.mxu0 %v305
      %611 = vmatpush1.msra.mxu0 %v304
      %612 = vmatprep.subr.mxu0 %v309
      %613 = vmatpush1.msra.mxu0 %v308
      %614 = vmatprep.subr.mxu0 %v313
      %615 = vmatpush1.msra.mxu0 %v312
      %616 = vmatprep.subr.mxu0 %v317
      %617 = vmatpush1.msra.mxu0 %v316
      %618 = vmatprep.subr.mxu0 %v321
      %619 = vmatpush1.msra.mxu0 %v320
      %620 = vmatprep.subr.mxu0 %v325
      %621 = vmatpush1.msra.mxu0 %v324
      %622 = vmatprep.mubr.f32.mxu0 %v392
      %623 = vmatmul.mubr.f32.gmra.mrb[0].mxu0 %v390
      %v624 = vpop.f32.mrb[0].mxu0
      %v625 = vadd.f32 %v398, %v624
      %v626 = vpop.f32.mrb[0].mxu0
      %v627 = vadd.f32 %v399, %v626
      %628 = vmatprep.mubr.f32.mxu0 %v393
      %629 = vmatmul.mubr.f32.gmra.mrb[0].mxu0 %v391
      %v630 = vpop.f32.mrb[0].mxu0
      %v631 = vadd.f32 %v402, %v630
      %v632 = vpop.f32.mrb[0].mxu0
      %v633 = vadd.f32 %v403, %v632
      %634 = vdwg.mxu0
      %635 = vmatprep.subr.mxu0 %v329
      %636 = vmatpush1.msra.mxu0 %v328
      %637 = vmatprep.subr.mxu0 %v333
      %638 = vmatpush1.msra.mxu0 %v332
      %639 = vmatprep.subr.mxu0 %v337
      %640 = vmatpush1.msra.mxu0 %v336
      %641 = vmatprep.subr.mxu0 %v341
      %642 = vmatpush1.msra.mxu0 %v340
      %643 = vmatprep.subr.mxu0 %v345
      %644 = vmatpush1.msra.mxu0 %v344
      %645 = vmatprep.subr.mxu0 %v349
      %646 = vmatpush1.msra.mxu0 %v348
      %647 = vmatprep.subr.mxu0 %v353
      %648 = vmatpush1.msra.mxu0 %v352
      %649 = vmatprep.subr.mxu0 %v357
      %650 = vmatpush1.msra.mxu0 %v356
      %651 = vmatprep.subr.mxu0 %v361
      %652 = vmatpush1.msra.mxu0 %v360
      %653 = vmatprep.subr.mxu0 %v365
      %654 = vmatpush1.msra.mxu0 %v364
      %655 = vmatprep.subr.mxu0 %v369
      %656 = vmatpush1.msra.mxu0 %v368
      %657 = vmatprep.subr.mxu0 %v373
      %658 = vmatpush1.msra.mxu0 %v372
      %659 = vmatprep.subr.mxu0 %v377
      %660 = vmatpush1.msra.mxu0 %v376
      %661 = vmatprep.subr.mxu0 %v381
      %662 = vmatpush1.msra.mxu0 %v380
      %663 = vmatprep.subr.mxu0 %v385
      %664 = vmatpush1.msra.mxu0 %v384
      %665 = vmatprep.subr.mxu0 %v389
      %666 = vmatpush1.msra.mxu0 %v388
      %667 = vmatprep.subr.mxu0 0.0
      %668 = vmatpush1.msra.mxu0 0.0
      %669 = vmatprep.subr.mxu0 0.0
      %670 = vmatpush1.msra.mxu0 0.0
      %671 = vmatprep.subr.mxu0 0.0
      %672 = vmatpush1.msra.mxu0 0.0
      %673 = vmatprep.subr.mxu0 0.0
      %674 = vmatpush1.msra.mxu0 0.0
      %675 = vmatprep.subr.mxu0 0.0
      %676 = vmatpush1.msra.mxu0 0.0
      %677 = vmatprep.subr.mxu0 0.0
      %678 = vmatpush1.msra.mxu0 0.0
      %679 = vmatprep.subr.mxu0 0.0
      %680 = vmatpush1.msra.mxu0 0.0
      %681 = vmatprep.subr.mxu0 0.0
      %682 = vmatpush1.msra.mxu0 0.0
      %683 = vmatprep.subr.mxu0 0.0
      %684 = vmatpush1.msra.mxu0 0.0
      %685 = vmatprep.subr.mxu0 0.0
      %686 = vmatpush1.msra.mxu0 0.0
      %687 = vmatprep.subr.mxu0 0.0
      %688 = vmatpush1.msra.mxu0 0.0
      %689 = vmatprep.subr.mxu0 0.0
      %690 = vmatpush1.msra.mxu0 0.0
      %691 = vmatprep.subr.mxu0 0.0
      %692 = vmatpush1.msra.mxu0 0.0
      %693 = vmatprep.subr.mxu0 0.0
      %694 = vmatpush1.msra.mxu0 0.0
      %695 = vmatprep.subr.mxu0 0.0
      %696 = vmatpush1.msra.mxu0 0.0
      %697 = vmatprep.subr.mxu0 0.0
      %698 = vmatpush1.msra.mxu0 0.0
      %699 = vmatprep.mubr.f32.mxu0 0.0
      %700 = vmatmul.mubr.f32.gmra.mrb[0].mxu0 %v394
      %v701 = vpop.f32.mrb[0].mxu0
      %v702 = vadd.f32 %v625, %v701
      %v703 = vpop.f32.mrb[0].mxu0
      %v704 = vadd.f32 %v627, %v703
      %705 = vmatprep.mubr.f32.mxu0 0.0
      %706 = vmatmul.mubr.f32.gmra.mrb[0].mxu0 %v395
      %v707 = vpop.f32.mrb[0].mxu0
      %v708 = vadd.f32 %v631, %v707
      %v709 = vpop.f32.mrb[0].mxu0
      %v710 = vadd.f32 %v633, %v709
      %711 = vdwg.mxu0
      %v712 = vxor.u32 %v548, 2147483648
      %v713 = vxor.u32 %v554, 2147483648
      %v714 = vmul.f32 %v712, 1.442695
      %v715 = vpow.pop %v714
      %v716 = vmul.f32 %v713, 1.442695
      %v717 = vpow.pop %v716
      %v718 = vadd.f32 %v715, 1.0
      %v719 = vadd.f32 %v717, 1.0
      %v720 = vrcp.pop %v718
      %v721 = vmul.f32 1.0, %v720
      %v722 = vrcp.pop %v719
      %v723 = vmul.f32 1.0, %v722
      %v724 = vxor.u32 %v550, 2147483648
      %v725 = vxor.u32 %v556, 2147483648
      %v726 = vmul.f32 %v724, 1.442695
      %v727 = vpow.pop %v726
      %v728 = vmul.f32 %v725, 1.442695
      %v729 = vpow.pop %v728
      %v730 = vadd.f32 %v727, 1.0
      %v731 = vadd.f32 %v729, 1.0
      %v732 = vrcp.pop %v730
      %v733 = vmul.f32 1.0, %v732
      %v734 = vrcp.pop %v731
      %v735 = vmul.f32 1.0, %v734
      %v736 = vxor.u32 %v702, 2147483648
      %v737 = vxor.u32 %v708, 2147483648
      %v738 = vmul.f32 %v736, 1.442695
      %v739 = vpow.pop %v738
      %v740 = vmul.f32 %v737, 1.442695
      %v741 = vpow.pop %v740
      %v742 = vadd.f32 %v739, 1.0
      %v743 = vadd.f32 %v741, 1.0
      %v744 = vrcp.pop %v742
      %v745 = vmul.f32 1.0, %v744
      %v746 = vrcp.pop %v743
      %v747 = vmul.f32 1.0, %v746
      %v748 = vtanh.pop %v704
      %v749 = vtanh.pop %v710
      %v750 = vld [vmem:[#allocation3] sm:$0xff]
      %v751 = vld [vmem:[#allocation3 + $0x8] sm:$0xff]
      %v752 = vmul.f32 %v733, %v750
      %v753 = vmul.f32 %v735, %v751
      %v754 = vmul.f32 %v721, %v748
      %v755 = vmul.f32 %v723, %v749
      %v756 = vadd.f32 %v752, %v754
      %v757 = vadd.f32 %v753, %v755
      %v758 = vtanh.pop %v756
      %v759 = vtanh.pop %v757
      %v760 = vmul.f32 %v745, %v758
      %v761 = vmul.f32 %v747, %v759
      %762 = vst [vmem:[#allocation3] sm:$0xff] %v756
      %763 = vst [vmem:[#allocation3 + $0x8] sm:$0xff] %v757
      %764 = vst [vmem:[#allocation2 + $0x1] sm:$0xff] %v760
      %765 = vst [vmem:[#allocation2 + $0x9] sm:$0xff] %v761
      %766 = vst [vmem:[%s178] sm:$0xff] %v760
      %767 = vst [vmem:[%s178 + $0x8] sm:$0xff] %v761
      %768 = vst [vmem:[%s183] sm:$0xff] %v756
      %769 = vst [vmem:[%s183 + $0x8] sm:$0xff] %v757
      %s770 = scalar_lea.vmem [#allocation2], 24
      %v771 = vld [vmem:[%s770] sm:$0xff]
      %v772 = vld [vmem:[%s770 + $0x8] sm:$0xff]
      %v773 = vld [vmem:[%s770 + $0x1] sm:$0xff]
      %v774 = vld [vmem:[%s770 + $0x9] sm:$0xff]
      %v775 = vld [vmem:[%s770 + $0x2] sm:$0xff]
      %v776 = vld [vmem:[%s770 + $0xa] sm:$0xff]
      %s777 = scalar_lea.vmem %s173, 64
      %v778 = vld [vmem:[%s777] sm:$0xff]
      %v779 = vld [vmem:[%s777 + $0x8] sm:$0xff]
      %v780 = vld [vmem:[%s777 + $0x10] sm:$0xff]
      %v781 = vld [vmem:[%s777 + $0x18] sm:$0xff]
      %v782 = vld [vmem:[%s777 + $0x20] sm:$0xff]
      %v783 = vld [vmem:[%s777 + $0x28] sm:$0xff]
      %v784 = vld [vmem:[%s777 + $0x30] sm:$0xff]
      %v785 = vld [vmem:[%s777 + $0x38] sm:$0xff]
      %786 = vmatprep.subr.mxu0 %v199
      %787 = vmatpush1.msra.mxu0 %v198
      %788 = vmatprep.subr.mxu0 %v203
      %789 = vmatpush1.msra.mxu0 %v202
      %790 = vmatprep.subr.mxu0 %v207
      %791 = vmatpush1.msra.mxu0 %v206
      %792 = vmatprep.subr.mxu0 %v211
      %793 = vmatpush1.msra.mxu0 %v210
      %794 = vmatprep.subr.mxu0 %v215
      %795 = vmatpush1.msra.mxu0 %v214
      %796 = vmatprep.subr.mxu0 %v219
      %797 = vmatpush1.msra.mxu0 %v218
      %798 = vmatprep.subr.mxu0 %v223
      %799 = vmatpush1.msra.mxu0 %v222
      %800 = vmatprep.subr.mxu0 %v227
      %801 = vmatpush1.msra.mxu0 %v226
      %802 = vmatprep.subr.mxu0 %v231
      %803 = vmatpush1.msra.mxu0 %v230
      %804 = vmatprep.subr.mxu0 %v235
      %805 = vmatpush1.msra.mxu0 %v234
      %806 = vmatprep.subr.mxu0 %v239
      %807 = vmatpush1.msra.mxu0 %v238
      %808 = vmatprep.subr.mxu0 %v243
      %809 = vmatpush1.msra.mxu0 %v242
      %810 = vmatprep.subr.mxu0 %v247
      %811 = vmatpush1.msra.mxu0 %v246
      %812 = vmatprep.subr.mxu0 %v251
      %813 = vmatpush1.msra.mxu0 %v250
      %814 = vmatprep.subr.mxu0 %v255
      %815 = vmatpush1.msra.mxu0 %v254
      %816 = vmatprep.subr.mxu0 %v259
      %817 = vmatpush1.msra.mxu0 %v258
      %818 = vmatprep.subr.mxu0 %v263
      %819 = vmatpush1.msra.mxu0 %v262
      %820 = vmatprep.subr.mxu0 %v267
      %821 = vmatpush1.msra.mxu0 %v266
      %822 = vmatprep.subr.mxu0 %v271
      %823 = vmatpush1.msra.mxu0 %v270
      %824 = vmatprep.subr.mxu0 %v275
      %825 = vmatpush1.msra.mxu0 %v274
      %826 = vmatprep.subr.mxu0 %v279
      %827 = vmatpush1.msra.mxu0 %v278
      %828 = vmatprep.subr.mxu0 %v283
      %829 = vmatpush1.msra.mxu0 %v282
      %830 = vmatprep.subr.mxu0 %v287
      %831 = vmatpush1.msra.mxu0 %v286
      %832 = vmatprep.subr.mxu0 %v291
      %833 = vmatpush1.msra.mxu0 %v290
      %834 = vmatprep.subr.mxu0 %v295
      %835 = vmatpush1.msra.mxu0 %v294
      %836 = vmatprep.subr.mxu0 %v299
      %837 = vmatpush1.msra.mxu0 %v298
      %838 = vmatprep.subr.mxu0 %v303
      %839 = vmatpush1.msra.mxu0 %v302
      %840 = vmatprep.subr.mxu0 %v307
      %841 = vmatpush1.msra.mxu0 %v306
      %842 = vmatprep.subr.mxu0 %v311
      %843 = vmatpush1.msra.mxu0 %v310
      %844 = vmatprep.subr.mxu0 %v315
      %845 = vmatpush1.msra.mxu0 %v314
      %846 = vmatprep.subr.mxu0 %v319
      %847 = vmatpush1.msra.mxu0 %v318
      %848 = vmatprep.subr.mxu0 %v323
      %849 = vmatpush1.msra.mxu0 %v322
      %850 = vmatprep.mubr.f32.mxu0 %v773
      %851 = vmatmul.mubr.f32.gmra.mrb[0].mxu0 %v771
      %v852 = vpop.f32.mrb[0].mxu0
      %v853 = vadd.f32 %v778, %v852
      %v854 = vpop.f32.mrb[0].mxu0
      %v855 = vadd.f32 %v779, %v854
      %856 = vmatprep.mubr.f32.mxu0 %v774
      %857 = vmatmul.mubr.f32.gmra.mrb[0].mxu0 %v772
      %v858 = vpop.f32.mrb[0].mxu0
      %v859 = vadd.f32 %v782, %v858
      %v860 = vpop.f32.mrb[0].mxu0
      %v861 = vadd.f32 %v783, %v860
      %862 = vdwg.mxu0
      %863 = vmatprep.subr.mxu0 %v327
      %864 = vmatpush1.msra.mxu0 %v326
      %865 = vmatprep.subr.mxu0 %v331
      %866 = vmatpush1.msra.mxu0 %v330
      %867 = vmatprep.subr.mxu0 %v335
      %868 = vmatpush1.msra.mxu0 %v334
      %869 = vmatprep.subr.mxu0 %v339
      %870 = vmatpush1.msra.mxu0 %v338
      %871 = vmatprep.subr.mxu0 %v343
      %872 = vmatpush1.msra.mxu0 %v342
      %873 = vmatprep.subr.mxu0 %v347
      %874 = vmatpush1.msra.mxu0 %v346
      %875 = vmatprep.subr.mxu0 %v351
      %876 = vmatpush1.msra.mxu0 %v350
      %877 = vmatprep.subr.mxu0 %v355
      %878 = vmatpush1.msra.mxu0 %v354
      %879 = vmatprep.subr.mxu0 %v359
      %880 = vmatpush1.msra.mxu0 %v358
      %881 = vmatprep.subr.mxu0 %v363
      %882 = vmatpush1.msra.mxu0 %v362
      %883 = vmatprep.subr.mxu0 %v367
      %884 = vmatpush1.msra.mxu0 %v366
      %885 = vmatprep.subr.mxu0 %v371
      %886 = vmatpush1.msra.mxu0 %v370
      %887 = vmatprep.subr.mxu0 %v375
      %888 = vmatpush1.msra.mxu0 %v374
      %889 = vmatprep.subr.mxu0 %v379
      %890 = vmatpush1.msra.mxu0 %v378
      %891 = vmatprep.subr.mxu0 %v383
      %892 = vmatpush1.msra.mxu0 %v382
      %893 = vmatprep.subr.mxu0 %v387
      %894 = vmatpush1.msra.mxu0 %v386
      %895 = vmatprep.subr.mxu0 0.0
      %896 = vmatpush1.msra.mxu0 0.0
      %897 = vmatprep.subr.mxu0 0.0
      %898 = vmatpush1.msra.mxu0 0.0
      %899 = vmatprep.subr.mxu0 0.0
      %900 = vmatpush1.msra.mxu0 0.0
      %901 = vmatprep.subr.mxu0 0.0
      %902 = vmatpush1.msra.mxu0 0.0
      %903 = vmatprep.subr.mxu0 0.0
      %904 = vmatpush1.msra.mxu0 0.0
      %905 = vmatprep.subr.mxu0 0.0
      %906 = vmatpush1.msra.mxu0 0.0
      %907 = vmatprep.subr.mxu0 0.0
      %908 = vmatpush1.msra.mxu0 0.0
      %909 = vmatprep.subr.mxu0 0.0
      %910 = vmatpush1.msra.mxu0 0.0
      %911 = vmatprep.subr.mxu0 0.0
      %912 = vmatpush1.msra.mxu0 0.0
      %913 = vmatprep.subr.mxu0 0.0
      %914 = vmatpush1.msra.mxu0 0.0
      %915 = vmatprep.subr.mxu0 0.0
      %916 = vmatpush1.msra.mxu0 0.0
      %917 = vmatprep.subr.mxu0 0.0
      %918 = vmatpush1.msra.mxu0 0.0
      %919 = vmatprep.subr.mxu0 0.0
      %920 = vmatpush1.msra.mxu0 0.0
      %921 = vmatprep.subr.mxu0 0.0
      %922 = vmatpush1.msra.mxu0 0.0
      %923 = vmatprep.subr.mxu0 0.0
      %924 = vmatpush1.msra.mxu0 0.0
      %925 = vmatprep.subr.mxu0 0.0
      %926 = vmatpush1.msra.mxu0 0.0
      %927 = vmatprep.mubr.f32.mxu0 0.0
      %928 = vmatmul.mubr.f32.gmra.mrb[0].mxu0 %v775
      %v929 = vpop.f32.mrb[0].mxu0
      %v930 = vadd.f32 %v853, %v929
      %v931 = vpop.f32.mrb[0].mxu0
      %v932 = vadd.f32 %v855, %v931
      %933 = vmatprep.mubr.f32.mxu0 0.0
      %934 = vmatmul.mubr.f32.gmra.mrb[0].mxu0 %v776
      %v935 = vpop.f32.mrb[0].mxu0
      %v936 = vadd.f32 %v859, %v935
      %v937 = vpop.f32.mrb[0].mxu0
      %v938 = vadd.f32 %v861, %v937
      %939 = vdwg.mxu0
      %940 = vmatprep.subr.mxu0 %v201
      %941 = vmatpush1.msra.mxu0 %v200
      %942 = vmatprep.subr.mxu0 %v205
      %943 = vmatpush1.msra.mxu0 %v204
      %944 = vmatprep.subr.mxu0 %v209
      %945 = vmatpush1.msra.mxu0 %v208
      %946 = vmatprep.subr.mxu0 %v213
      %947 = vmatpush1.msra.mxu0 %v212
      %948 = vmatprep.subr.mxu0 %v217
      %949 = vmatpush1.msra.mxu0 %v216
      %950 = vmatprep.subr.mxu0 %v221
      %951 = vmatpush1.msra.mxu0 %v220
      %952 = vmatprep.subr.mxu0 %v225
      %953 = vmatpush1.msra.mxu0 %v224
      %954 = vmatprep.subr.mxu0 %v229
      %955 = vmatpush1.msra.mxu0 %v228
      %956 = vmatprep.subr.mxu0 %v233
      %957 = vmatpush1.msra.mxu0 %v232
      %958 = vmatprep.subr.mxu0 %v237
      %959 = vmatpush1.msra.mxu0 %v236
      %960 = vmatprep.subr.mxu0 %v241
      %961 = vmatpush1.msra.mxu0 %v240
      %962 = vmatprep.subr.mxu0 %v245
      %963 = vmatpush1.msra.mxu0 %v244
      %964 = vmatprep.subr.mxu0 %v249
      %965 = vmatpush1.msra.mxu0 %v248
      %966 = vmatprep.subr.mxu0 %v253
      %967 = vmatpush1.msra.mxu0 %v252
      %968 = vmatprep.subr.mxu0 %v257
      %969 = vmatpush1.msra.mxu0 %v256
      %970 = vmatprep.subr.mxu0 %v261
      %971 = vmatpush1.msra.mxu0 %v260
      %972 = vmatprep.subr.mxu0 %v265
      %973 = vmatpush1.msra.mxu0 %v264
      %974 = vmatprep.subr.mxu0 %v269
      %975 = vmatpush1.msra.mxu0 %v268
      %976 = vmatprep.subr.mxu0 %v273
      %977 = vmatpush1.msra.mxu0 %v272
      %978 = vmatprep.subr.mxu0 %v277
      %979 = vmatpush1.msra.mxu0 %v276
      %980 = vmatprep.subr.mxu0 %v281
      %981 = vmatpush1.msra.mxu0 %v280
      %982 = vmatprep.subr.mxu0 %v285
      %983 = vmatpush1.msra.mxu0 %v284
      %984 = vmatprep.subr.mxu0 %v289
      %985 = vmatpush1.msra.mxu0 %v288
      %986 = vmatprep.subr.mxu0 %v293
      %987 = vmatpush1.msra.mxu0 %v292
      %988 = vmatprep.subr.mxu0 %v297
      %989 = vmatpush1.msra.mxu0 %v296
      %990 = vmatprep.subr.mxu0 %v301
      %991 = vmatpush1.msra.mxu0 %v300
      %992 = vmatprep.subr.mxu0 %v305
      %993 = vmatpush1.msra.mxu0 %v304
      %994 = vmatprep.subr.mxu0 %v309
      %995 = vmatpush1.msra.mxu0 %v308
      %996 = vmatprep.subr.mxu0 %v313
      %997 = vmatpush1.msra.mxu0 %v312
      %998 = vmatprep.subr.mxu0 %v317
      %999 = vmatpush1.msra.mxu0 %v316
      %1000 = vmatprep.subr.mxu0 %v321
      %1001 = vmatpush1.msra.mxu0 %v320
      %1002 = vmatprep.subr.mxu0 %v325
      %1003 = vmatpush1.msra.mxu0 %v324
      %1004 = vmatprep.mubr.f32.mxu0 %v773
      %1005 = vmatmul.mubr.f32.gmra.mrb[0].mxu0 %v771
      %v1006 = vpop.f32.mrb[0].mxu0
      %v1007 = vadd.f32 %v780, %v1006
      %v1008 = vpop.f32.mrb[0].mxu0
      %v1009 = vadd.f32 %v781, %v1008
      %1010 = vmatprep.mubr.f32.mxu0 %v774
      %1011 = vmatmul.mubr.f32.gmra.mrb[0].mxu0 %v772
      %v1012 = vpop.f32.mrb[0].mxu0
      %v1013 = vadd.f32 %v784, %v1012
      %v1014 = vpop.f32.mrb[0].mxu0
      %v1015 = vadd.f32 %v785, %v1014
      %1016 = vdwg.mxu0
      %1017 = vmatprep.subr.mxu0 %v329
      %1018 = vmatpush1.msra.mxu0 %v328
      %1019 = vmatprep.subr.mxu0 %v333
      %1020 = vmatpush1.msra.mxu0 %v332
      %1021 = vmatprep.subr.mxu0 %v337
      %1022 = vmatpush1.msra.mxu0 %v336
      %1023 = vmatprep.subr.mxu0 %v341
      %1024 = vmatpush1.msra.mxu0 %v340
      %1025 = vmatprep.subr.mxu0 %v345
      %1026 = vmatpush1.msra.mxu0 %v344
      %1027 = vmatprep.subr.mxu0 %v349
      %1028 = vmatpush1.msra.mxu0 %v348
      %1029 = vmatprep.subr.mxu0 %v353
      %1030 = vmatpush1.msra.mxu0 %v352
      %1031 = vmatprep.subr.mxu0 %v357
      %1032 = vmatpush1.msra.mxu0 %v356
      %1033 = vmatprep.subr.mxu0 %v361
      %1034 = vmatpush1.msra.mxu0 %v360
      %1035 = vmatprep.subr.mxu0 %v365
      %1036 = vmatpush1.msra.mxu0 %v364
      %1037 = vmatprep.subr.mxu0 %v369
      %1038 = vmatpush1.msra.mxu0 %v368
      %1039 = vmatprep.subr.mxu0 %v373
      %1040 = vmatpush1.msra.mxu0 %v372
      %1041 = vmatprep.subr.mxu0 %v377
      %1042 = vmatpush1.msra.mxu0 %v376
      %1043 = vmatprep.subr.mxu0 %v381
      %1044 = vmatpush1.msra.mxu0 %v380
      %1045 = vmatprep.subr.mxu0 %v385
      %1046 = vmatpush1.msra.mxu0 %v384
      %1047 = vmatprep.subr.mxu0 %v389
      %1048 = vmatpush1.msra.mxu0 %v388
      %1049 = vmatprep.subr.mxu0 0.0
      %1050 = vmatpush1.msra.mxu0 0.0
      %1051 = vmatprep.subr.mxu0 0.0
      %1052 = vmatpush1.msra.mxu0 0.0
      %1053 = vmatprep.subr.mxu0 0.0
      %1054 = vmatpush1.msra.mxu0 0.0
      %1055 = vmatprep.subr.mxu0 0.0
      %1056 = vmatpush1.msra.mxu0 0.0
      %1057 = vmatprep.subr.mxu0 0.0
      %1058 = vmatpush1.msra.mxu0 0.0
      %1059 = vmatprep.subr.mxu0 0.0
      %1060 = vmatpush1.msra.mxu0 0.0
      %1061 = vmatprep.subr.mxu0 0.0
      %1062 = vmatpush1.msra.mxu0 0.0
      %1063 = vmatprep.subr.mxu0 0.0
      %1064 = vmatpush1.msra.mxu0 0.0
      %1065 = vmatprep.subr.mxu0 0.0
      %1066 = vmatpush1.msra.mxu0 0.0
      %1067 = vmatprep.subr.mxu0 0.0
      %1068 = vmatpush1.msra.mxu0 0.0
      %1069 = vmatprep.subr.mxu0 0.0
      %1070 = vmatpush1.msra.mxu0 0.0
      %1071 = vmatprep.subr.mxu0 0.0
      %1072 = vmatpush1.msra.mxu0 0.0
      %1073 = vmatprep.subr.mxu0 0.0
      %1074 = vmatpush1.msra.mxu0 0.0
      %1075 = vmatprep.subr.mxu0 0.0
      %1076 = vmatpush1.msra.mxu0 0.0
      %1077 = vmatprep.subr.mxu0 0.0
      %1078 = vmatpush1.msra.mxu0 0.0
      %1079 = vmatprep.subr.mxu0 0.0
      %1080 = vmatpush1.msra.mxu0 0.0
      %1081 = vmatprep.mubr.f32.mxu0 0.0
      %1082 = vmatmul.mubr.f32.gmra.mrb[0].mxu0 %v775
      %v1083 = vpop.f32.mrb[0].mxu0
      %v1084 = vadd.f32 %v1007, %v1083
      %v1085 = vpop.f32.mrb[0].mxu0
      %v1086 = vadd.f32 %v1009, %v1085
      %1087 = vmatprep.mubr.f32.mxu0 0.0
      %1088 = vmatmul.mubr.f32.gmra.mrb[0].mxu0 %v776
      %v1089 = vpop.f32.mrb[0].mxu0
      %v1090 = vadd.f32 %v1013, %v1089
      %v1091 = vpop.f32.mrb[0].mxu0
      %v1092 = vadd.f32 %v1015, %v1091
      %1093 = vdwg.mxu0
      %v1094 = vxor.u32 %v930, 2147483648
      %v1095 = vxor.u32 %v936, 2147483648
      %v1096 = vmul.f32 %v1094, 1.442695
      %v1097 = vpow.pop %v1096
      %v1098 = vmul.f32 %v1095, 1.442695
      %v1099 = vpow.pop %v1098
      %v1100 = vadd.f32 %v1097, 1.0
      %v1101 = vadd.f32 %v1099, 1.0
      %v1102 = vrcp.pop %v1100
      %v1103 = vmul.f32 1.0, %v1102
      %v1104 = vrcp.pop %v1101
      %v1105 = vmul.f32 1.0, %v1104
      %v1106 = vxor.u32 %v932, 2147483648
      %v1107 = vxor.u32 %v938, 2147483648
      %v1108 = vmul.f32 %v1106, 1.442695
      %v1109 = vpow.pop %v1108
      %v1110 = vmul.f32 %v1107, 1.442695
      %v1111 = vpow.pop %v1110
      %v1112 = vadd.f32 %v1109, 1.0
      %v1113 = vadd.f32 %v1111, 1.0
      %v1114 = vrcp.pop %v1112
      %v1115 = vmul.f32 1.0, %v1114
      %v1116 = vrcp.pop %v1113
      %v1117 = vmul.f32 1.0, %v1116
      %v1118 = vxor.u32 %v1084, 2147483648
      %v1119 = vxor.u32 %v1090, 2147483648
      %v1120 = vmul.f32 %v1118, 1.442695
      %v1121 = vpow.pop %v1120
      %v1122 = vmul.f32 %v1119, 1.442695
      %v1123 = vpow.pop %v1122
      %v1124 = vadd.f32 %v1121, 1.0
      %v1125 = vadd.f32 %v1123, 1.0
      %v1126 = vrcp.pop %v1124
      %v1127 = vmul.f32 1.0, %v1126
      %v1128 = vrcp.pop %v1125
      %v1129 = vmul.f32 1.0, %v1128
      %v1130 = vtanh.pop %v1086
      %v1131 = vtanh.pop %v1092
      %s1132 = scalar_lea.vmem [#allocation3], 16
      %v1133 = vld [vmem:[%s1132] sm:$0xff]
      %v1134 = vld [vmem:[%s1132 + $0x8] sm:$0xff]
      %v1135 = vmul.f32 %v1115, %v1133
      %v1136 = vmul.f32 %v1117, %v1134
      %v1137 = vmul.f32 %v1103, %v1130
      %v1138 = vmul.f32 %v1105, %v1131
      %v1139 = vadd.f32 %v1135, %v1137
      %v1140 = vadd.f32 %v1136, %v1138
      %v1141 = vtanh.pop %v1139
      %v1142 = vtanh.pop %v1140
      %v1143 = vmul.f32 %v1127, %v1141
      %v1144 = vmul.f32 %v1129, %v1142
      %1145 = vst [vmem:[%s1132] sm:$0xff] %v1139
      %1146 = vst [vmem:[%s1132 + $0x8] sm:$0xff] %v1140
      %1147 = vst [vmem:[%s770 + $0x1] sm:$0xff] %v1143
      %1148 = vst [vmem:[%s770 + $0x9] sm:$0xff] %v1144
      %s1149 = scalar_lea.vmem %s178, 16
      %1150 = vst [vmem:[%s1149] sm:$0xff] %v1143
      %1151 = vst [vmem:[%s1149 + $0x8] sm:$0xff] %v1144
      %s1152 = scalar_lea.vmem %s183, 16
      %1153 = vst [vmem:[%s1152] sm:$0xff] %v1139
      %1154 = vst [vmem:[%s1152 + $0x8] sm:$0xff] %v1140
      %p1155 = scmp.lt.s32.totalorder %s15, 9
      %s1156 = scalar_select %p1155, %s15, 9
      %s1157 = smul.addr %s1156, 4
      %s1158 = smul.addr %s1157, 8
      %s1159 = scalar_lea.vmem %s2, %s1158
      %p1160 = scmp.lt.s32.totalorder %s15, 9
      %s1161 = scalar_select %p1160, %s15, 9
      %s1162 = smul.addr %s1161, 4
      %s1163 = smul.addr %s1162, 8
      %s1164 = scalar_lea.vmem %s3, %s1163
      // Predicated region
      $region33: #{_conv_lstm_forward_pallas.3} parent=27 // pred_check
        %p1165 = pneg %p80
      $region34: #{_conv_lstm_forward_pallas.3} parent=27 // pred_check_branch
        %1167 = sbr.rel (%p1165) target = $region36
      $region35: #{_conv_lstm_forward_pallas.3} parent=27 // pred_region
        _
      $region36: #{_conv_lstm_forward_pallas.3} parent=27 // pred_fallthru
        _
      // Predicated region
      $region37: #{_conv_lstm_forward_pallas.3} parent=27 // pred_check
        %p1168 = pneg %p106
      $region38: #{_conv_lstm_forward_pallas.3} parent=27 // pred_check_branch
        %1170 = sbr.rel (%p1168) target = $region40
      $region39: #{_conv_lstm_forward_pallas.3} parent=27 // pred_region
        _
      $region40: #{_conv_lstm_forward_pallas.3} parent=27 // pred_fallthru
        _
    $region28: #{_conv_lstm_forward_pallas.3} parent=5 // pred_fallthru
      _
    %p1171 = scmp.le.s32.totalorder 2, %s10
    // Predicated region
    $region41: #{_conv_lstm_forward_pallas.3} parent=5 // pred_check
      %p1172 = pneg %p1171
    $region42: #{_conv_lstm_forward_pallas.3} parent=5 // pred_check_branch
      %1174 = sbr.rel (%p1172) target = $region44
    $region43: #{_conv_lstm_forward_pallas.3} parent=5 // pred_region
      %s1175 = ssub.s32 %s10, 2
      // Predicated region
      $region45: #{_conv_lstm_forward_pallas.3} parent=43 // pred_check
        %p1176 = pneg %p86
      $region46: #{_conv_lstm_forward_pallas.3} parent=43 // pred_check_branch
        %1178 = sbr.rel (%p1176) target = $region48
      $region47: #{_conv_lstm_forward_pallas.3} parent=43 // pred_region
        %p1179 = scmp.lt.s32.totalorder %s16, 9
        %s1180 = scalar_select %p1179, %s16, 9
        %s1181 = smul.addr %s1180, 4
        %s1182 = smul.addr %s1181, 8
        %s1183 = scalar_lea.vmem %s2, %s1182
      $region48: #{_conv_lstm_forward_pallas.3} parent=43 // pred_fallthru
        _
      // Predicated region
      $region49: #{_conv_lstm_forward_pallas.3} parent=43 // pred_check
        %p1184 = pneg %p112
      $region50: #{_conv_lstm_forward_pallas.3} parent=43 // pred_check_branch
        %1186 = sbr.rel (%p1184) target = $region52
      $region51: #{_conv_lstm_forward_pallas.3} parent=43 // pred_region
        %p1187 = scmp.lt.s32.totalorder %s16, 9
        %s1188 = scalar_select %p1187, %s16, 9
        %s1189 = smul.addr %s1188, 4
        %s1190 = smul.addr %s1189, 8
        %s1191 = scalar_lea.vmem %s3, %s1190
      $region52: #{_conv_lstm_forward_pallas.3} parent=43 // pred_fallthru
        _
    $region44: #{_conv_lstm_forward_pallas.3} parent=5 // pred_fallthru
      _
  $region6: #{_conv_lstm_forward_pallas.3} parent=0 // loop_footer
    %s14 = sadd.s32 1, %s10
  $region7: #{_conv_lstm_forward_pallas.3} parent=0 // loop_footer_branch
    %9 = sbr.rel target = $region3
  $region8: #{_conv_lstm_forward_pallas.3} parent=0 // loop_exit
    _

// kernel: _conv_lstm_forward_pallas.2
$region0: #{_conv_lstm_forward_pallas.2}
  #allocation0 [shape = 'u32[]', space=smem, size = 0x4, offset = 0x4, fixed_abs, tag = 'smem constant byte address 0x4 - core index']
  #allocation1 [shape = 'u32[144,128]{1,0:T(1,128)}', space=vmem, size = 0x12000, scoped, tag = 'internal scratch']
  #allocation2 [shape = 'f32[2,18,128]{2,1,0:T(8,128)}', space=vmem, size = 0x6000, scoped, tag = 'scratch operand']
  #allocation3 [shape = 'f32[2,16,128]{2,1,0:T(8,128)}', space=vmem, size = 0x4000, scoped, tag = 'scratch operand']
  %s0 = inlined_call_operand.vmem [shape: f32[9,2,16,512], index: 0, kind: input, shape index: {}]
  %s1 = inlined_call_operand.vmem [shape: f32[384,512], index: 1, kind: input, shape index: {}]
  %s2 = inlined_call_operand.vmem [shape: f32[9,2,16,128], index: 2, kind: output, shape index: {0}]
  %s3 = inlined_call_operand.vmem [shape: f32[9,2,16,128], index: 3, kind: output, shape index: {1}]
  %4 = xla_tuple %s2, %s3
  %s5 = sld [smem:[#allocation0]]
  $region53: #{_conv_lstm_forward_pallas.2} parent=0
    _
  %s7 = ssub.s32 1, %s5
  %s8 = scalar_select 0, %s7, %s5
  loop: start=0, step=1, limit=11
  $region2: #{_conv_lstm_forward_pallas.2} parent=0 // loop_pre_header
    _
  $region3: #{_conv_lstm_forward_pallas.2} parent=0 // loop_header
    %s10 = sphi 0, %s14
    %p11 = scmp.ge.s32.totalorder %s10, 11
    %s20 = sphi 0, %s22
    %s23 = sphi 0, %s20
    %s24 = sphi 0, %s23
    %s40 = sphi 0, %s24
    %s44 = sphi 0, %s44
    %s46 = sphi 0, %s44
    %s47 = sphi 0, %s46
    %s61 = sphi 0, %s47
    %s67 = sphi 0, %s69
    %s70 = sphi 0, %s67
    %s71 = sphi 0, %s70
    %s87 = sphi 0, %s71
    %s93 = sphi 0, %s95
    %s96 = sphi 0, %s93
    %s97 = sphi 0, %s96
    %s113 = sphi 0, %s97
  $region4: #{_conv_lstm_forward_pallas.2} parent=0 // loop_header_branch
    %13 = sbr.rel (%p11) target = $region8
  $region5: #{_conv_lstm_forward_pallas.2} parent=0 // loop_body
    %s15 = ssub.s32 %s10, 1
    %s16 = ssub.s32 %s10, 2
    %s17 = sadd.s32 %s10, 1
    %s18 = ssub.s32 %s10, %s17
    %p19 = scmp.eq.s32.totalorder %s18, 0
    %s21 = sadd.s32 %s20, 1
    %s22 = scalar_select %p19, %s20, %s21
    %p25 = pneg %p19
    %p26 = scmp.eq.s32.totalorder %s10, 8
    %p27 = por %p25, %p26
    %p28 = scmp.ne.s32.totalorder %s20, %s23
    %p29 = scmp.eq.s32.totalorder %s10, 0
    %p30 = por %p28, %p29
    %p31 = scmp.ne.s32.totalorder %s20, %s23
    %p32 = scmp.eq.s32.totalorder %s15, 8
    %p33 = por %p31, %p32
    %p34 = scmp.ne.s32.totalorder %s23, %s24
    %p35 = scmp.eq.s32.totalorder %s15, 0
    %p36 = por %p34, %p35
    %p37 = scmp.ne.s32.totalorder %s23, %s24
    %p38 = scmp.eq.s32.totalorder %s16, 8
    %p39 = por %p37, %p38
    %p41 = scmp.ne.s32.totalorder %s24, %s40
    %p42 = scmp.eq.s32.totalorder %s16, 0
    %p43 = por %p41, %p42
    %s45 = sadd.s32 %s44, 1
    %p48 = scmp.eq.s32.totalorder %s10, 8
    %p49 = scmp.ne.s32.totalorder %s44, %s46
    %p50 = scmp.eq.s32.totalorder %s10, 0
    %p51 = por %p49, %p50
    %p52 = scmp.ne.s32.totalorder %s44, %s46
    %p53 = scmp.eq.s32.totalorder %s15, 8
    %p54 = por %p52, %p53
    %p55 = scmp.ne.s32.totalorder %s46, %s47
    %p56 = scmp.eq.s32.totalorder %s15, 0
    %p57 = por %p55, %p56
    %p58 = scmp.ne.s32.totalorder %s46, %s47
    %p59 = scmp.eq.s32.totalorder %s16, 8
    %p60 = por %p58, %p59
    %p62 = scmp.ne.s32.totalorder %s47, %s61
    %p63 = scmp.eq.s32.totalorder %s16, 0
    %p64 = por %p62, %p63
    %s65 = ssub.s32 %s10, %s17
    %p66 = scmp.eq.s32.totalorder %s65, 0
    %s68 = sadd.s32 %s67, 1
    %s69 = scalar_select %p66, %s67, %s68
    %p72 = pneg %p66
    %p73 = scmp.eq.s32.totalorder %s10, 8
    %p74 = por %p72, %p73
    %p75 = scmp.ne.s32.totalorder %s67, %s70
    %p76 = scmp.eq.s32.totalorder %s10, 0
    %p77 = por %p75, %p76
    %p78 = scmp.ne.s32.totalorder %s67, %s70
    %p79 = scmp.eq.s32.totalorder %s15, 8
    %p80 = por %p78, %p79
    %p81 = scmp.ne.s32.totalorder %s70, %s71
    %p82 = scmp.eq.s32.totalorder %s15, 0
    %p83 = por %p81, %p82
    %p84 = scmp.ne.s32.totalorder %s70, %s71
    %p85 = scmp.eq.s32.totalorder %s16, 8
    %p86 = por %p84, %p85
    %p88 = scmp.ne.s32.totalorder %s71, %s87
    %p89 = scmp.eq.s32.totalorder %s16, 0
    %p90 = por %p88, %p89
    %s91 = ssub.s32 %s10, %s17
    %p92 = scmp.eq.s32.totalorder %s91, 0
    %s94 = sadd.s32 %s93, 1
    %s95 = scalar_select %p92, %s93, %s94
    %p98 = pneg %p92
    %p99 = scmp.eq.s32.totalorder %s10, 8
    %p100 = por %p98, %p99
    %p101 = scmp.ne.s32.totalorder %s93, %s96
    %p102 = scmp.eq.s32.totalorder %s10, 0
    %p103 = por %p101, %p102
    %p104 = scmp.ne.s32.totalorder %s93, %s96
    %p105 = scmp.eq.s32.totalorder %s15, 8
    %p106 = por %p104, %p105
    %p107 = scmp.ne.s32.totalorder %s96, %s97
    %p108 = scmp.eq.s32.totalorder %s15, 0
    %p109 = por %p107, %p108
    %p110 = scmp.ne.s32.totalorder %s96, %s97
    %p111 = scmp.eq.s32.totalorder %s16, 8
    %p112 = por %p110, %p111
    %p114 = scmp.ne.s32.totalorder %s97, %s113
    %p115 = scmp.eq.s32.totalorder %s16, 0
    %p116 = por %p114, %p115
    %p117 = scmp.le.s32.totalorder 1, %s10
    %p118 = scmp.lt.s32.totalorder %s10, 10
    %p119 = pnand %p117, %p118
    %p120 = pneg %p119
    // Predicated region
    $region9: #{_conv_lstm_forward_pallas.2} parent=5 // pred_check
      _
    $region10: #{_conv_lstm_forward_pallas.2} parent=5 // pred_check_branch
      %122 = sbr.rel (%p119) target = $region12
    $region11: #{_conv_lstm_forward_pallas.2} parent=5 // pred_region
      %s123 = ssub.s32 %s10, 1
      // Predicated region
      $region13: #{_conv_lstm_forward_pallas.2} parent=11 // pred_check
        %p124 = pneg %p57
      $region14: #{_conv_lstm_forward_pallas.2} parent=11 // pred_check_branch
        %126 = sbr.rel (%p124) target = $region16
      $region15: #{_conv_lstm_forward_pallas.2} parent=11 // pred_region
        _
      $region16: #{_conv_lstm_forward_pallas.2} parent=11 // pred_fallthru
        _
    $region12: #{_conv_lstm_forward_pallas.2} parent=5 // pred_fallthru
      _
    %p127 = scmp.lt.s32.totalorder %s10, 9
    // Predicated region
    $region17: #{_conv_lstm_forward_pallas.2} parent=5 // pred_check
      %p128 = pneg %p127
    $region18: #{_conv_lstm_forward_pallas.2} parent=5 // pred_check_branch
      %130 = sbr.rel (%p128) target = $region20
    $region19: #{_conv_lstm_forward_pallas.2} parent=5 // pred_region
      // Predicated region
      $region21: #{_conv_lstm_forward_pallas.2} parent=19 // pred_check
        %p131 = pneg %p30
      $region22: #{_conv_lstm_forward_pallas.2} parent=19 // pred_check_branch
        %133 = sbr.rel (%p131) target = $region24
      $region23: #{_conv_lstm_forward_pallas.2} parent=19 // pred_region
        %p134 = scmp.lt.s32.totalorder %s10, 8
        %s135 = scalar_select %p134, %s10, 8
        %s136 = smul.addr %s135, 16
        %s137 = smul.addr %s136, 8
        %s138 = scalar_lea.vmem %s0, %s137
      $region24: #{_conv_lstm_forward_pallas.2} parent=19 // pred_fallthru
        _
    $region20: #{_conv_lstm_forward_pallas.2} parent=5 // pred_fallthru
      _
    %p139 = scmp.le.s32.totalorder 1, %s10
    %p140 = scmp.lt.s32.totalorder %s10, 10
    %p141 = pnand %p139, %p140
    %p142 = pneg %p141
    // Predicated region
    $region25: #{_conv_lstm_forward_pallas.2} parent=5 // pred_check
      _
    $region26: #{_conv_lstm_forward_pallas.2} parent=5 // pred_check_branch
      %144 = sbr.rel (%p141) target = $region28
    $region27: #{_conv_lstm_forward_pallas.2} parent=5 // pred_region
      %s145 = ssub.s32 %s10, 1
      %p146 = scmp.lt.s32.totalorder %s15, 8
      %s147 = scalar_select %p146, %s15, 8
      %s148 = smul.addr %s147, 16
      %s149 = smul.addr %s148, 8
      %s150 = scalar_lea.vmem %s0, %s149
      %p151 = pneg %p36
      %p152 = pneg %p33
      %p153 = pneg %p57
      %p154 = pneg %p54
      %p155 = pneg %p83
      %p156 = pneg %p80
      %p157 = scmp.lt.s32.totalorder %s15, 8
      %s158 = scalar_select %p157, %s15, 8
      %s159 = smul.addr %s158, 4
      %s160 = smul.addr %s159, 8
      %s161 = scalar_lea.vmem %s2, %s160
      %p162 = pneg %p109
      %p163 = pneg %p106
      %p164 = scmp.lt.s32.totalorder %s15, 8
      %s165 = scalar_select %p164, %s15, 8
      %s166 = smul.addr %s165, 4
      %s167 = smul.addr %s166, 8
      %s168 = scalar_lea.vmem %s3, %s167
      %p169 = scmp.lt.s32.totalorder %s15, 8
      %s170 = scalar_select %p169, %s15, 8
      %s171 = smul.addr %s170, 16
      %s172 = smul.addr %s171, 8
      %s173 = scalar_lea.vmem %s0, %s172
      %p174 = scmp.lt.s32.totalorder %s15, 8
      %s175 = scalar_select %p174, %s15, 8
      %s176 = smul.addr %s175, 4
      %s177 = smul.addr %s176, 8
      %s178 = scalar_lea.vmem %s2, %s177
      %p179 = scmp.lt.s32.totalorder %s15, 8
      %s180 = scalar_select %p179, %s15, 8
      %s181 = smul.addr %s180, 4
      %s182 = smul.addr %s181, 8
      %s183 = scalar_lea.vmem %s3, %s182
      %p184 = scmp.eq.s32.totalorder %s15, 0
      // Predicated region
      $region29: #{_conv_lstm_forward_pallas.2} parent=27 // pred_check
        %p185 = pneg %p184
      $region30: #{_conv_lstm_forward_pallas.2} parent=27 // pred_check_branch
        %187 = sbr.rel (%p185) target = $region32
      $region31: #{_conv_lstm_forward_pallas.2} parent=27 // pred_region
        %188 = vst [vmem:[#allocation2] sm:$0xff] 0.0
        %189 = vst [vmem:[#allocation2 + $0x8] sm:$0xff] 0.0
        %190 = vst [vmem:[#allocation2 + $0x10] sm:$0x3] 0.0
        %191 = vst [vmem:[#allocation2 + $0x18] sm:$0xff] 0.0
        %192 = vst [vmem:[#allocation2 + $0x20] sm:$0xff] 0.0
        %193 = vst [vmem:[#allocation2 + $0x28] sm:$0x3] 0.0
        %194 = vst [vmem:[#allocation3] sm:$0xff] 0.0
        %195 = vst [vmem:[#allocation3 + $0x8] sm:$0xff] 0.0
        %196 = vst [vmem:[#allocation3 + $0x10] sm:$0xff] 0.0
        %197 = vst [vmem:[#allocation3 + $0x18] sm:$0xff] 0.0
      $region32: #{_conv_lstm_forward_pallas.2} parent=27 // pred_fallthru
        _
      %v198 = vld [vmem:[%s1] sm:$0xff]
      %v199 = vld [vmem:[%s1 + $0x8] sm:$0xff]
      %v200 = vld [vmem:[%s1 + $0x10] sm:$0xff]
      %v201 = vld [vmem:[%s1 + $0x18] sm:$0xff]
      %v202 = vld [vmem:[%s1 + $0x20] sm:$0xff]
      %v203 = vld [vmem:[%s1 + $0x28] sm:$0xff]
      %v204 = vld [vmem:[%s1 + $0x30] sm:$0xff]
      %v205 = vld [vmem:[%s1 + $0x38] sm:$0xff]
      %v206 = vld [vmem:[%s1 + $0x40] sm:$0xff]
      %v207 = vld [vmem:[%s1 + $0x48] sm:$0xff]
      %v208 = vld [vmem:[%s1 + $0x50] sm:$0xff]
      %v209 = vld [vmem:[%s1 + $0x58] sm:$0xff]
      %v210 = vld [vmem:[%s1 + $0x60] sm:$0xff]
      %v211 = vld [vmem:[%s1 + $0x68] sm:$0xff]
      %v212 = vld [vmem:[%s1 + $0x70] sm:$0xff]
      %v213 = vld [vmem:[%s1 + $0x78] sm:$0xff]
      %v214 = vld [vmem:[%s1 + $0x80] sm:$0xff]
      %v215 = vld [vmem:[%s1 + $0x88] sm:$0xff]
      %v216 = vld [vmem:[%s1 + $0x90] sm:$0xff]
      %v217 = vld [vmem:[%s1 + $0x98] sm:$0xff]
      %v218 = vld [vmem:[%s1 + $0xa0] sm:$0xff]
      %v219 = vld [vmem:[%s1 + $0xa8] sm:$0xff]
      %v220 = vld [vmem:[%s1 + $0xb0] sm:$0xff]
      %v221 = vld [vmem:[%s1 + $0xb8] sm:$0xff]
      %v222 = vld [vmem:[%s1 + $0xc0] sm:$0xff]
      %v223 = vld [vmem:[%s1 + $0xc8] sm:$0xff]
      %v224 = vld [vmem:[%s1 + $0xd0] sm:$0xff]
      %v225 = vld [vmem:[%s1 + $0xd8] sm:$0xff]
      %v226 = vld [vmem:[%s1 + $0xe0] sm:$0xff]
      %v227 = vld [vmem:[%s1 + $0xe8] sm:$0xff]
      %v228 = vld [vmem:[%s1 + $0xf0] sm:$0xff]
      %v229 = vld [vmem:[%s1 + $0xf8] sm:$0xff]
      %v230 = vld [vmem:[%s1 + $0x100] sm:$0xff]
      %v231 = vld [vmem:[%s1 + $0x108] sm:$0xff]
      %v232 = vld [vmem:[%s1 + $0x110] sm:$0xff]
      %v233 = vld [vmem:[%s1 + $0x118] sm:$0xff]
      %v234 = vld [vmem:[%s1 + $0x120] sm:$0xff]
      %v235 = vld [vmem:[%s1 + $0x128] sm:$0xff]
      %v236 = vld [vmem:[%s1 + $0x130] sm:$0xff]
      %v237 = vld [vmem:[%s1 + $0x138] sm:$0xff]
      %v238 = vld [vmem:[%s1 + $0x140] sm:$0xff]
      %v239 = vld [vmem:[%s1 + $0x148] sm:$0xff]
      %v240 = vld [vmem:[%s1 + $0x150] sm:$0xff]
      %v241 = vld [vmem:[%s1 + $0x158] sm:$0xff]
      %v242 = vld [vmem:[%s1 + $0x160] sm:$0xff]
      %v243 = vld [vmem:[%s1 + $0x168] sm:$0xff]
      %v244 = vld [vmem:[%s1 + $0x170] sm:$0xff]
      %v245 = vld [vmem:[%s1 + $0x178] sm:$0xff]
      %v246 = vld [vmem:[%s1 + $0x180] sm:$0xff]
      %v247 = vld [vmem:[%s1 + $0x188] sm:$0xff]
      %v248 = vld [vmem:[%s1 + $0x190] sm:$0xff]
      %v249 = vld [vmem:[%s1 + $0x198] sm:$0xff]
      %v250 = vld [vmem:[%s1 + $0x1a0] sm:$0xff]
      %v251 = vld [vmem:[%s1 + $0x1a8] sm:$0xff]
      %v252 = vld [vmem:[%s1 + $0x1b0] sm:$0xff]
      %v253 = vld [vmem:[%s1 + $0x1b8] sm:$0xff]
      %v254 = vld [vmem:[%s1 + $0x1c0] sm:$0xff]
      %v255 = vld [vmem:[%s1 + $0x1c8] sm:$0xff]
      %v256 = vld [vmem:[%s1 + $0x1d0] sm:$0xff]
      %v257 = vld [vmem:[%s1 + $0x1d8] sm:$0xff]
      %v258 = vld [vmem:[%s1 + $0x1e0] sm:$0xff]
      %v259 = vld [vmem:[%s1 + $0x1e8] sm:$0xff]
      %v260 = vld [vmem:[%s1 + $0x1f0] sm:$0xff]
      %v261 = vld [vmem:[%s1 + $0x1f8] sm:$0xff]
      %v262 = vld [vmem:[%s1 + $0x200] sm:$0xff]
      %v263 = vld [vmem:[%s1 + $0x208] sm:$0xff]
      %v264 = vld [vmem:[%s1 + $0x210] sm:$0xff]
      %v265 = vld [vmem:[%s1 + $0x218] sm:$0xff]
      %v266 = vld [vmem:[%s1 + $0x220] sm:$0xff]
      %v267 = vld [vmem:[%s1 + $0x228] sm:$0xff]
      %v268 = vld [vmem:[%s1 + $0x230] sm:$0xff]
      %v269 = vld [vmem:[%s1 + $0x238] sm:$0xff]
      %v270 = vld [vmem:[%s1 + $0x240] sm:$0xff]
      %v271 = vld [vmem:[%s1 + $0x248] sm:$0xff]
      %v272 = vld [vmem:[%s1 + $0x250] sm:$0xff]
      %v273 = vld [vmem:[%s1 + $0x258] sm:$0xff]
      %v274 = vld [vmem:[%s1 + $0x260] sm:$0xff]
      %v275 = vld [vmem:[%s1 + $0x268] sm:$0xff]
      %v276 = vld [vmem:[%s1 + $0x270] sm:$0xff]
      %v277 = vld [vmem:[%s1 + $0x278] sm:$0xff]
      %v278 = vld [vmem:[%s1 + $0x280] sm:$0xff]
      %v279 = vld [vmem:[%s1 + $0x288] sm:$0xff]
      %v280 = vld [vmem:[%s1 + $0x290] sm:$0xff]
      %v281 = vld [vmem:[%s1 + $0x298] sm:$0xff]
      %v282 = vld [vmem:[%s1 + $0x2a0] sm:$0xff]
      %v283 = vld [vmem:[%s1 + $0x2a8] sm:$0xff]
      %v284 = vld [vmem:[%s1 + $0x2b0] sm:$0xff]
      %v285 = vld [vmem:[%s1 + $0x2b8] sm:$0xff]
      %v286 = vld [vmem:[%s1 + $0x2c0] sm:$0xff]
      %v287 = vld [vmem:[%s1 + $0x2c8] sm:$0xff]
      %v288 = vld [vmem:[%s1 + $0x2d0] sm:$0xff]
      %v289 = vld [vmem:[%s1 + $0x2d8] sm:$0xff]
      %v290 = vld [vmem:[%s1 + $0x2e0] sm:$0xff]
      %v291 = vld [vmem:[%s1 + $0x2e8] sm:$0xff]
      %v292 = vld [vmem:[%s1 + $0x2f0] sm:$0xff]
      %v293 = vld [vmem:[%s1 + $0x2f8] sm:$0xff]
      %v294 = vld [vmem:[%s1 + $0x300] sm:$0xff]
      %v295 = vld [vmem:[%s1 + $0x308] sm:$0xff]
      %v296 = vld [vmem:[%s1 + $0x310] sm:$0xff]
      %v297 = vld [vmem:[%s1 + $0x318] sm:$0xff]
      %v298 = vld [vmem:[%s1 + $0x320] sm:$0xff]
      %v299 = vld [vmem:[%s1 + $0x328] sm:$0xff]
      %v300 = vld [vmem:[%s1 + $0x330] sm:$0xff]
      %v301 = vld [vmem:[%s1 + $0x338] sm:$0xff]
      %v302 = vld [vmem:[%s1 + $0x340] sm:$0xff]
      %v303 = vld [vmem:[%s1 + $0x348] sm:$0xff]
      %v304 = vld [vmem:[%s1 + $0x350] sm:$0xff]
      %v305 = vld [vmem:[%s1 + $0x358] sm:$0xff]
      %v306 = vld [vmem:[%s1 + $0x360] sm:$0xff]
      %v307 = vld [vmem:[%s1 + $0x368] sm:$0xff]
      %v308 = vld [vmem:[%s1 + $0x370] sm:$0xff]
      %v309 = vld [vmem:[%s1 + $0x378] sm:$0xff]
      %v310 = vld [vmem:[%s1 + $0x380] sm:$0xff]
      %v311 = vld [vmem:[%s1 + $0x388] sm:$0xff]
      %v312 = vld [vmem:[%s1 + $0x390] sm:$0xff]
      %v313 = vld [vmem:[%s1 + $0x398] sm:$0xff]
      %v314 = vld [vmem:[%s1 + $0x3a0] sm:$0xff]
      %v315 = vld [vmem:[%s1 + $0x3a8] sm:$0xff]
      %v316 = vld [vmem:[%s1 + $0x3b0] sm:$0xff]
      %v317 = vld [vmem:[%s1 + $0x3b8] sm:$0xff]
      %v318 = vld [vmem:[%s1 + $0x3c0] sm:$0xff]
      %v319 = vld [vmem:[%s1 + $0x3c8] sm:$0xff]
      %v320 = vld [vmem:[%s1 + $0x3d0] sm:$0xff]
      %v321 = vld [vmem:[%s1 + $0x3d8] sm:$0xff]
      %v322 = vld [vmem:[%s1 + $0x3e0] sm:$0xff]
      %v323 = vld [vmem:[%s1 + $0x3e8] sm:$0xff]
      %v324 = vld [vmem:[%s1 + $0x3f0] sm:$0xff]
      %v325 = vld [vmem:[%s1 + $0x3f8] sm:$0xff]
      %v326 = vld [vmem:[%s1 + $0x400] sm:$0xff]
      %v327 = vld [vmem:[%s1 + $0x408] sm:$0xff]
      %v328 = vld [vmem:[%s1 + $0x410] sm:$0xff]
      %v329 = vld [vmem:[%s1 + $0x418] sm:$0xff]
      %v330 = vld [vmem:[%s1 + $0x420] sm:$0xff]
      %v331 = vld [vmem:[%s1 + $0x428] sm:$0xff]
      %v332 = vld [vmem:[%s1 + $0x430] sm:$0xff]
      %v333 = vld [vmem:[%s1 + $0x438] sm:$0xff]
      %v334 = vld [vmem:[%s1 + $0x440] sm:$0xff]
      %v335 = vld [vmem:[%s1 + $0x448] sm:$0xff]
      %v336 = vld [vmem:[%s1 + $0x450] sm:$0xff]
      %v337 = vld [vmem:[%s1 + $0x458] sm:$0xff]
      %v338 = vld [vmem:[%s1 + $0x460] sm:$0xff]
      %v339 = vld [vmem:[%s1 + $0x468] sm:$0xff]
      %v340 = vld [vmem:[%s1 + $0x470] sm:$0xff]
      %v341 = vld [vmem:[%s1 + $0x478] sm:$0xff]
      %v342 = vld [vmem:[%s1 + $0x480] sm:$0xff]
      %v343 = vld [vmem:[%s1 + $0x488] sm:$0xff]
      %v344 = vld [vmem:[%s1 + $0x490] sm:$0xff]
      %v345 = vld [vmem:[%s1 + $0x498] sm:$0xff]
      %v346 = vld [vmem:[%s1 + $0x4a0] sm:$0xff]
      %v347 = vld [vmem:[%s1 + $0x4a8] sm:$0xff]
      %v348 = vld [vmem:[%s1 + $0x4b0] sm:$0xff]
      %v349 = vld [vmem:[%s1 + $0x4b8] sm:$0xff]
      %v350 = vld [vmem:[%s1 + $0x4c0] sm:$0xff]
      %v351 = vld [vmem:[%s1 + $0x4c8] sm:$0xff]
      %v352 = vld [vmem:[%s1 + $0x4d0] sm:$0xff]
      %v353 = vld [vmem:[%s1 + $0x4d8] sm:$0xff]
      %v354 = vld [vmem:[%s1 + $0x4e0] sm:$0xff]
      %v355 = vld [vmem:[%s1 + $0x4e8] sm:$0xff]
      %v356 = vld [vmem:[%s1 + $0x4f0] sm:$0xff]
      %v357 = vld [vmem:[%s1 + $0x4f8] sm:$0xff]
      %v358 = vld [vmem:[%s1 + $0x500] sm:$0xff]
      %v359 = vld [vmem:[%s1 + $0x508] sm:$0xff]
      %v360 = vld [vmem:[%s1 + $0x510] sm:$0xff]
      %v361 = vld [vmem:[%s1 + $0x518] sm:$0xff]
      %v362 = vld [vmem:[%s1 + $0x520] sm:$0xff]
      %v363 = vld [vmem:[%s1 + $0x528] sm:$0xff]
      %v364 = vld [vmem:[%s1 + $0x530] sm:$0xff]
      %v365 = vld [vmem:[%s1 + $0x538] sm:$0xff]
      %v366 = vld [vmem:[%s1 + $0x540] sm:$0xff]
      %v367 = vld [vmem:[%s1 + $0x548] sm:$0xff]
      %v368 = vld [vmem:[%s1 + $0x550] sm:$0xff]
      %v369 = vld [vmem:[%s1 + $0x558] sm:$0xff]
      %v370 = vld [vmem:[%s1 + $0x560] sm:$0xff]
      %v371 = vld [vmem:[%s1 + $0x568] sm:$0xff]
      %v372 = vld [vmem:[%s1 + $0x570] sm:$0xff]
      %v373 = vld [vmem:[%s1 + $0x578] sm:$0xff]
      %v374 = vld [vmem:[%s1 + $0x580] sm:$0xff]
      %v375 = vld [vmem:[%s1 + $0x588] sm:$0xff]
      %v376 = vld [vmem:[%s1 + $0x590] sm:$0xff]
      %v377 = vld [vmem:[%s1 + $0x598] sm:$0xff]
      %v378 = vld [vmem:[%s1 + $0x5a0] sm:$0xff]
      %v379 = vld [vmem:[%s1 + $0x5a8] sm:$0xff]
      %v380 = vld [vmem:[%s1 + $0x5b0] sm:$0xff]
      %v381 = vld [vmem:[%s1 + $0x5b8] sm:$0xff]
      %v382 = vld [vmem:[%s1 + $0x5c0] sm:$0xff]
      %v383 = vld [vmem:[%s1 + $0x5c8] sm:$0xff]
      %v384 = vld [vmem:[%s1 + $0x5d0] sm:$0xff]
      %v385 = vld [vmem:[%s1 + $0x5d8] sm:$0xff]
      %v386 = vld [vmem:[%s1 + $0x5e0] sm:$0xff]
      %v387 = vld [vmem:[%s1 + $0x5e8] sm:$0xff]
      %v388 = vld [vmem:[%s1 + $0x5f0] sm:$0xff]
      %v389 = vld [vmem:[%s1 + $0x5f8] sm:$0xff]
      %v390 = vld [vmem:[#allocation2] sm:$0xff]
      %v391 = vld [vmem:[#allocation2 + $0x8] sm:$0xff]
      %v392 = vld [vmem:[#allocation2 + $0x1] sm:$0xff]
      %v393 = vld [vmem:[#allocation2 + $0x9] sm:$0xff]
      %v394 = vld [vmem:[#allocation2 + $0x2] sm:$0xff]
      %v395 = vld [vmem:[#allocation2 + $0xa] sm:$0xff]
      %v396 = vld [vmem:[%s173] sm:$0xff]
      %v397 = vld [vmem:[%s173 + $0x8] sm:$0xff]
      %v398 = vld [vmem:[%s173 + $0x10] sm:$0xff]
      %v399 = vld [vmem:[%s173 + $0x18] sm:$0xff]
      %v400 = vld [vmem:[%s173 + $0x20] sm:$0xff]
      %v401 = vld [vmem:[%s173 + $0x28] sm:$0xff]
      %v402 = vld [vmem:[%s173 + $0x30] sm:$0xff]
      %v403 = vld [vmem:[%s173 + $0x38] sm:$0xff]
      %404 = vmatprep.subr.mxu0 %v199
      %405 = vmatpush1.msra.mxu0 %v198
      %406 = vmatprep.subr.mxu0 %v203
      %407 = vmatpush1.msra.mxu0 %v202
      %408 = vmatprep.subr.mxu0 %v207
      %409 = vmatpush1.msra.mxu0 %v206
      %410 = vmatprep.subr.mxu0 %v211
      %411 = vmatpush1.msra.mxu0 %v210
      %412 = vmatprep.subr.mxu0 %v215
      %413 = vmatpush1.msra.mxu0 %v214
      %414 = vmatprep.subr.mxu0 %v219
      %415 = vmatpush1.msra.mxu0 %v218
      %416 = vmatprep.subr.mxu0 %v223
      %417 = vmatpush1.msra.mxu0 %v222
      %418 = vmatprep.subr.mxu0 %v227
      %419 = vmatpush1.msra.mxu0 %v226
      %420 = vmatprep.subr.mxu0 %v231
      %421 = vmatpush1.msra.mxu0 %v230
      %422 = vmatprep.subr.mxu0 %v235
      %423 = vmatpush1.msra.mxu0 %v234
      %424 = vmatprep.subr.mxu0 %v239
      %425 = vmatpush1.msra.mxu0 %v238
      %426 = vmatprep.subr.mxu0 %v243
      %427 = vmatpush1.msra.mxu0 %v242
      %428 = vmatprep.subr.mxu0 %v247
      %429 = vmatpush1.msra.mxu0 %v246
      %430 = vmatprep.subr.mxu0 %v251
      %431 = vmatpush1.msra.mxu0 %v250
      %432 = vmatprep.subr.mxu0 %v255
      %433 = vmatpush1.msra.mxu0 %v254
      %434 = vmatprep.subr.mxu0 %v259
      %435 = vmatpush1.msra.mxu0 %v258
      %436 = vmatprep.subr.mxu0 %v263
      %437 = vmatpush1.msra.mxu0 %v262
      %438 = vmatprep.subr.mxu0 %v267
      %439 = vmatpush1.msra.mxu0 %v266
      %440 = vmatprep.subr.mxu0 %v271
      %441 = vmatpush1.msra.mxu0 %v270
      %442 = vmatprep.subr.mxu0 %v275
      %443 = vmatpush1.msra.mxu0 %v274
      %444 = vmatprep.subr.mxu0 %v279
      %445 = vmatpush1.msra.mxu0 %v278
      %446 = vmatprep.subr.mxu0 %v283
      %447 = vmatpush1.msra.mxu0 %v282
      %448 = vmatprep.subr.mxu0 %v287
      %449 = vmatpush1.msra.mxu0 %v286
      %450 = vmatprep.subr.mxu0 %v291
      %451 = vmatpush1.msra.mxu0 %v290
      %452 = vmatprep.subr.mxu0 %v295
      %453 = vmatpush1.msra.mxu0 %v294
      %454 = vmatprep.subr.mxu0 %v299
      %455 = vmatpush1.msra.mxu0 %v298
      %456 = vmatprep.subr.mxu0 %v303
      %457 = vmatpush1.msra.mxu0 %v302
      %458 = vmatprep.subr.mxu0 %v307
      %459 = vmatpush1.msra.mxu0 %v306
      %460 = vmatprep.subr.mxu0 %v311
      %461 = vmatpush1.msra.mxu0 %v310
      %462 = vmatprep.subr.mxu0 %v315
      %463 = vmatpush1.msra.mxu0 %v314
      %464 = vmatprep.subr.mxu0 %v319
      %465 = vmatpush1.msra.mxu0 %v318
      %466 = vmatprep.subr.mxu0 %v323
      %467 = vmatpush1.msra.mxu0 %v322
      %468 = vmatprep.mubr.f32.mxu0 %v392
      %469 = vmatmul.mubr.f32.gmra.mrb[0].mxu0 %v390
      %v470 = vpop.f32.mrb[0].mxu0
      %v471 = vadd.f32 %v396, %v470
      %v472 = vpop.f32.mrb[0].mxu0
      %v473 = vadd.f32 %v397, %v472
      %474 = vmatprep.mubr.f32.mxu0 %v393
      %475 = vmatmul.mubr.f32.gmra.mrb[0].mxu0 %v391
      %v476 = vpop.f32.mrb[0].mxu0
      %v477 = vadd.f32 %v400, %v476
      %v478 = vpop.f32.mrb[0].mxu0
      %v479 = vadd.f32 %v401, %v478
      %480 = vdwg.mxu0
      %481 = vmatprep.subr.mxu0 %v327
      %482 = vmatpush1.msra.mxu0 %v326
      %483 = vmatprep.subr.mxu0 %v331
      %484 = vmatpush1.msra.mxu0 %v330
      %485 = vmatprep.subr.mxu0 %v335
      %486 = vmatpush1.msra.mxu0 %v334
      %487 = vmatprep.subr.mxu0 %v339
      %488 = vmatpush1.msra.mxu0 %v338
      %489 = vmatprep.subr.mxu0 %v343
      %490 = vmatpush1.msra.mxu0 %v342
      %491 = vmatprep.subr.mxu0 %v347
      %492 = vmatpush1.msra.mxu0 %v346
      %493 = vmatprep.subr.mxu0 %v351
      %494 = vmatpush1.msra.mxu0 %v350
      %495 = vmatprep.subr.mxu0 %v355
      %496 = vmatpush1.msra.mxu0 %v354
      %497 = vmatprep.subr.mxu0 %v359
      %498 = vmatpush1.msra.mxu0 %v358
      %499 = vmatprep.subr.mxu0 %v363
      %500 = vmatpush1.msra.mxu0 %v362
      %501 = vmatprep.subr.mxu0 %v367
      %502 = vmatpush1.msra.mxu0 %v366
      %503 = vmatprep.subr.mxu0 %v371
      %504 = vmatpush1.msra.mxu0 %v370
      %505 = vmatprep.subr.mxu0 %v375
      %506 = vmatpush1.msra.mxu0 %v374
      %507 = vmatprep.subr.mxu0 %v379
      %508 = vmatpush1.msra.mxu0 %v378
      %509 = vmatprep.subr.mxu0 %v383
      %510 = vmatpush1.msra.mxu0 %v382
      %511 = vmatprep.subr.mxu0 %v387
      %512 = vmatpush1.msra.mxu0 %v386
      %513 = vmatprep.subr.mxu0 0.0
      %514 = vmatpush1.msra.mxu0 0.0
      %515 = vmatprep.subr.mxu0 0.0
      %516 = vmatpush1.msra.mxu0 0.0
      %517 = vmatprep.subr.mxu0 0.0
      %518 = vmatpush1.msra.mxu0 0.0
      %519 = vmatprep.subr.mxu0 0.0
      %520 = vmatpush1.msra.mxu0 0.0
      %521 = vmatprep.subr.mxu0 0.0
      %522 = vmatpush1.msra.mxu0 0.0
      %523 = vmatprep.subr.mxu0 0.0
      %524 = vmatpush1.msra.mxu0 0.0
      %525 = vmatprep.subr.mxu0 0.0
      %526 = vmatpush1.msra.mxu0 0.0
      %527 = vmatprep.subr.mxu0 0.0
      %528 = vmatpush1.msra.mxu0 0.0
      %529 = vmatprep.subr.mxu0 0.0
      %530 = vmatpush1.msra.mxu0 0.0
      %531 = vmatprep.subr.mxu0 0.0
      %532 = vmatpush1.msra.mxu0 0.0
      %533 = vmatprep.subr.mxu0 0.0
      %534 = vmatpush1.msra.mxu0 0.0
      %535 = vmatprep.subr.mxu0 0.0
      %536 = vmatpush1.msra.mxu0 0.0
      %537 = vmatprep.subr.mxu0 0.0
      %538 = vmatpush1.msra.mxu0 0.0
      %539 = vmatprep.subr.mxu0 0.0
      %540 = vmatpush1.msra.mxu0 0.0
      %541 = vmatprep.subr.mxu0 0.0
      %542 = vmatpush1.msra.mxu0 0.0
      %543 = vmatprep.subr.mxu0 0.0
      %544 = vmatpush1.msra.mxu0 0.0
      %545 = vmatprep.mubr.f32.mxu0 0.0
      %546 = vmatmul.mubr.f32.gmra.mrb[0].mxu0 %v394
      %v547 = vpop.f32.mrb[0].mxu0
      %v548 = vadd.f32 %v471, %v547
      %v549 = vpop.f32.mrb[0].mxu0
      %v550 = vadd.f32 %v473, %v549
      %551 = vmatprep.mubr.f32.mxu0 0.0
      %552 = vmatmul.mubr.f32.gmra.mrb[0].mxu0 %v395
      %v553 = vpop.f32.mrb[0].mxu0
      %v554 = vadd.f32 %v477, %v553
      %v555 = vpop.f32.mrb[0].mxu0
      %v556 = vadd.f32 %v479, %v555
      %557 = vdwg.mxu0
      %558 = vmatprep.subr.mxu0 %v201
      %559 = vmatpush1.msra.mxu0 %v200
      %560 = vmatprep.subr.mxu0 %v205
      %561 = vmatpush1.msra.mxu0 %v204
      %562 = vmatprep.subr.mxu0 %v209
      %563 = vmatpush1.msra.mxu0 %v208
      %564 = vmatprep.subr.mxu0 %v213
      %565 = vmatpush1.msra.mxu0 %v212
      %566 = vmatprep.subr.mxu0 %v217
      %567 = vmatpush1.msra.mxu0 %v216
      %568 = vmatprep.subr.mxu0 %v221
      %569 = vmatpush1.msra.mxu0 %v220
      %570 = vmatprep.subr.mxu0 %v225
      %571 = vmatpush1.msra.mxu0 %v224
      %572 = vmatprep.subr.mxu0 %v229
      %573 = vmatpush1.msra.mxu0 %v228
      %574 = vmatprep.subr.mxu0 %v233
      %575 = vmatpush1.msra.mxu0 %v232
      %576 = vmatprep.subr.mxu0 %v237
      %577 = vmatpush1.msra.mxu0 %v236
      %578 = vmatprep.subr.mxu0 %v241
      %579 = vmatpush1.msra.mxu0 %v240
      %580 = vmatprep.subr.mxu0 %v245
      %581 = vmatpush1.msra.mxu0 %v244
      %582 = vmatprep.subr.mxu0 %v249
      %583 = vmatpush1.msra.mxu0 %v248
      %584 = vmatprep.subr.mxu0 %v253
      %585 = vmatpush1.msra.mxu0 %v252
      %586 = vmatprep.subr.mxu0 %v257
      %587 = vmatpush1.msra.mxu0 %v256
      %588 = vmatprep.subr.mxu0 %v261
      %589 = vmatpush1.msra.mxu0 %v260
      %590 = vmatprep.subr.mxu0 %v265
      %591 = vmatpush1.msra.mxu0 %v264
      %592 = vmatprep.subr.mxu0 %v269
      %593 = vmatpush1.msra.mxu0 %v268
      %594 = vmatprep.subr.mxu0 %v273
      %595 = vmatpush1.msra.mxu0 %v272
      %596 = vmatprep.subr.mxu0 %v277
      %597 = vmatpush1.msra.mxu0 %v276
      %598 = vmatprep.subr.mxu0 %v281
      %599 = vmatpush1.msra.mxu0 %v280
      %600 = vmatprep.subr.mxu0 %v285
      %601 = vmatpush1.msra.mxu0 %v284
      %602 = vmatprep.subr.mxu0 %v289
      %603 = vmatpush1.msra.mxu0 %v288
      %604 = vmatprep.subr.mxu0 %v293
      %605 = vmatpush1.msra.mxu0 %v292
      %606 = vmatprep.subr.mxu0 %v297
      %607 = vmatpush1.msra.mxu0 %v296
      %608 = vmatprep.subr.mxu0 %v301
      %609 = vmatpush1.msra.mxu0 %v300
      %610 = vmatprep.subr.mxu0 %v305
      %611 = vmatpush1.msra.mxu0 %v304
      %612 = vmatprep.subr.mxu0 %v309
      %613 = vmatpush1.msra.mxu0 %v308
      %614 = vmatprep.subr.mxu0 %v313
      %615 = vmatpush1.msra.mxu0 %v312
      %616 = vmatprep.subr.mxu0 %v317
      %617 = vmatpush1.msra.mxu0 %v316
      %618 = vmatprep.subr.mxu0 %v321
      %619 = vmatpush1.msra.mxu0 %v320
      %620 = vmatprep.subr.mxu0 %v325
      %621 = vmatpush1.msra.mxu0 %v324
      %622 = vmatprep.mubr.f32.mxu0 %v392
      %623 = vmatmul.mubr.f32.gmra.mrb[0].mxu0 %v390
      %v624 = vpop.f32.mrb[0].mxu0
      %v625 = vadd.f32 %v398, %v624
      %v626 = vpop.f32.mrb[0].mxu0
      %v627 = vadd.f32 %v399, %v626
      %628 = vmatprep.mubr.f32.mxu0 %v393
      %629 = vmatmul.mubr.f32.gmra.mrb[0].mxu0 %v391
      %v630 = vpop.f32.mrb[0].mxu0
      %v631 = vadd.f32 %v402, %v630
      %v632 = vpop.f32.mrb[0].mxu0
      %v633 = vadd.f32 %v403, %v632
      %634 = vdwg.mxu0
      %635 = vmatprep.subr.mxu0 %v329
      %636 = vmatpush1.msra.mxu0 %v328
      %637 = vmatprep.subr.mxu0 %v333
      %638 = vmatpush1.msra.mxu0 %v332
      %639 = vmatprep.subr.mxu0 %v337
      %640 = vmatpush1.msra.mxu0 %v336
      %641 = vmatprep.subr.mxu0 %v341
      %642 = vmatpush1.msra.mxu0 %v340
      %643 = vmatprep.subr.mxu0 %v345
      %644 = vmatpush1.msra.mxu0 %v344
      %645 = vmatprep.subr.mxu0 %v349
      %646 = vmatpush1.msra.mxu0 %v348
      %647 = vmatprep.subr.mxu0 %v353
      %648 = vmatpush1.msra.mxu0 %v352
      %649 = vmatprep.subr.mxu0 %v357
      %650 = vmatpush1.msra.mxu0 %v356
      %651 = vmatprep.subr.mxu0 %v361
      %652 = vmatpush1.msra.mxu0 %v360
      %653 = vmatprep.subr.mxu0 %v365
      %654 = vmatpush1.msra.mxu0 %v364
      %655 = vmatprep.subr.mxu0 %v369
      %656 = vmatpush1.msra.mxu0 %v368
      %657 = vmatprep.subr.mxu0 %v373
      %658 = vmatpush1.msra.mxu0 %v372
      %659 = vmatprep.subr.mxu0 %v377
      %660 = vmatpush1.msra.mxu0 %v376
      %661 = vmatprep.subr.mxu0 %v381
      %662 = vmatpush1.msra.mxu0 %v380
      %663 = vmatprep.subr.mxu0 %v385
      %664 = vmatpush1.msra.mxu0 %v384
      %665 = vmatprep.subr.mxu0 %v389
      %666 = vmatpush1.msra.mxu0 %v388
      %667 = vmatprep.subr.mxu0 0.0
      %668 = vmatpush1.msra.mxu0 0.0
      %669 = vmatprep.subr.mxu0 0.0
      %670 = vmatpush1.msra.mxu0 0.0
      %671 = vmatprep.subr.mxu0 0.0
      %672 = vmatpush1.msra.mxu0 0.0
      %673 = vmatprep.subr.mxu0 0.0
      %674 = vmatpush1.msra.mxu0 0.0
      %675 = vmatprep.subr.mxu0 0.0
      %676 = vmatpush1.msra.mxu0 0.0
      %677 = vmatprep.subr.mxu0 0.0
      %678 = vmatpush1.msra.mxu0 0.0
      %679 = vmatprep.subr.mxu0 0.0
      %680 = vmatpush1.msra.mxu0 0.0
      %681 = vmatprep.subr.mxu0 0.0
      %682 = vmatpush1.msra.mxu0 0.0
      %683 = vmatprep.subr.mxu0 0.0
      %684 = vmatpush1.msra.mxu0 0.0
      %685 = vmatprep.subr.mxu0 0.0
      %686 = vmatpush1.msra.mxu0 0.0
      %687 = vmatprep.subr.mxu0 0.0
      %688 = vmatpush1.msra.mxu0 0.0
      %689 = vmatprep.subr.mxu0 0.0
      %690 = vmatpush1.msra.mxu0 0.0
      %691 = vmatprep.subr.mxu0 0.0
      %692 = vmatpush1.msra.mxu0 0.0
      %693 = vmatprep.subr.mxu0 0.0
      %694 = vmatpush1.msra.mxu0 0.0
      %695 = vmatprep.subr.mxu0 0.0
      %696 = vmatpush1.msra.mxu0 0.0
      %697 = vmatprep.subr.mxu0 0.0
      %698 = vmatpush1.msra.mxu0 0.0
      %699 = vmatprep.mubr.f32.mxu0 0.0
      %700 = vmatmul.mubr.f32.gmra.mrb[0].mxu0 %v394
      %v701 = vpop.f32.mrb[0].mxu0
      %v702 = vadd.f32 %v625, %v701
      %v703 = vpop.f32.mrb[0].mxu0
      %v704 = vadd.f32 %v627, %v703
      %705 = vmatprep.mubr.f32.mxu0 0.0
      %706 = vmatmul.mubr.f32.gmra.mrb[0].mxu0 %v395
      %v707 = vpop.f32.mrb[0].mxu0
      %v708 = vadd.f32 %v631, %v707
      %v709 = vpop.f32.mrb[0].mxu0
      %v710 = vadd.f32 %v633, %v709
      %711 = vdwg.mxu0
      %v712 = vxor.u32 %v548, 2147483648
      %v713 = vxor.u32 %v554, 2147483648
      %v714 = vmul.f32 %v712, 1.442695
      %v715 = vpow.pop %v714
      %v716 = vmul.f32 %v713, 1.442695
      %v717 = vpow.pop %v716
      %v718 = vadd.f32 %v715, 1.0
      %v719 = vadd.f32 %v717, 1.0
      %v720 = vrcp.pop %v718
      %v721 = vmul.f32 1.0, %v720
      %v722 = vrcp.pop %v719
      %v723 = vmul.f32 1.0, %v722
      %v724 = vxor.u32 %v550, 2147483648
      %v725 = vxor.u32 %v556, 2147483648
      %v726 = vmul.f32 %v724, 1.442695
      %v727 = vpow.pop %v726
      %v728 = vmul.f32 %v725, 1.442695
      %v729 = vpow.pop %v728
      %v730 = vadd.f32 %v727, 1.0
      %v731 = vadd.f32 %v729, 1.0
      %v732 = vrcp.pop %v730
      %v733 = vmul.f32 1.0, %v732
      %v734 = vrcp.pop %v731
      %v735 = vmul.f32 1.0, %v734
      %v736 = vxor.u32 %v702, 2147483648
      %v737 = vxor.u32 %v708, 2147483648
      %v738 = vmul.f32 %v736, 1.442695
      %v739 = vpow.pop %v738
      %v740 = vmul.f32 %v737, 1.442695
      %v741 = vpow.pop %v740
      %v742 = vadd.f32 %v739, 1.0
      %v743 = vadd.f32 %v741, 1.0
      %v744 = vrcp.pop %v742
      %v745 = vmul.f32 1.0, %v744
      %v746 = vrcp.pop %v743
      %v747 = vmul.f32 1.0, %v746
      %v748 = vtanh.pop %v704
      %v749 = vtanh.pop %v710
      %v750 = vld [vmem:[#allocation3] sm:$0xff]
      %v751 = vld [vmem:[#allocation3 + $0x8] sm:$0xff]
      %v752 = vmul.f32 %v733, %v750
      %v753 = vmul.f32 %v735, %v751
      %v754 = vmul.f32 %v721, %v748
      %v755 = vmul.f32 %v723, %v749
      %v756 = vadd.f32 %v752, %v754
      %v757 = vadd.f32 %v753, %v755
      %v758 = vtanh.pop %v756
      %v759 = vtanh.pop %v757
      %v760 = vmul.f32 %v745, %v758
      %v761 = vmul.f32 %v747, %v759
      %762 = vst [vmem:[#allocation3] sm:$0xff] %v756
      %763 = vst [vmem:[#allocation3 + $0x8] sm:$0xff] %v757
      %764 = vst [vmem:[#allocation2 + $0x1] sm:$0xff] %v760
      %765 = vst [vmem:[#allocation2 + $0x9] sm:$0xff] %v761
      %766 = vst [vmem:[%s178] sm:$0xff] %v760
      %767 = vst [vmem:[%s178 + $0x8] sm:$0xff] %v761
      %768 = vst [vmem:[%s183] sm:$0xff] %v756
      %769 = vst [vmem:[%s183 + $0x8] sm:$0xff] %v757
      %s770 = scalar_lea.vmem [#allocation2], 24
      %v771 = vld [vmem:[%s770] sm:$0xff]
      %v772 = vld [vmem:[%s770 + $0x8] sm:$0xff]
      %v773 = vld [vmem:[%s770 + $0x1] sm:$0xff]
      %v774 = vld [vmem:[%s770 + $0x9] sm:$0xff]
      %v775 = vld [vmem:[%s770 + $0x2] sm:$0xff]
      %v776 = vld [vmem:[%s770 + $0xa] sm:$0xff]
      %s777 = scalar_lea.vmem %s173, 64
      %v778 = vld [vmem:[%s777] sm:$0xff]
      %v779 = vld [vmem:[%s777 + $0x8] sm:$0xff]
      %v780 = vld [vmem:[%s777 + $0x10] sm:$0xff]
      %v781 = vld [vmem:[%s777 + $0x18] sm:$0xff]
      %v782 = vld [vmem:[%s777 + $0x20] sm:$0xff]
      %v783 = vld [vmem:[%s777 + $0x28] sm:$0xff]
      %v784 = vld [vmem:[%s777 + $0x30] sm:$0xff]
      %v785 = vld [vmem:[%s777 + $0x38] sm:$0xff]
      %786 = vmatprep.subr.mxu0 %v199
      %787 = vmatpush1.msra.mxu0 %v198
      %788 = vmatprep.subr.mxu0 %v203
      %789 = vmatpush1.msra.mxu0 %v202
      %790 = vmatprep.subr.mxu0 %v207
      %791 = vmatpush1.msra.mxu0 %v206
      %792 = vmatprep.subr.mxu0 %v211
      %793 = vmatpush1.msra.mxu0 %v210
      %794 = vmatprep.subr.mxu0 %v215
      %795 = vmatpush1.msra.mxu0 %v214
      %796 = vmatprep.subr.mxu0 %v219
      %797 = vmatpush1.msra.mxu0 %v218
      %798 = vmatprep.subr.mxu0 %v223
      %799 = vmatpush1.msra.mxu0 %v222
      %800 = vmatprep.subr.mxu0 %v227
      %801 = vmatpush1.msra.mxu0 %v226
      %802 = vmatprep.subr.mxu0 %v231
      %803 = vmatpush1.msra.mxu0 %v230
      %804 = vmatprep.subr.mxu0 %v235
      %805 = vmatpush1.msra.mxu0 %v234
      %806 = vmatprep.subr.mxu0 %v239
      %807 = vmatpush1.msra.mxu0 %v238
      %808 = vmatprep.subr.mxu0 %v243
      %809 = vmatpush1.msra.mxu0 %v242
      %810 = vmatprep.subr.mxu0 %v247
      %811 = vmatpush1.msra.mxu0 %v246
      %812 = vmatprep.subr.mxu0 %v251
      %813 = vmatpush1.msra.mxu0 %v250
      %814 = vmatprep.subr.mxu0 %v255
      %815 = vmatpush1.msra.mxu0 %v254
      %816 = vmatprep.subr.mxu0 %v259
      %817 = vmatpush1.msra.mxu0 %v258
      %818 = vmatprep.subr.mxu0 %v263
      %819 = vmatpush1.msra.mxu0 %v262
      %820 = vmatprep.subr.mxu0 %v267
      %821 = vmatpush1.msra.mxu0 %v266
      %822 = vmatprep.subr.mxu0 %v271
      %823 = vmatpush1.msra.mxu0 %v270
      %824 = vmatprep.subr.mxu0 %v275
      %825 = vmatpush1.msra.mxu0 %v274
      %826 = vmatprep.subr.mxu0 %v279
      %827 = vmatpush1.msra.mxu0 %v278
      %828 = vmatprep.subr.mxu0 %v283
      %829 = vmatpush1.msra.mxu0 %v282
      %830 = vmatprep.subr.mxu0 %v287
      %831 = vmatpush1.msra.mxu0 %v286
      %832 = vmatprep.subr.mxu0 %v291
      %833 = vmatpush1.msra.mxu0 %v290
      %834 = vmatprep.subr.mxu0 %v295
      %835 = vmatpush1.msra.mxu0 %v294
      %836 = vmatprep.subr.mxu0 %v299
      %837 = vmatpush1.msra.mxu0 %v298
      %838 = vmatprep.subr.mxu0 %v303
      %839 = vmatpush1.msra.mxu0 %v302
      %840 = vmatprep.subr.mxu0 %v307
      %841 = vmatpush1.msra.mxu0 %v306
      %842 = vmatprep.subr.mxu0 %v311
      %843 = vmatpush1.msra.mxu0 %v310
      %844 = vmatprep.subr.mxu0 %v315
      %845 = vmatpush1.msra.mxu0 %v314
      %846 = vmatprep.subr.mxu0 %v319
      %847 = vmatpush1.msra.mxu0 %v318
      %848 = vmatprep.subr.mxu0 %v323
      %849 = vmatpush1.msra.mxu0 %v322
      %850 = vmatprep.mubr.f32.mxu0 %v773
      %851 = vmatmul.mubr.f32.gmra.mrb[0].mxu0 %v771
      %v852 = vpop.f32.mrb[0].mxu0
      %v853 = vadd.f32 %v778, %v852
      %v854 = vpop.f32.mrb[0].mxu0
      %v855 = vadd.f32 %v779, %v854
      %856 = vmatprep.mubr.f32.mxu0 %v774
      %857 = vmatmul.mubr.f32.gmra.mrb[0].mxu0 %v772
      %v858 = vpop.f32.mrb[0].mxu0
      %v859 = vadd.f32 %v782, %v858
      %v860 = vpop.f32.mrb[0].mxu0
      %v861 = vadd.f32 %v783, %v860
      %862 = vdwg.mxu0
      %863 = vmatprep.subr.mxu0 %v327
      %864 = vmatpush1.msra.mxu0 %v326
      %865 = vmatprep.subr.mxu0 %v331
      %866 = vmatpush1.msra.mxu0 %v330
      %867 = vmatprep.subr.mxu0 %v335
      %868 = vmatpush1.msra.mxu0 %v334
      %869 = vmatprep.subr.mxu0 %v339
      %870 = vmatpush1.msra.mxu0 %v338
      %871 = vmatprep.subr.mxu0 %v343
      %872 = vmatpush1.msra.mxu0 %v342
      %873 = vmatprep.subr.mxu0 %v347
      %874 = vmatpush1.msra.mxu0 %v346
      %875 = vmatprep.subr.mxu0 %v351
      %876 = vmatpush1.msra.mxu0 %v350
      %877 = vmatprep.subr.mxu0 %v355
      %878 = vmatpush1.msra.mxu0 %v354
      %879 = vmatprep.subr.mxu0 %v359
      %880 = vmatpush1.msra.mxu0 %v358
      %881 = vmatprep.subr.mxu0 %v363
      %882 = vmatpush1.msra.mxu0 %v362
      %883 = vmatprep.subr.mxu0 %v367
      %884 = vmatpush1.msra.mxu0 %v366
      %885 = vmatprep.subr.mxu0 %v371
      %886 = vmatpush1.msra.mxu0 %v370
      %887 = vmatprep.subr.mxu0 %v375
      %888 = vmatpush1.msra.mxu0 %v374
      %889 = vmatprep.subr.mxu0 %v379
      %890 = vmatpush1.msra.mxu0 %v378
      %891 = vmatprep.subr.mxu0 %v383
      %892 = vmatpush1.msra.mxu0 %v382
      %893 = vmatprep.subr.mxu0 %v387
      %894 = vmatpush1.msra.mxu0 %v386
      %895 = vmatprep.subr.mxu0 0.0
      %896 = vmatpush1.msra.mxu0 0.0
      %897 = vmatprep.subr.mxu0 0.0
      %898 = vmatpush1.msra.mxu0 0.0
      %899 = vmatprep.subr.mxu0 0.0
      %900 = vmatpush1.msra.mxu0 0.0
      %901 = vmatprep.subr.mxu0 0.0
      %902 = vmatpush1.msra.mxu0 0.0
      %903 = vmatprep.subr.mxu0 0.0
      %904 = vmatpush1.msra.mxu0 0.0
      %905 = vmatprep.subr.mxu0 0.0
      %906 = vmatpush1.msra.mxu0 0.0
      %907 = vmatprep.subr.mxu0 0.0
      %908 = vmatpush1.msra.mxu0 0.0
      %909 = vmatprep.subr.mxu0 0.0
      %910 = vmatpush1.msra.mxu0 0.0
      %911 = vmatprep.subr.mxu0 0.0
      %912 = vmatpush1.msra.mxu0 0.0
      %913 = vmatprep.subr.mxu0 0.0
      %914 = vmatpush1.msra.mxu0 0.0
      %915 = vmatprep.subr.mxu0 0.0
      %916 = vmatpush1.msra.mxu0 0.0
      %917 = vmatprep.subr.mxu0 0.0
      %918 = vmatpush1.msra.mxu0 0.0
      %919 = vmatprep.subr.mxu0 0.0
      %920 = vmatpush1.msra.mxu0 0.0
      %921 = vmatprep.subr.mxu0 0.0
      %922 = vmatpush1.msra.mxu0 0.0
      %923 = vmatprep.subr.mxu0 0.0
      %924 = vmatpush1.msra.mxu0 0.0
      %925 = vmatprep.subr.mxu0 0.0
      %926 = vmatpush1.msra.mxu0 0.0
      %927 = vmatprep.mubr.f32.mxu0 0.0
      %928 = vmatmul.mubr.f32.gmra.mrb[0].mxu0 %v775
      %v929 = vpop.f32.mrb[0].mxu0
      %v930 = vadd.f32 %v853, %v929
      %v931 = vpop.f32.mrb[0].mxu0
      %v932 = vadd.f32 %v855, %v931
      %933 = vmatprep.mubr.f32.mxu0 0.0
      %934 = vmatmul.mubr.f32.gmra.mrb[0].mxu0 %v776
      %v935 = vpop.f32.mrb[0].mxu0
      %v936 = vadd.f32 %v859, %v935
      %v937 = vpop.f32.mrb[0].mxu0
      %v938 = vadd.f32 %v861, %v937
      %939 = vdwg.mxu0
      %940 = vmatprep.subr.mxu0 %v201
      %941 = vmatpush1.msra.mxu0 %v200
      %942 = vmatprep.subr.mxu0 %v205
      %943 = vmatpush1.msra.mxu0 %v204
      %944 = vmatprep.subr.mxu0 %v209
      %945 = vmatpush1.msra.mxu0 %v208
      %946 = vmatprep.subr.mxu0 %v213
      %947 = vmatpush1.msra.mxu0 %v212
      %948 = vmatprep.subr.mxu0 %v217
      %949 = vmatpush1.msra.mxu0 %v216
      %950 = vmatprep.subr.mxu0 %v221
      %951 = vmatpush1.msra.mxu0 %v220
      %952 = vmatprep.subr.mxu0 %v225
      %953 = vmatpush1.msra.mxu0 %v224
      %954 = vmatprep.subr.mxu0 %v229
      %955 = vmatpush1.msra.mxu0 %v228
      %956 = vmatprep.subr.mxu0 %v233
      %957 = vmatpush1.msra.mxu0 %v232
      %958 = vmatprep.subr.mxu0 %v237
      %959 = vmatpush1.msra.mxu0 %v236
      %960 = vmatprep.subr.mxu0 %v241
      %961 = vmatpush1.msra.mxu0 %v240
      %962 = vmatprep.subr.mxu0 %v245
      %963 = vmatpush1.msra.mxu0 %v244
      %964 = vmatprep.subr.mxu0 %v249
      %965 = vmatpush1.msra.mxu0 %v248
      %966 = vmatprep.subr.mxu0 %v253
      %967 = vmatpush1.msra.mxu0 %v252
      %968 = vmatprep.subr.mxu0 %v257
      %969 = vmatpush1.msra.mxu0 %v256
      %970 = vmatprep.subr.mxu0 %v261
      %971 = vmatpush1.msra.mxu0 %v260
      %972 = vmatprep.subr.mxu0 %v265
      %973 = vmatpush1.msra.mxu0 %v264
      %974 = vmatprep.subr.mxu0 %v269
      %975 = vmatpush1.msra.mxu0 %v268
      %976 = vmatprep.subr.mxu0 %v273
      %977 = vmatpush1.msra.mxu0 %v272
      %978 = vmatprep.subr.mxu0 %v277
      %979 = vmatpush1.msra.mxu0 %v276
      %980 = vmatprep.subr.mxu0 %v281
      %981 = vmatpush1.msra.mxu0 %v280
      %982 = vmatprep.subr.mxu0 %v285
      %983 = vmatpush1.msra.mxu0 %v284
      %984 = vmatprep.subr.mxu0 %v289
      %985 = vmatpush1.msra.mxu0 %v288
      %986 = vmatprep.subr.mxu0 %v293
      %987 = vmatpush1.msra.mxu0 %v292
      %988 = vmatprep.subr.mxu0 %v297
      %989 = vmatpush1.msra.mxu0 %v296
      %990 = vmatprep.subr.mxu0 %v301
      %991 = vmatpush1.msra.mxu0 %v300
      %992 = vmatprep.subr.mxu0 %v305
      %993 = vmatpush1.msra.mxu0 %v304
      %994 = vmatprep.subr.mxu0 %v309
      %995 = vmatpush1.msra.mxu0 %v308
      %996 = vmatprep.subr.mxu0 %v313
      %997 = vmatpush1.msra.mxu0 %v312
      %998 = vmatprep.subr.mxu0 %v317
      %999 = vmatpush1.msra.mxu0 %v316
      %1000 = vmatprep.subr.mxu0 %v321
      %1001 = vmatpush1.msra.mxu0 %v320
      %1002 = vmatprep.subr.mxu0 %v325
      %1003 = vmatpush1.msra.mxu0 %v324
      %1004 = vmatprep.mubr.f32.mxu0 %v773
      %1005 = vmatmul.mubr.f32.gmra.mrb[0].mxu0 %v771
      %v1006 = vpop.f32.mrb[0].mxu0
      %v1007 = vadd.f32 %v780, %v1006
      %v1008 = vpop.f32.mrb[0].mxu0
      %v1009 = vadd.f32 %v781, %v1008
      %1010 = vmatprep.mubr.f32.mxu0 %v774
      %1011 = vmatmul.mubr.f32.gmra.mrb[0].mxu0 %v772
      %v1012 = vpop.f32.mrb[0].mxu0
      %v1013 = vadd.f32 %v784, %v1012
      %v1014 = vpop.f32.mrb[0].mxu0
      %v1015 = vadd.f32 %v785, %v1014
      %1016 = vdwg.mxu0
      %1017 = vmatprep.subr.mxu0 %v329
      %1018 = vmatpush1.msra.mxu0 %v328
      %1019 = vmatprep.subr.mxu0 %v333
      %1020 = vmatpush1.msra.mxu0 %v332
      %1021 = vmatprep.subr.mxu0 %v337
      %1022 = vmatpush1.msra.mxu0 %v336
      %1023 = vmatprep.subr.mxu0 %v341
      %1024 = vmatpush1.msra.mxu0 %v340
      %1025 = vmatprep.subr.mxu0 %v345
      %1026 = vmatpush1.msra.mxu0 %v344
      %1027 = vmatprep.subr.mxu0 %v349
      %1028 = vmatpush1.msra.mxu0 %v348
      %1029 = vmatprep.subr.mxu0 %v353
      %1030 = vmatpush1.msra.mxu0 %v352
      %1031 = vmatprep.subr.mxu0 %v357
      %1032 = vmatpush1.msra.mxu0 %v356
      %1033 = vmatprep.subr.mxu0 %v361
      %1034 = vmatpush1.msra.mxu0 %v360
      %1035 = vmatprep.subr.mxu0 %v365
      %1036 = vmatpush1.msra.mxu0 %v364
      %1037 = vmatprep.subr.mxu0 %v369
      %1038 = vmatpush1.msra.mxu0 %v368
      %1039 = vmatprep.subr.mxu0 %v373
      %1040 = vmatpush1.msra.mxu0 %v372
      %1041 = vmatprep.subr.mxu0 %v377
      %1042 = vmatpush1.msra.mxu0 %v376
      %1043 = vmatprep.subr.mxu0 %v381
      %1044 = vmatpush1.msra.mxu0 %v380
      %1045 = vmatprep.subr.mxu0 %v385
      %1046 = vmatpush1.msra.mxu0 %v384
      %1047 = vmatprep.subr.mxu0 %v389
      %1048 = vmatpush1.msra.mxu0 %v388
      %1049 = vmatprep.subr.mxu0 0.0
      %1050 = vmatpush1.msra.mxu0 0.0
      %1051 = vmatprep.subr.mxu0 0.0
      %1052 = vmatpush1.msra.mxu0 0.0
      %1053 = vmatprep.subr.mxu0 0.0
      %1054 = vmatpush1.msra.mxu0 0.0
      %1055 = vmatprep.subr.mxu0 0.0
      %1056 = vmatpush1.msra.mxu0 0.0
      %1057 = vmatprep.subr.mxu0 0.0
      %1058 = vmatpush1.msra.mxu0 0.0
      %1059 = vmatprep.subr.mxu0 0.0
      %1060 = vmatpush1.msra.mxu0 0.0
      %1061 = vmatprep.subr.mxu0 0.0
      %1062 = vmatpush1.msra.mxu0 0.0
      %1063 = vmatprep.subr.mxu0 0.0
      %1064 = vmatpush1.msra.mxu0 0.0
      %1065 = vmatprep.subr.mxu0 0.0
      %1066 = vmatpush1.msra.mxu0 0.0
      %1067 = vmatprep.subr.mxu0 0.0
      %1068 = vmatpush1.msra.mxu0 0.0
      %1069 = vmatprep.subr.mxu0 0.0
      %1070 = vmatpush1.msra.mxu0 0.0
      %1071 = vmatprep.subr.mxu0 0.0
      %1072 = vmatpush1.msra.mxu0 0.0
      %1073 = vmatprep.subr.mxu0 0.0
      %1074 = vmatpush1.msra.mxu0 0.0
      %1075 = vmatprep.subr.mxu0 0.0
      %1076 = vmatpush1.msra.mxu0 0.0
      %1077 = vmatprep.subr.mxu0 0.0
      %1078 = vmatpush1.msra.mxu0 0.0
      %1079 = vmatprep.subr.mxu0 0.0
      %1080 = vmatpush1.msra.mxu0 0.0
      %1081 = vmatprep.mubr.f32.mxu0 0.0
      %1082 = vmatmul.mubr.f32.gmra.mrb[0].mxu0 %v775
      %v1083 = vpop.f32.mrb[0].mxu0
      %v1084 = vadd.f32 %v1007, %v1083
      %v1085 = vpop.f32.mrb[0].mxu0
      %v1086 = vadd.f32 %v1009, %v1085
      %1087 = vmatprep.mubr.f32.mxu0 0.0
      %1088 = vmatmul.mubr.f32.gmra.mrb[0].mxu0 %v776
      %v1089 = vpop.f32.mrb[0].mxu0
      %v1090 = vadd.f32 %v1013, %v1089
      %v1091 = vpop.f32.mrb[0].mxu0
      %v1092 = vadd.f32 %v1015, %v1091
      %1093 = vdwg.mxu0
      %v1094 = vxor.u32 %v930, 2147483648
      %v1095 = vxor.u32 %v936, 2147483648
      %v1096 = vmul.f32 %v1094, 1.442695
      %v1097 = vpow.pop %v1096
      %v1098 = vmul.f32 %v1095, 1.442695
      %v1099 = vpow.pop %v1098
      %v1100 = vadd.f32 %v1097, 1.0
      %v1101 = vadd.f32 %v1099, 1.0
      %v1102 = vrcp.pop %v1100
      %v1103 = vmul.f32 1.0, %v1102
      %v1104 = vrcp.pop %v1101
      %v1105 = vmul.f32 1.0, %v1104
      %v1106 = vxor.u32 %v932, 2147483648
      %v1107 = vxor.u32 %v938, 2147483648
      %v1108 = vmul.f32 %v1106, 1.442695
      %v1109 = vpow.pop %v1108
      %v1110 = vmul.f32 %v1107, 1.442695
      %v1111 = vpow.pop %v1110
      %v1112 = vadd.f32 %v1109, 1.0
      %v1113 = vadd.f32 %v1111, 1.0
      %v1114 = vrcp.pop %v1112
      %v1115 = vmul.f32 1.0, %v1114
      %v1116 = vrcp.pop %v1113
      %v1117 = vmul.f32 1.0, %v1116
      %v1118 = vxor.u32 %v1084, 2147483648
      %v1119 = vxor.u32 %v1090, 2147483648
      %v1120 = vmul.f32 %v1118, 1.442695
      %v1121 = vpow.pop %v1120
      %v1122 = vmul.f32 %v1119, 1.442695
      %v1123 = vpow.pop %v1122
      %v1124 = vadd.f32 %v1121, 1.0
      %v1125 = vadd.f32 %v1123, 1.0
      %v1126 = vrcp.pop %v1124
      %v1127 = vmul.f32 1.0, %v1126
      %v1128 = vrcp.pop %v1125
      %v1129 = vmul.f32 1.0, %v1128
      %v1130 = vtanh.pop %v1086
      %v1131 = vtanh.pop %v1092
      %s1132 = scalar_lea.vmem [#allocation3], 16
      %v1133 = vld [vmem:[%s1132] sm:$0xff]
      %v1134 = vld [vmem:[%s1132 + $0x8] sm:$0xff]
      %v1135 = vmul.f32 %v1115, %v1133
      %v1136 = vmul.f32 %v1117, %v1134
      %v1137 = vmul.f32 %v1103, %v1130
      %v1138 = vmul.f32 %v1105, %v1131
      %v1139 = vadd.f32 %v1135, %v1137
      %v1140 = vadd.f32 %v1136, %v1138
      %v1141 = vtanh.pop %v1139
      %v1142 = vtanh.pop %v1140
      %v1143 = vmul.f32 %v1127, %v1141
      %v1144 = vmul.f32 %v1129, %v1142
      %1145 = vst [vmem:[%s1132] sm:$0xff] %v1139
      %1146 = vst [vmem:[%s1132 + $0x8] sm:$0xff] %v1140
      %1147 = vst [vmem:[%s770 + $0x1] sm:$0xff] %v1143
      %1148 = vst [vmem:[%s770 + $0x9] sm:$0xff] %v1144
      %s1149 = scalar_lea.vmem %s178, 16
      %1150 = vst [vmem:[%s1149] sm:$0xff] %v1143
      %1151 = vst [vmem:[%s1149 + $0x8] sm:$0xff] %v1144
      %s1152 = scalar_lea.vmem %s183, 16
      %1153 = vst [vmem:[%s1152] sm:$0xff] %v1139
      %1154 = vst [vmem:[%s1152 + $0x8] sm:$0xff] %v1140
      %p1155 = scmp.lt.s32.totalorder %s15, 8
      %s1156 = scalar_select %p1155, %s15, 8
      %s1157 = smul.addr %s1156, 4
      %s1158 = smul.addr %s1157, 8
      %s1159 = scalar_lea.vmem %s2, %s1158
      %p1160 = scmp.lt.s32.totalorder %s15, 8
      %s1161 = scalar_select %p1160, %s15, 8
      %s1162 = smul.addr %s1161, 4
      %s1163 = smul.addr %s1162, 8
      %s1164 = scalar_lea.vmem %s3, %s1163
      // Predicated region
      $region33: #{_conv_lstm_forward_pallas.2} parent=27 // pred_check
        %p1165 = pneg %p80
      $region34: #{_conv_lstm_forward_pallas.2} parent=27 // pred_check_branch
        %1167 = sbr.rel (%p1165) target = $region36
      $region35: #{_conv_lstm_forward_pallas.2} parent=27 // pred_region
        _
      $region36: #{_conv_lstm_forward_pallas.2} parent=27 // pred_fallthru
        _
      // Predicated region
      $region37: #{_conv_lstm_forward_pallas.2} parent=27 // pred_check
        %p1168 = pneg %p106
      $region38: #{_conv_lstm_forward_pallas.2} parent=27 // pred_check_branch
        %1170 = sbr.rel (%p1168) target = $region40
      $region39: #{_conv_lstm_forward_pallas.2} parent=27 // pred_region
        _
      $region40: #{_conv_lstm_forward_pallas.2} parent=27 // pred_fallthru
        _
    $region28: #{_conv_lstm_forward_pallas.2} parent=5 // pred_fallthru
      _
    %p1171 = scmp.le.s32.totalorder 2, %s10
    // Predicated region
    $region41: #{_conv_lstm_forward_pallas.2} parent=5 // pred_check
      %p1172 = pneg %p1171
    $region42: #{_conv_lstm_forward_pallas.2} parent=5 // pred_check_branch
      %1174 = sbr.rel (%p1172) target = $region44
    $region43: #{_conv_lstm_forward_pallas.2} parent=5 // pred_region
      %s1175 = ssub.s32 %s10, 2
      // Predicated region
      $region45: #{_conv_lstm_forward_pallas.2} parent=43 // pred_check
        %p1176 = pneg %p86
      $region46: #{_conv_lstm_forward_pallas.2} parent=43 // pred_check_branch
        %1178 = sbr.rel (%p1176) target = $region48
      $region47: #{_conv_lstm_forward_pallas.2} parent=43 // pred_region
        %p1179 = scmp.lt.s32.totalorder %s16, 8
        %s1180 = scalar_select %p1179, %s16, 8
        %s1181 = smul.addr %s1180, 4
        %s1182 = smul.addr %s1181, 8
        %s1183 = scalar_lea.vmem %s2, %s1182
      $region48: #{_conv_lstm_forward_pallas.2} parent=43 // pred_fallthru
        _
      // Predicated region
      $region49: #{_conv_lstm_forward_pallas.2} parent=43 // pred_check
        %p1184 = pneg %p112
      $region50: #{_conv_lstm_forward_pallas.2} parent=43 // pred_check_branch
        %1186 = sbr.rel (%p1184) target = $region52
      $region51: #{_conv_lstm_forward_pallas.2} parent=43 // pred_region
        %p1187 = scmp.lt.s32.totalorder %s16, 8
        %s1188 = scalar_select %p1187, %s16, 8
        %s1189 = smul.addr %s1188, 4
        %s1190 = smul.addr %s1189, 8
        %s1191 = scalar_lea.vmem %s3, %s1190
      $region52: #{_conv_lstm_forward_pallas.2} parent=43 // pred_fallthru
        _
    $region44: #{_conv_lstm_forward_pallas.2} parent=5 // pred_fallthru
      _
  $region6: #{_conv_lstm_forward_pallas.2} parent=0 // loop_footer
    %s14 = sadd.s32 1, %s10
  $region7: #{_conv_lstm_forward_pallas.2} parent=0 // loop_footer_branch
    %9 = sbr.rel target = $region3
  $region8: #{_conv_lstm_forward_pallas.2} parent=0 // loop_exit
    _

</llo_original>
